<compile_context>
chip_gen: v7x
topology: tpu7x:2x2x1
jax: 0.10.0
libtpu: 0.0.40
codegen_flags: <defaults>
</compile_context>

<pallas_src>
import math

import jax
import jax.numpy as jnp
import numpy as np
from jax import lax
from jax.experimental import pallas as pl
from jax.experimental.pallas import tpu as pltpu


# ---------------------------------------------------------------------------
# Pallas kernel
# ---------------------------------------------------------------------------
def _shift_rows(a, k):
    """result[r] = a[r + k]; rows wrap to the top, but wrapped rows only land
    in slab positions whose values are discarded downstream."""
    if k == 0:
        return a
    return jnp.concatenate([a[k:, :], a[:k, :]], axis=0)


def coolnet_kernel(x_ref, b1_ref, bias1_ref, b2_ref, bias2_ref, sb_ref,
                   l1w_ref, l1b_ref, l2w_ref, l2b_ref, l3w_ref, l3b_ref,
                   out_ref):
    """Fused CoolNet forward for a tile of TB samples (6 MXU matmuls total).

    Slab rows: r = b*32 + h (never compacted; meaningful rows keep their
    original stride through both conv/pool stages)."""
    f32, bf16 = jnp.float32, jnp.bfloat16

    def mm(a, b):
        return jnp.dot(a, b, preferred_element_type=f32)   # bf16 in, f32 acc

    # ---- conv1: one K-stacked banded matmul (K = 5*32*3 = 480) -------------
    x = x_ref[...]                                          # (R, 96) bf16
    lhs1 = jnp.concatenate([_shift_rows(x, kh) for kh in range(5)], axis=1)
    z1 = mm(lhs1, b1_ref[...])                              # (R, 168) f32

    # ---- 2x2 pool + bias + relu (pure VPU: lane-half max + row-pair max) ---
    p1 = jnp.maximum(z1[:, :84], z1[:, 84:])                # W-pool
    p1 = jnp.maximum(p1, _shift_rows(p1, 1))                # H-pool
    p1 = jnp.maximum(p1 + bias1_ref[...], 0.0).astype(bf16)  # (R, 84)

    # ---- conv2: one K-stacked banded matmul (K = 5*14*6 = 420) -------------
    lhs2 = jnp.concatenate([_shift_rows(p1, 2 * kh) for kh in range(5)], axis=1)
    z2 = mm(lhs2, b2_ref[...])                              # (R, 160) f32

    p2 = jnp.maximum(z2[:, :80], z2[:, 80:])                # W-pool
    p2 = jnp.maximum(p2, _shift_rows(p2, 2))                # H-pool
    p2 = jnp.maximum(p2 + bias2_ref[...], 0.0).astype(bf16)  # (R, 80)

    # ---- lin1: per-sample CHW flatten via row shifts + tiny row compaction -
    flat = jnp.concatenate([_shift_rows(p2, 4 * j) for j in range(5)], axis=1)
    flat = mm(sb_ref[...], flat).astype(bf16)               # (TB, 400)

    h = jnp.maximum(mm(flat, l1w_ref[...]) + l1b_ref[...], 0.0).astype(bf16)
    h = jnp.maximum(mm(h, l2w_ref[...]) + l2b_ref[...], 0.0).astype(bf16)
    h = jnp.maximum(mm(h, l3w_ref[...]) + l3b_ref[...], 0.0)
    out_ref[...] = h                                        # (TB, 128) f32


# ---------------------------------------------------------------------------
# Wrapper
# ---------------------------------------------------------------------------
def coolnet_forward(x_nchw, kp):
    B = x_nchw.shape[0]
    tb = kp["Sb"].shape[0]                       # batch tile baked into selector
    assert B % tb == 0, (B, tb)

    # NCHW -> NHWC -> (B*32, 32*3): rows = b*32 + h, lanes = w*3 + ci.
    x2d = jnp.transpose(x_nchw, (0, 2, 3, 1)).reshape(B * 32, 96)
    x2d = x2d.astype(jnp.bfloat16)

    weight_keys = ("B1", "bias1", "B2", "bias2", "Sb",
                   "L1W", "l1b", "L2W", "l2b", "L3W", "l3b")
    weights = [kp[k] for k in weight_keys]

    def fullspec(arr):
        nd = arr.ndim
        return pl.BlockSpec(arr.shape, lambda i, _n=nd: (0,) * _n)

    out = pl.pallas_call(
        coolnet_kernel,
        out_shape=jax.ShapeDtypeStruct((B, 128), jnp.float32),
        grid=(B // tb,),
        in_specs=[pl.BlockSpec((tb * 32, 96), lambda i: (i, 0))]
                 + [fullspec(w) for w in weights],
        out_specs=pl.BlockSpec((tb, 128), lambda i: (i, 0)),
        compiler_params=pltpu.CompilerParams(
            dimension_semantics=("parallel",)),   # independent batch tiles
    )(x2d, *weights)
    return out[:, :10]


# ---------------------------------------------------------------------------
# Parameter construction / repacking
# ---------------------------------------------------------------------------
def _conv_band_stacked(w_oihw, in_w):
    """Fold a VALID KxK conv into ONE stacked block-Toeplitz matrix.

    LHS lane layout (per kh slice, lane-concatenated): iw*ci + c.
    Output lane layout: [even ow | odd ow], each block (ow//2)*co + o, so a
    2x1 W-pool is max(z[:, :half*co], z[:, half*co:])."""
    co, ci, K, _ = w_oihw.shape
    out_w = in_w - K + 1
    half = out_w // 2
    w = np.asarray(w_oihw, np.float32)
    mat = np.zeros((K * in_w * ci, out_w * co), np.float32)
    for kh in range(K):
        for kw in range(K):
            tap = w[:, :, kh, kw].T                       # (ci, co)
            for ow in range(out_w):
                col = ((ow // 2) + (ow % 2) * half) * co
                row = kh * in_w * ci + (ow + kw) * ci
                mat[row:row + ci, col:col + co] = tap
    return mat


def pack_params(torch_p, batch_tile):
    bf16, f32 = jnp.bfloat16, jnp.float32
    tp = {k: np.asarray(v, np.float32) for k, v in torch_p.items()}

    # Row-compaction selector: picks row b*32 (the per-sample flatten row).
    sb = np.zeros((batch_tile, batch_tile * 32), np.float32)
    sb[np.arange(batch_tile), np.arange(batch_tile) * 32] = 1.0

    # lin1 consumes lanes j2*80 + i2*16 + c; permute torch's CHW flatten.
    l1 = tp["l1w"].reshape(120, 16, 5, 5)                 # (n, c, h, w)
    l1wp = np.transpose(l1, (2, 3, 1, 0)).reshape(400, 120)
    l1wp = np.pad(l1wp, ((0, 0), (0, 8)))                 # pad N: 120 -> 128

    l2p = np.zeros((128, 128), np.float32)
    l2p[:120, :84] = tp["l2w"].T
    l3p = np.zeros((128, 128), np.float32)
    l3p[:84, :10] = tp["l3w"].T

    return dict(
        B1=jnp.asarray(_conv_band_stacked(tp["w1"], 32), bf16),   # (480, 168)
        bias1=jnp.asarray(np.tile(tp["b1"], 14)[None, :], f32),   # (1, 84)
        B2=jnp.asarray(_conv_band_stacked(tp["w2"], 14), bf16),   # (420, 160)
        bias2=jnp.asarray(np.tile(tp["b2"], 5)[None, :], f32),    # (1, 80)
        Sb=jnp.asarray(sb, bf16),                                 # (TB, TB*32)
        L1W=jnp.asarray(l1wp, bf16),                              # (400, 128)
        l1b=jnp.asarray(np.pad(tp["l1b"], (0, 8))[None, :], f32),
        L2W=jnp.asarray(l2p, bf16),
        l2b=jnp.asarray(np.pad(tp["l2b"], (0, 44))[None, :], f32),
        L3W=jnp.asarray(l3p, bf16),
        l3b=jnp.asarray(np.pad(tp["l3b"], (0, 118))[None, :], f32),
    )


def init_params(key, batch_tile):
    ks = jax.random.split(key, 10)

    def u(k, shape, fan_in):
        bound = 1.0 / math.sqrt(fan_in)
        return jax.random.uniform(k, shape, jnp.float32, -bound, bound)

    # PyTorch-layout parameters (deterministic synthetic init).
    torch_p = dict(
        w1=u(ks[0], (6, 3, 5, 5), 3 * 25),   b1=u(ks[1], (6,), 3 * 25),
        w2=u(ks[2], (16, 6, 5, 5), 6 * 25),  b2=u(ks[3], (16,), 6 * 25),
        l1w=u(ks[4], (120, 400), 400),       l1b=u(ks[5], (120,), 400),
        l2w=u(ks[6], (84, 120), 120),        l2b=u(ks[7], (84,), 120),
        l3w=u(ks[8], (10, 84), 84),          l3b=u(ks[9], (10,), 84),
    )
    return torch_p, pack_params(torch_p, batch_tile)


# ---------------------------------------------------------------------------
# Pure-JAX reference with PyTorch semantics (NCHW, OIHW, CHW flatten)
# ---------------------------------------------------------------------------
def reference_forward(x_nchw, tp):
    dn = ("NCHW", "OIHW", "NCHW")
    hi = lax.Precision.HIGHEST
    y = lax.conv_general_dilated(x_nchw, tp["w1"], (1, 1), "VALID",
                                 dimension_numbers=dn, precision=hi)
    y = y + tp["b1"][None, :, None, None]
    y = lax.reduce_window(y, -jnp.inf, lax.max, (1, 1, 2, 2), (1, 1, 2, 2), "VALID")
    y = jnp.maximum(y, 0.0)
    y = lax.conv_general_dilated(y, tp["w2"], (1, 1), "VALID",
                                 dimension_numbers=dn, precision=hi)
    y = y + tp["b2"][None, :, None, None]
    y = lax.reduce_window(y, -jnp.inf, lax.max, (1, 1, 2, 2), (1, 1, 2, 2), "VALID")
    y = jnp.maximum(y, 0.0)
    y = y.reshape(y.shape[0], -1)
    y = jnp.maximum(jnp.dot(y, tp["l1w"].T, precision=hi) + tp["l1b"], 0.0)
    y = jnp.maximum(jnp.dot(y, tp["l2w"].T, precision=hi) + tp["l2b"], 0.0)
    y = jnp.maximum(jnp.dot(y, tp["l3w"].T, precision=hi) + tp["l3b"], 0.0)
    return y


if __name__ == "__main__":
    # TODO(synk): BaseModel's logging/optimizer/criterion utilities are training
    # glue with no forward-pass compute; only CoolNet.forward is implemented.
    key = jax.random.PRNGKey(0)
    kparam, kx = jax.random.split(key)

    TB = 8                                    # batch tile (rows/step = 256)
    B = 32                                    # grid = (4,) -> multi-step pipeline
    torch_p, kern_p = init_params(kparam, batch_tile=TB)

    # Input matches PyTorch convention: NCHW, 3x32x32 (required by 16*5*5 flatten).
    x = jax.random.normal(kx, (B, 3, 32, 32), jnp.float32)

    out = jax.jit(coolnet_forward)(x, kern_p)
    out = jax.block_until_ready(out)
    assert out.shape == (B, 10)

    ref = reference_forward(x, torch_p)
    max_err = float(jnp.max(jnp.abs(out - ref)))
    assert max_err < 5e-2, f"mismatch vs reference: {max_err}"
    print("KERNEL_OK")
</pallas_src>

<mosaic_0001>
module attributes {stable_mosaic.version = 11 : i64} {
  func.func @coolnet_kernel(%arg0: i32, %arg1: memref<256x96xbf16, #tpu.memory_space<vmem>>, %arg2: memref<480x168xbf16, #tpu.memory_space<vmem>>, %arg3: memref<1x84xf32, #tpu.memory_space<vmem>>, %arg4: memref<420x160xbf16, #tpu.memory_space<vmem>>, %arg5: memref<1x80xf32, #tpu.memory_space<vmem>>, %arg6: memref<8x256xbf16, #tpu.memory_space<vmem>>, %arg7: memref<400x128xbf16, #tpu.memory_space<vmem>>, %arg8: memref<1x128xf32, #tpu.memory_space<vmem>>, %arg9: memref<128x128xbf16, #tpu.memory_space<vmem>>, %arg10: memref<1x128xf32, #tpu.memory_space<vmem>>, %arg11: memref<128x128xbf16, #tpu.memory_space<vmem>>, %arg12: memref<1x128xf32, #tpu.memory_space<vmem>>, %arg13: memref<8x128xf32, #tpu.memory_space<vmem>>) attributes {dimension_semantics = [#tpu.dimension_semantics<parallel>], iteration_bounds = array<i64: 4>, scalar_prefetch = 0 : i64, scratch_operands = 0 : i64, tpu.core_type = #tpu.core_type<tc>, window_params = [{transform_indices = @transform_0, window_bounds = array<i64: 256, 96>}, {pipeline_mode = #tpu.pipeline_mode<synchronous>, transform_indices = @transform_1, window_bounds = array<i64: 480, 168>}, {pipeline_mode = #tpu.pipeline_mode<synchronous>, transform_indices = @transform_2, window_bounds = array<i64: 1, 84>}, {pipeline_mode = #tpu.pipeline_mode<synchronous>, transform_indices = @transform_3, window_bounds = array<i64: 420, 160>}, {pipeline_mode = #tpu.pipeline_mode<synchronous>, transform_indices = @transform_4, window_bounds = array<i64: 1, 80>}, {pipeline_mode = #tpu.pipeline_mode<synchronous>, transform_indices = @transform_5, window_bounds = array<i64: 8, 256>}, {pipeline_mode = #tpu.pipeline_mode<synchronous>, transform_indices = @transform_6, window_bounds = array<i64: 400, 128>}, {pipeline_mode = #tpu.pipeline_mode<synchronous>, transform_indices = @transform_7, window_bounds = array<i64: 1, 128>}, {pipeline_mode = #tpu.pipeline_mode<synchronous>, transform_indices = @transform_8, window_bounds = array<i64: 128, 128>}, {pipeline_mode = #tpu.pipeline_mode<synchronous>, transform_indices = @transform_9, window_bounds = array<i64: 1, 128>}, {pipeline_mode = #tpu.pipeline_mode<synchronous>, transform_indices = @transform_10, window_bounds = array<i64: 128, 128>}, {pipeline_mode = #tpu.pipeline_mode<synchronous>, transform_indices = @transform_11, window_bounds = array<i64: 1, 128>}, {transform_indices = @transform_12, window_bounds = array<i64: 8, 128>}]} {
    %c0 = arith.constant 0 : index
    %c0_0 = arith.constant 0 : index
    %0 = vector.load %arg1[%c0, %c0_0] : memref<256x96xbf16, #tpu.memory_space<vmem>>, vector<256x96xbf16>
    %1 = vector.extract_strided_slice %0 {offsets = [1, 0], sizes = [255, 96], strides = [1, 1]} : vector<256x96xbf16> to vector<255x96xbf16>
    %2 = vector.extract_strided_slice %0 {offsets = [0, 0], sizes = [1, 96], strides = [1, 1]} : vector<256x96xbf16> to vector<1x96xbf16>
    %3 = tpu.concatenate %1, %2 in 0 : vector<255x96xbf16>, vector<1x96xbf16> -> vector<256x96xbf16>
    %4 = vector.extract_strided_slice %0 {offsets = [2, 0], sizes = [254, 96], strides = [1, 1]} : vector<256x96xbf16> to vector<254x96xbf16>
    %5 = vector.extract_strided_slice %0 {offsets = [0, 0], sizes = [2, 96], strides = [1, 1]} : vector<256x96xbf16> to vector<2x96xbf16>
    %6 = tpu.concatenate %4, %5 in 0 : vector<254x96xbf16>, vector<2x96xbf16> -> vector<256x96xbf16>
    %7 = vector.extract_strided_slice %0 {offsets = [3, 0], sizes = [253, 96], strides = [1, 1]} : vector<256x96xbf16> to vector<253x96xbf16>
    %8 = vector.extract_strided_slice %0 {offsets = [0, 0], sizes = [3, 96], strides = [1, 1]} : vector<256x96xbf16> to vector<3x96xbf16>
    %9 = tpu.concatenate %7, %8 in 0 : vector<253x96xbf16>, vector<3x96xbf16> -> vector<256x96xbf16>
    %10 = vector.extract_strided_slice %0 {offsets = [4, 0], sizes = [252, 96], strides = [1, 1]} : vector<256x96xbf16> to vector<252x96xbf16>
    %11 = vector.extract_strided_slice %0 {offsets = [0, 0], sizes = [4, 96], strides = [1, 1]} : vector<256x96xbf16> to vector<4x96xbf16>
    %12 = tpu.concatenate %10, %11 in 0 : vector<252x96xbf16>, vector<4x96xbf16> -> vector<256x96xbf16>
    %13 = tpu.concatenate %0, %3, %6, %9, %12 in 1 : vector<256x96xbf16>, vector<256x96xbf16>, vector<256x96xbf16>, vector<256x96xbf16>, vector<256x96xbf16> -> vector<256x480xbf16>
    %c0_1 = arith.constant 0 : index
    %c0_2 = arith.constant 0 : index
    %14 = vector.load %arg2[%c0_1, %c0_2] : memref<480x168xbf16, #tpu.memory_space<vmem>>, vector<480x168xbf16>
    %cst = arith.constant dense<0.000000e+00> : vector<256x168xf32>
    %15 = tpu.matmul %13, %14, %cst {dimension_numbers = #tpu.dot_dimension_numbers<[1], [0], [0], [1], [0, 0, 1, 1], [], []>} : vector<256x480xbf16>, vector<480x168xbf16>, vector<256x168xf32> -> vector<256x168xf32>
    %16 = vector.extract_strided_slice %15 {offsets = [0, 0], sizes = [256, 84], strides = [1, 1]} : vector<256x168xf32> to vector<256x84xf32>
    %17 = vector.extract_strided_slice %15 {offsets = [0, 84], sizes = [256, 84], strides = [1, 1]} : vector<256x168xf32> to vector<256x84xf32>
    %18 = arith.maximumf %16, %17 : vector<256x84xf32>
    %19 = vector.extract_strided_slice %18 {offsets = [1, 0], sizes = [255, 84], strides = [1, 1]} : vector<256x84xf32> to vector<255x84xf32>
    %20 = vector.extract_strided_slice %18 {offsets = [0, 0], sizes = [1, 84], strides = [1, 1]} : vector<256x84xf32> to vector<1x84xf32>
    %21 = tpu.concatenate %19, %20 in 0 : vector<255x84xf32>, vector<1x84xf32> -> vector<256x84xf32>
    %22 = arith.maximumf %18, %21 : vector<256x84xf32>
    %c0_3 = arith.constant 0 : index
    %c0_4 = arith.constant 0 : index
    %23 = vector.load %arg3[%c0_3, %c0_4] : memref<1x84xf32, #tpu.memory_space<vmem>>, vector<1x84xf32>
    %24 = vector.broadcast %23 : vector<1x84xf32> to vector<256x84xf32>
    %25 = arith.addf %22, %24 : vector<256x84xf32>
    %cst_5 = arith.constant 0.000000e+00 : f32
    %26 = vector.broadcast %cst_5 : f32 to vector<256x84xf32>
    %27 = arith.maximumf %25, %26 : vector<256x84xf32>
    %28 = arith.truncf %27 : vector<256x84xf32> to vector<256x84xbf16>
    %29 = vector.extract_strided_slice %28 {offsets = [2, 0], sizes = [254, 84], strides = [1, 1]} : vector<256x84xbf16> to vector<254x84xbf16>
    %30 = vector.extract_strided_slice %28 {offsets = [0, 0], sizes = [2, 84], strides = [1, 1]} : vector<256x84xbf16> to vector<2x84xbf16>
    %31 = tpu.concatenate %29, %30 in 0 : vector<254x84xbf16>, vector<2x84xbf16> -> vector<256x84xbf16>
    %32 = vector.extract_strided_slice %28 {offsets = [4, 0], sizes = [252, 84], strides = [1, 1]} : vector<256x84xbf16> to vector<252x84xbf16>
    %33 = vector.extract_strided_slice %28 {offsets = [0, 0], sizes = [4, 84], strides = [1, 1]} : vector<256x84xbf16> to vector<4x84xbf16>
    %34 = tpu.concatenate %32, %33 in 0 : vector<252x84xbf16>, vector<4x84xbf16> -> vector<256x84xbf16>
    %35 = vector.extract_strided_slice %28 {offsets = [6, 0], sizes = [250, 84], strides = [1, 1]} : vector<256x84xbf16> to vector<250x84xbf16>
    %36 = vector.extract_strided_slice %28 {offsets = [0, 0], sizes = [6, 84], strides = [1, 1]} : vector<256x84xbf16> to vector<6x84xbf16>
    %37 = tpu.concatenate %35, %36 in 0 : vector<250x84xbf16>, vector<6x84xbf16> -> vector<256x84xbf16>
    %38 = vector.extract_strided_slice %28 {offsets = [8, 0], sizes = [248, 84], strides = [1, 1]} : vector<256x84xbf16> to vector<248x84xbf16>
    %39 = vector.extract_strided_slice %28 {offsets = [0, 0], sizes = [8, 84], strides = [1, 1]} : vector<256x84xbf16> to vector<8x84xbf16>
    %40 = tpu.concatenate %38, %39 in 0 : vector<248x84xbf16>, vector<8x84xbf16> -> vector<256x84xbf16>
    %41 = tpu.concatenate %28, %31, %34, %37, %40 in 1 : vector<256x84xbf16>, vector<256x84xbf16>, vector<256x84xbf16>, vector<256x84xbf16>, vector<256x84xbf16> -> vector<256x420xbf16>
    %c0_6 = arith.constant 0 : index
    %c0_7 = arith.constant 0 : index
    %42 = vector.load %arg4[%c0_6, %c0_7] : memref<420x160xbf16, #tpu.memory_space<vmem>>, vector<420x160xbf16>
    %cst_8 = arith.constant dense<0.000000e+00> : vector<256x160xf32>
    %43 = tpu.matmul %41, %42, %cst_8 {dimension_numbers = #tpu.dot_dimension_numbers<[1], [0], [0], [1], [0, 0, 1, 1], [], []>} : vector<256x420xbf16>, vector<420x160xbf16>, vector<256x160xf32> -> vector<256x160xf32>
    %44 = vector.extract_strided_slice %43 {offsets = [0, 0], sizes = [256, 80], strides = [1, 1]} : vector<256x160xf32> to vector<256x80xf32>
    %45 = vector.extract_strided_slice %43 {offsets = [0, 80], sizes = [256, 80], strides = [1, 1]} : vector<256x160xf32> to vector<256x80xf32>
    %46 = arith.maximumf %44, %45 : vector<256x80xf32>
    %47 = vector.extract_strided_slice %46 {offsets = [2, 0], sizes = [254, 80], strides = [1, 1]} : vector<256x80xf32> to vector<254x80xf32>
    %48 = vector.extract_strided_slice %46 {offsets = [0, 0], sizes = [2, 80], strides = [1, 1]} : vector<256x80xf32> to vector<2x80xf32>
    %49 = tpu.concatenate %47, %48 in 0 : vector<254x80xf32>, vector<2x80xf32> -> vector<256x80xf32>
    %50 = arith.maximumf %46, %49 : vector<256x80xf32>
    %c0_9 = arith.constant 0 : index
    %c0_10 = arith.constant 0 : index
    %51 = vector.load %arg5[%c0_9, %c0_10] : memref<1x80xf32, #tpu.memory_space<vmem>>, vector<1x80xf32>
    %52 = vector.broadcast %51 : vector<1x80xf32> to vector<256x80xf32>
    %53 = arith.addf %50, %52 : vector<256x80xf32>
    %cst_11 = arith.constant 0.000000e+00 : f32
    %54 = vector.broadcast %cst_11 : f32 to vector<256x80xf32>
    %55 = arith.maximumf %53, %54 : vector<256x80xf32>
    %56 = arith.truncf %55 : vector<256x80xf32> to vector<256x80xbf16>
    %57 = vector.extract_strided_slice %56 {offsets = [4, 0], sizes = [252, 80], strides = [1, 1]} : vector<256x80xbf16> to vector<252x80xbf16>
    %58 = vector.extract_strided_slice %56 {offsets = [0, 0], sizes = [4, 80], strides = [1, 1]} : vector<256x80xbf16> to vector<4x80xbf16>
    %59 = tpu.concatenate %57, %58 in 0 : vector<252x80xbf16>, vector<4x80xbf16> -> vector<256x80xbf16>
    %60 = vector.extract_strided_slice %56 {offsets = [8, 0], sizes = [248, 80], strides = [1, 1]} : vector<256x80xbf16> to vector<248x80xbf16>
    %61 = vector.extract_strided_slice %56 {offsets = [0, 0], sizes = [8, 80], strides = [1, 1]} : vector<256x80xbf16> to vector<8x80xbf16>
    %62 = tpu.concatenate %60, %61 in 0 : vector<248x80xbf16>, vector<8x80xbf16> -> vector<256x80xbf16>
    %63 = vector.extract_strided_slice %56 {offsets = [12, 0], sizes = [244, 80], strides = [1, 1]} : vector<256x80xbf16> to vector<244x80xbf16>
    %64 = vector.extract_strided_slice %56 {offsets = [0, 0], sizes = [12, 80], strides = [1, 1]} : vector<256x80xbf16> to vector<12x80xbf16>
    %65 = tpu.concatenate %63, %64 in 0 : vector<244x80xbf16>, vector<12x80xbf16> -> vector<256x80xbf16>
    %66 = vector.extract_strided_slice %56 {offsets = [16, 0], sizes = [240, 80], strides = [1, 1]} : vector<256x80xbf16> to vector<240x80xbf16>
    %67 = vector.extract_strided_slice %56 {offsets = [0, 0], sizes = [16, 80], strides = [1, 1]} : vector<256x80xbf16> to vector<16x80xbf16>
    %68 = tpu.concatenate %66, %67 in 0 : vector<240x80xbf16>, vector<16x80xbf16> -> vector<256x80xbf16>
    %69 = tpu.concatenate %56, %59, %62, %65, %68 in 1 : vector<256x80xbf16>, vector<256x80xbf16>, vector<256x80xbf16>, vector<256x80xbf16>, vector<256x80xbf16> -> vector<256x400xbf16>
    %c0_12 = arith.constant 0 : index
    %c0_13 = arith.constant 0 : index
    %70 = vector.load %arg6[%c0_12, %c0_13] : memref<8x256xbf16, #tpu.memory_space<vmem>>, vector<8x256xbf16>
    %cst_14 = arith.constant dense<0.000000e+00> : vector<8x400xf32>
    %71 = tpu.matmul %70, %69, %cst_14 {dimension_numbers = #tpu.dot_dimension_numbers<[1], [0], [0], [1], [0, 0, 1, 1], [], []>} : vector<8x256xbf16>, vector<256x400xbf16>, vector<8x400xf32> -> vector<8x400xf32>
    %72 = arith.truncf %71 : vector<8x400xf32> to vector<8x400xbf16>
    %c0_15 = arith.constant 0 : index
    %c0_16 = arith.constant 0 : index
    %73 = vector.load %arg7[%c0_15, %c0_16] : memref<400x128xbf16, #tpu.memory_space<vmem>>, vector<400x128xbf16>
    %cst_17 = arith.constant dense<0.000000e+00> : vector<8x128xf32>
    %74 = tpu.matmul %72, %73, %cst_17 {dimension_numbers = #tpu.dot_dimension_numbers<[1], [0], [0], [1], [0, 0, 1, 1], [], []>} : vector<8x400xbf16>, vector<400x128xbf16>, vector<8x128xf32> -> vector<8x128xf32>
    %c0_18 = arith.constant 0 : index
    %c0_19 = arith.constant 0 : index
    %75 = vector.load %arg8[%c0_18, %c0_19] : memref<1x128xf32, #tpu.memory_space<vmem>>, vector<1x128xf32>
    %76 = vector.broadcast %75 : vector<1x128xf32> to vector<8x128xf32>
    %77 = arith.addf %74, %76 : vector<8x128xf32>
    %cst_20 = arith.constant 0.000000e+00 : f32
    %78 = vector.broadcast %cst_20 : f32 to vector<8x128xf32>
    %79 = arith.maximumf %77, %78 : vector<8x128xf32>
    %80 = arith.truncf %79 : vector<8x128xf32> to vector<8x128xbf16>
    %c0_21 = arith.constant 0 : index
    %c0_22 = arith.constant 0 : index
    %81 = vector.load %arg9[%c0_21, %c0_22] : memref<128x128xbf16, #tpu.memory_space<vmem>>, vector<128x128xbf16>
    %cst_23 = arith.constant dense<0.000000e+00> : vector<8x128xf32>
    %82 = tpu.matmul %80, %81, %cst_23 {dimension_numbers = #tpu.dot_dimension_numbers<[1], [0], [0], [1], [0, 0, 1, 1], [], []>} : vector<8x128xbf16>, vector<128x128xbf16>, vector<8x128xf32> -> vector<8x128xf32>
    %c0_24 = arith.constant 0 : index
    %c0_25 = arith.constant 0 : index
    %83 = vector.load %arg10[%c0_24, %c0_25] : memref<1x128xf32, #tpu.memory_space<vmem>>, vector<1x128xf32>
    %84 = vector.broadcast %83 : vector<1x128xf32> to vector<8x128xf32>
    %85 = arith.addf %82, %84 : vector<8x128xf32>
    %cst_26 = arith.constant 0.000000e+00 : f32
    %86 = vector.broadcast %cst_26 : f32 to vector<8x128xf32>
    %87 = arith.maximumf %85, %86 : vector<8x128xf32>
    %88 = arith.truncf %87 : vector<8x128xf32> to vector<8x128xbf16>
    %c0_27 = arith.constant 0 : index
    %c0_28 = arith.constant 0 : index
    %89 = vector.load %arg11[%c0_27, %c0_28] : memref<128x128xbf16, #tpu.memory_space<vmem>>, vector<128x128xbf16>
    %cst_29 = arith.constant dense<0.000000e+00> : vector<8x128xf32>
    %90 = tpu.matmul %88, %89, %cst_29 {dimension_numbers = #tpu.dot_dimension_numbers<[1], [0], [0], [1], [0, 0, 1, 1], [], []>} : vector<8x128xbf16>, vector<128x128xbf16>, vector<8x128xf32> -> vector<8x128xf32>
    %c0_30 = arith.constant 0 : index
    %c0_31 = arith.constant 0 : index
    %91 = vector.load %arg12[%c0_30, %c0_31] : memref<1x128xf32, #tpu.memory_space<vmem>>, vector<1x128xf32>
    %92 = vector.broadcast %91 : vector<1x128xf32> to vector<8x128xf32>
    %93 = arith.addf %90, %92 : vector<8x128xf32>
    %cst_32 = arith.constant 0.000000e+00 : f32
    %94 = vector.broadcast %cst_32 : f32 to vector<8x128xf32>
    %95 = arith.maximumf %93, %94 : vector<8x128xf32>
    %c0_33 = arith.constant 0 : index
    %c0_34 = arith.constant 0 : index
    %96 = vector.load %arg13[%c0_33, %c0_34] : memref<8x128xf32, #tpu.memory_space<vmem>>, vector<8x128xf32>
    tpu.vector_store %arg13[%c0_33, %c0_34], %95 {strides = array<i32>} : memref<8x128xf32, #tpu.memory_space<vmem>>, vector<8x128xf32>,
    return
  }
  func.func @transform_0(%arg0: i32) -> (i32, i32) {
    %c0_i32 = arith.constant 0 : i32
    %c0_i32_0 = arith.constant 0 : i32
    return %arg0, %c0_i32 : i32, i32
  }
  func.func @transform_1(%arg0: i32) -> (i32, i32) {
    %c0_i32 = arith.constant 0 : i32
    %c0_i32_0 = arith.constant 0 : i32
    %c0_i32_1 = arith.constant 0 : i32
    return %c0_i32, %c0_i32_0 : i32, i32
  }
  func.func @transform_2(%arg0: i32) -> (i32, i32) {
    %c0_i32 = arith.constant 0 : i32
    %c0_i32_0 = arith.constant 0 : i32
    %c0_i32_1 = arith.constant 0 : i32
    return %c0_i32, %c0_i32_0 : i32, i32
  }
  func.func @transform_3(%arg0: i32) -> (i32, i32) {
    %c0_i32 = arith.constant 0 : i32
    %c0_i32_0 = arith.constant 0 : i32
    %c0_i32_1 = arith.constant 0 : i32
    return %c0_i32, %c0_i32_0 : i32, i32
  }
  func.func @transform_4(%arg0: i32) -> (i32, i32) {
    %c0_i32 = arith.constant 0 : i32
    %c0_i32_0 = arith.constant 0 : i32
    %c0_i32_1 = arith.constant 0 : i32
    return %c0_i32, %c0_i32_0 : i32, i32
  }
  func.func @transform_5(%arg0: i32) -> (i32, i32) {
    %c0_i32 = arith.constant 0 : i32
    %c0_i32_0 = arith.constant 0 : i32
    %c0_i32_1 = arith.constant 0 : i32
    return %c0_i32, %c0_i32_0 : i32, i32
  }
  func.func @transform_6(%arg0: i32) -> (i32, i32) {
    %c0_i32 = arith.constant 0 : i32
    %c0_i32_0 = arith.constant 0 : i32
    %c0_i32_1 = arith.constant 0 : i32
    return %c0_i32, %c0_i32_0 : i32, i32
  }
  func.func @transform_7(%arg0: i32) -> (i32, i32) {
    %c0_i32 = arith.constant 0 : i32
    %c0_i32_0 = arith.constant 0 : i32
    %c0_i32_1 = arith.constant 0 : i32
    return %c0_i32, %c0_i32_0 : i32, i32
  }
  func.func @transform_8(%arg0: i32) -> (i32, i32) {
    %c0_i32 = arith.constant 0 : i32
    %c0_i32_0 = arith.constant 0 : i32
    %c0_i32_1 = arith.constant 0 : i32
    return %c0_i32, %c0_i32_0 : i32, i32
  }
  func.func @transform_9(%arg0: i32) -> (i32, i32) {
    %c0_i32 = arith.constant 0 : i32
    %c0_i32_0 = arith.constant 0 : i32
    %c0_i32_1 = arith.constant 0 : i32
    return %c0_i32, %c0_i32_0 : i32, i32
  }
  func.func @transform_10(%arg0: i32) -> (i32, i32) {
    %c0_i32 = arith.constant 0 : i32
    %c0_i32_0 = arith.constant 0 : i32
    %c0_i32_1 = arith.constant 0 : i32
    return %c0_i32, %c0_i32_0 : i32, i32
  }
  func.func @transform_11(%arg0: i32) -> (i32, i32) {
    %c0_i32 = arith.constant 0 : i32
    %c0_i32_0 = arith.constant 0 : i32
    %c0_i32_1 = arith.constant 0 : i32
    return %c0_i32, %c0_i32_0 : i32, i32
  }
  func.func @transform_12(%arg0: i32) -> (i32, i32) {
    %c0_i32 = arith.constant 0 : i32
    %c0_i32_0 = arith.constant 0 : i32
    return %arg0, %c0_i32 : i32, i32
  }
}

</mosaic_0001>

<llo_original>
// kernel: coolnet_forward.1
$region0: #{coolnet_forward.1}
  #allocation0 [shape = 'u32[]', space=smem, size = 0x4, offset = 0x4, fixed_abs, tag = 'smem constant byte address 0x4 - core index']
  #allocation1 [shape = 'u32[144,128]{1,0:T(1,128)}', space=vmem, size = 0x12000, scoped, tag = 'internal scratch']
  %s0 = inlined_call_operand.vmem [shape: bf16[1024,96], index: 0, kind: input, shape index: {}]
  %s1 = inlined_call_operand.vmem [shape: bf16[480,168], index: 1, kind: input, shape index: {}]
  %s2 = inlined_call_operand.vmem [shape: f32[1,84], index: 2, kind: input, shape index: {}]
  %s3 = inlined_call_operand.vmem [shape: bf16[420,160], index: 3, kind: input, shape index: {}]
  %s4 = inlined_call_operand.vmem [shape: f32[1,80], index: 4, kind: input, shape index: {}]
  %s5 = inlined_call_operand.vmem [shape: bf16[8,256], index: 5, kind: input, shape index: {}]
  %s6 = inlined_call_operand.vmem [shape: bf16[400,128], index: 6, kind: input, shape index: {}]
  %s7 = inlined_call_operand.vmem [shape: f32[1,128], index: 7, kind: input, shape index: {}]
  %s8 = inlined_call_operand.vmem [shape: bf16[128,128], index: 8, kind: input, shape index: {}]
  %s9 = inlined_call_operand.vmem [shape: f32[1,128], index: 9, kind: input, shape index: {}]
  %s10 = inlined_call_operand.vmem [shape: bf16[128,128], index: 10, kind: input, shape index: {}]
  %s11 = inlined_call_operand.vmem [shape: f32[1,128], index: 11, kind: input, shape index: {}]
  %s12 = inlined_call_operand.vmem [shape: f32[32,128], index: 12, kind: output, shape index: {}]
  %s13 = sld [smem:[#allocation0]]
  $region81: #{coolnet_forward.1} parent=0
    _
  %s15 = ssub.s32 1, %s13
  %s16 = scalar_select 0, %s15, %s13
  loop: start=0, step=1, limit=6
  $region2: #{coolnet_forward.1} parent=0 // loop_pre_header
    _
  $region3: #{coolnet_forward.1} parent=0 // loop_header
    %s18 = sphi 0, %s22
    %p19 = scmp.ge.s32.totalorder %s18, 6
    %s28 = sphi 0, %s30
    %s31 = sphi 0, %s28
    %s32 = sphi 0, %s31
    %s48 = sphi 0, %s32
    %s52 = sphi 0, %s52
    %s54 = sphi 0, %s52
    %s55 = sphi 0, %s54
    %s69 = sphi 0, %s55
    %s73 = sphi 0, %s73
    %s75 = sphi 0, %s73
    %s76 = sphi 0, %s75
    %s90 = sphi 0, %s76
    %s94 = sphi 0, %s94
    %s96 = sphi 0, %s94
    %s97 = sphi 0, %s96
    %s111 = sphi 0, %s97
    %s115 = sphi 0, %s115
    %s117 = sphi 0, %s115
    %s118 = sphi 0, %s117
    %s132 = sphi 0, %s118
    %s136 = sphi 0, %s136
    %s138 = sphi 0, %s136
    %s139 = sphi 0, %s138
    %s153 = sphi 0, %s139
    %s157 = sphi 0, %s157
    %s159 = sphi 0, %s157
    %s160 = sphi 0, %s159
    %s174 = sphi 0, %s160
    %s178 = sphi 0, %s178
    %s180 = sphi 0, %s178
    %s181 = sphi 0, %s180
    %s195 = sphi 0, %s181
    %s199 = sphi 0, %s199
    %s201 = sphi 0, %s199
    %s202 = sphi 0, %s201
    %s216 = sphi 0, %s202
    %s220 = sphi 0, %s220
    %s222 = sphi 0, %s220
    %s223 = sphi 0, %s222
    %s237 = sphi 0, %s223
    %s241 = sphi 0, %s241
    %s243 = sphi 0, %s241
    %s244 = sphi 0, %s243
    %s258 = sphi 0, %s244
    %s262 = sphi 0, %s262
    %s264 = sphi 0, %s262
    %s265 = sphi 0, %s264
    %s279 = sphi 0, %s265
    %s285 = sphi 0, %s287
    %s288 = sphi 0, %s285
    %s289 = sphi 0, %s288
    %s305 = sphi 0, %s289
  $region4: #{coolnet_forward.1} parent=0 // loop_header_branch
    %21 = sbr.rel (%p19) target = $region8
  $region5: #{coolnet_forward.1} parent=0 // loop_body
    %s23 = ssub.s32 %s18, 1
    %s24 = ssub.s32 %s18, 2
    %s25 = sadd.s32 %s18, 1
    %s26 = ssub.s32 %s18, %s25
    %p27 = scmp.eq.s32.totalorder %s26, 0
    %s29 = sadd.s32 %s28, 1
    %s30 = scalar_select %p27, %s28, %s29
    %p33 = pneg %p27
    %p34 = scmp.eq.s32.totalorder %s18, 3
    %p35 = por %p33, %p34
    %p36 = scmp.ne.s32.totalorder %s28, %s31
    %p37 = scmp.eq.s32.totalorder %s18, 0
    %p38 = por %p36, %p37
    %p39 = scmp.ne.s32.totalorder %s28, %s31
    %p40 = scmp.eq.s32.totalorder %s23, 3
    %p41 = por %p39, %p40
    %p42 = scmp.ne.s32.totalorder %s31, %s32
    %p43 = scmp.eq.s32.totalorder %s23, 0
    %p44 = por %p42, %p43
    %p45 = scmp.ne.s32.totalorder %s31, %s32
    %p46 = scmp.eq.s32.totalorder %s24, 3
    %p47 = por %p45, %p46
    %p49 = scmp.ne.s32.totalorder %s32, %s48
    %p50 = scmp.eq.s32.totalorder %s24, 0
    %p51 = por %p49, %p50
    %s53 = sadd.s32 %s52, 1
    %p56 = scmp.eq.s32.totalorder %s18, 3
    %p57 = scmp.ne.s32.totalorder %s52, %s54
    %p58 = scmp.eq.s32.totalorder %s18, 0
    %p59 = por %p57, %p58
    %p60 = scmp.ne.s32.totalorder %s52, %s54
    %p61 = scmp.eq.s32.totalorder %s23, 3
    %p62 = por %p60, %p61
    %p63 = scmp.ne.s32.totalorder %s54, %s55
    %p64 = scmp.eq.s32.totalorder %s23, 0
    %p65 = por %p63, %p64
    %p66 = scmp.ne.s32.totalorder %s54, %s55
    %p67 = scmp.eq.s32.totalorder %s24, 3
    %p68 = por %p66, %p67
    %p70 = scmp.ne.s32.totalorder %s55, %s69
    %p71 = scmp.eq.s32.totalorder %s24, 0
    %p72 = por %p70, %p71
    %s74 = sadd.s32 %s73, 1
    %p77 = scmp.eq.s32.totalorder %s18, 3
    %p78 = scmp.ne.s32.totalorder %s73, %s75
    %p79 = scmp.eq.s32.totalorder %s18, 0
    %p80 = por %p78, %p79
    %p81 = scmp.ne.s32.totalorder %s73, %s75
    %p82 = scmp.eq.s32.totalorder %s23, 3
    %p83 = por %p81, %p82
    %p84 = scmp.ne.s32.totalorder %s75, %s76
    %p85 = scmp.eq.s32.totalorder %s23, 0
    %p86 = por %p84, %p85
    %p87 = scmp.ne.s32.totalorder %s75, %s76
    %p88 = scmp.eq.s32.totalorder %s24, 3
    %p89 = por %p87, %p88
    %p91 = scmp.ne.s32.totalorder %s76, %s90
    %p92 = scmp.eq.s32.totalorder %s24, 0
    %p93 = por %p91, %p92
    %s95 = sadd.s32 %s94, 1
    %p98 = scmp.eq.s32.totalorder %s18, 3
    %p99 = scmp.ne.s32.totalorder %s94, %s96
    %p100 = scmp.eq.s32.totalorder %s18, 0
    %p101 = por %p99, %p100
    %p102 = scmp.ne.s32.totalorder %s94, %s96
    %p103 = scmp.eq.s32.totalorder %s23, 3
    %p104 = por %p102, %p103
    %p105 = scmp.ne.s32.totalorder %s96, %s97
    %p106 = scmp.eq.s32.totalorder %s23, 0
    %p107 = por %p105, %p106
    %p108 = scmp.ne.s32.totalorder %s96, %s97
    %p109 = scmp.eq.s32.totalorder %s24, 3
    %p110 = por %p108, %p109
    %p112 = scmp.ne.s32.totalorder %s97, %s111
    %p113 = scmp.eq.s32.totalorder %s24, 0
    %p114 = por %p112, %p113
    %s116 = sadd.s32 %s115, 1
    %p119 = scmp.eq.s32.totalorder %s18, 3
    %p120 = scmp.ne.s32.totalorder %s115, %s117
    %p121 = scmp.eq.s32.totalorder %s18, 0
    %p122 = por %p120, %p121
    %p123 = scmp.ne.s32.totalorder %s115, %s117
    %p124 = scmp.eq.s32.totalorder %s23, 3
    %p125 = por %p123, %p124
    %p126 = scmp.ne.s32.totalorder %s117, %s118
    %p127 = scmp.eq.s32.totalorder %s23, 0
    %p128 = por %p126, %p127
    %p129 = scmp.ne.s32.totalorder %s117, %s118
    %p130 = scmp.eq.s32.totalorder %s24, 3
    %p131 = por %p129, %p130
    %p133 = scmp.ne.s32.totalorder %s118, %s132
    %p134 = scmp.eq.s32.totalorder %s24, 0
    %p135 = por %p133, %p134
    %s137 = sadd.s32 %s136, 1
    %p140 = scmp.eq.s32.totalorder %s18, 3
    %p141 = scmp.ne.s32.totalorder %s136, %s138
    %p142 = scmp.eq.s32.totalorder %s18, 0
    %p143 = por %p141, %p142
    %p144 = scmp.ne.s32.totalorder %s136, %s138
    %p145 = scmp.eq.s32.totalorder %s23, 3
    %p146 = por %p144, %p145
    %p147 = scmp.ne.s32.totalorder %s138, %s139
    %p148 = scmp.eq.s32.totalorder %s23, 0
    %p149 = por %p147, %p148
    %p150 = scmp.ne.s32.totalorder %s138, %s139
    %p151 = scmp.eq.s32.totalorder %s24, 3
    %p152 = por %p150, %p151
    %p154 = scmp.ne.s32.totalorder %s139, %s153
    %p155 = scmp.eq.s32.totalorder %s24, 0
    %p156 = por %p154, %p155
    %s158 = sadd.s32 %s157, 1
    %p161 = scmp.eq.s32.totalorder %s18, 3
    %p162 = scmp.ne.s32.totalorder %s157, %s159
    %p163 = scmp.eq.s32.totalorder %s18, 0
    %p164 = por %p162, %p163
    %p165 = scmp.ne.s32.totalorder %s157, %s159
    %p166 = scmp.eq.s32.totalorder %s23, 3
    %p167 = por %p165, %p166
    %p168 = scmp.ne.s32.totalorder %s159, %s160
    %p169 = scmp.eq.s32.totalorder %s23, 0
    %p170 = por %p168, %p169
    %p171 = scmp.ne.s32.totalorder %s159, %s160
    %p172 = scmp.eq.s32.totalorder %s24, 3
    %p173 = por %p171, %p172
    %p175 = scmp.ne.s32.totalorder %s160, %s174
    %p176 = scmp.eq.s32.totalorder %s24, 0
    %p177 = por %p175, %p176
    %s179 = sadd.s32 %s178, 1
    %p182 = scmp.eq.s32.totalorder %s18, 3
    %p183 = scmp.ne.s32.totalorder %s178, %s180
    %p184 = scmp.eq.s32.totalorder %s18, 0
    %p185 = por %p183, %p184
    %p186 = scmp.ne.s32.totalorder %s178, %s180
    %p187 = scmp.eq.s32.totalorder %s23, 3
    %p188 = por %p186, %p187
    %p189 = scmp.ne.s32.totalorder %s180, %s181
    %p190 = scmp.eq.s32.totalorder %s23, 0
    %p191 = por %p189, %p190
    %p192 = scmp.ne.s32.totalorder %s180, %s181
    %p193 = scmp.eq.s32.totalorder %s24, 3
    %p194 = por %p192, %p193
    %p196 = scmp.ne.s32.totalorder %s181, %s195
    %p197 = scmp.eq.s32.totalorder %s24, 0
    %p198 = por %p196, %p197
    %s200 = sadd.s32 %s199, 1
    %p203 = scmp.eq.s32.totalorder %s18, 3
    %p204 = scmp.ne.s32.totalorder %s199, %s201
    %p205 = scmp.eq.s32.totalorder %s18, 0
    %p206 = por %p204, %p205
    %p207 = scmp.ne.s32.totalorder %s199, %s201
    %p208 = scmp.eq.s32.totalorder %s23, 3
    %p209 = por %p207, %p208
    %p210 = scmp.ne.s32.totalorder %s201, %s202
    %p211 = scmp.eq.s32.totalorder %s23, 0
    %p212 = por %p210, %p211
    %p213 = scmp.ne.s32.totalorder %s201, %s202
    %p214 = scmp.eq.s32.totalorder %s24, 3
    %p215 = por %p213, %p214
    %p217 = scmp.ne.s32.totalorder %s202, %s216
    %p218 = scmp.eq.s32.totalorder %s24, 0
    %p219 = por %p217, %p218
    %s221 = sadd.s32 %s220, 1
    %p224 = scmp.eq.s32.totalorder %s18, 3
    %p225 = scmp.ne.s32.totalorder %s220, %s222
    %p226 = scmp.eq.s32.totalorder %s18, 0
    %p227 = por %p225, %p226
    %p228 = scmp.ne.s32.totalorder %s220, %s222
    %p229 = scmp.eq.s32.totalorder %s23, 3
    %p230 = por %p228, %p229
    %p231 = scmp.ne.s32.totalorder %s222, %s223
    %p232 = scmp.eq.s32.totalorder %s23, 0
    %p233 = por %p231, %p232
    %p234 = scmp.ne.s32.totalorder %s222, %s223
    %p235 = scmp.eq.s32.totalorder %s24, 3
    %p236 = por %p234, %p235
    %p238 = scmp.ne.s32.totalorder %s223, %s237
    %p239 = scmp.eq.s32.totalorder %s24, 0
    %p240 = por %p238, %p239
    %s242 = sadd.s32 %s241, 1
    %p245 = scmp.eq.s32.totalorder %s18, 3
    %p246 = scmp.ne.s32.totalorder %s241, %s243
    %p247 = scmp.eq.s32.totalorder %s18, 0
    %p248 = por %p246, %p247
    %p249 = scmp.ne.s32.totalorder %s241, %s243
    %p250 = scmp.eq.s32.totalorder %s23, 3
    %p251 = por %p249, %p250
    %p252 = scmp.ne.s32.totalorder %s243, %s244
    %p253 = scmp.eq.s32.totalorder %s23, 0
    %p254 = por %p252, %p253
    %p255 = scmp.ne.s32.totalorder %s243, %s244
    %p256 = scmp.eq.s32.totalorder %s24, 3
    %p257 = por %p255, %p256
    %p259 = scmp.ne.s32.totalorder %s244, %s258
    %p260 = scmp.eq.s32.totalorder %s24, 0
    %p261 = por %p259, %p260
    %s263 = sadd.s32 %s262, 1
    %p266 = scmp.eq.s32.totalorder %s18, 3
    %p267 = scmp.ne.s32.totalorder %s262, %s264
    %p268 = scmp.eq.s32.totalorder %s18, 0
    %p269 = por %p267, %p268
    %p270 = scmp.ne.s32.totalorder %s262, %s264
    %p271 = scmp.eq.s32.totalorder %s23, 3
    %p272 = por %p270, %p271
    %p273 = scmp.ne.s32.totalorder %s264, %s265
    %p274 = scmp.eq.s32.totalorder %s23, 0
    %p275 = por %p273, %p274
    %p276 = scmp.ne.s32.totalorder %s264, %s265
    %p277 = scmp.eq.s32.totalorder %s24, 3
    %p278 = por %p276, %p277
    %p280 = scmp.ne.s32.totalorder %s265, %s279
    %p281 = scmp.eq.s32.totalorder %s24, 0
    %p282 = por %p280, %p281
    %s283 = ssub.s32 %s18, %s25
    %p284 = scmp.eq.s32.totalorder %s283, 0
    %s286 = sadd.s32 %s285, 1
    %s287 = scalar_select %p284, %s285, %s286
    %p290 = pneg %p284
    %p291 = scmp.eq.s32.totalorder %s18, 3
    %p292 = por %p290, %p291
    %p293 = scmp.ne.s32.totalorder %s285, %s288
    %p294 = scmp.eq.s32.totalorder %s18, 0
    %p295 = por %p293, %p294
    %p296 = scmp.ne.s32.totalorder %s285, %s288
    %p297 = scmp.eq.s32.totalorder %s23, 3
    %p298 = por %p296, %p297
    %p299 = scmp.ne.s32.totalorder %s288, %s289
    %p300 = scmp.eq.s32.totalorder %s23, 0
    %p301 = por %p299, %p300
    %p302 = scmp.ne.s32.totalorder %s288, %s289
    %p303 = scmp.eq.s32.totalorder %s24, 3
    %p304 = por %p302, %p303
    %p306 = scmp.ne.s32.totalorder %s289, %s305
    %p307 = scmp.eq.s32.totalorder %s24, 0
    %p308 = por %p306, %p307
    %p309 = scmp.le.s32.totalorder 1, %s18
    %p310 = scmp.lt.s32.totalorder %s18, 5
    %p311 = pnand %p309, %p310
    %p312 = pneg %p311
    // Predicated region
    $region9: #{coolnet_forward.1} parent=5 // pred_check
      _
    $region10: #{coolnet_forward.1} parent=5 // pred_check_branch
      %314 = sbr.rel (%p311) target = $region12
    $region11: #{coolnet_forward.1} parent=5 // pred_region
      %s315 = ssub.s32 %s18, 1
      // Predicated region
      $region13: #{coolnet_forward.1} parent=11 // pred_check
        %p316 = pneg %p65
      $region14: #{coolnet_forward.1} parent=11 // pred_check_branch
        %318 = sbr.rel (%p316) target = $region16
      $region15: #{coolnet_forward.1} parent=11 // pred_region
        _
      $region16: #{coolnet_forward.1} parent=11 // pred_fallthru
        _
      // Predicated region
      $region17: #{coolnet_forward.1} parent=11 // pred_check
        %p319 = pneg %p86
      $region18: #{coolnet_forward.1} parent=11 // pred_check_branch
        %321 = sbr.rel (%p319) target = $region20
      $region19: #{coolnet_forward.1} parent=11 // pred_region
        _
      $region20: #{coolnet_forward.1} parent=11 // pred_fallthru
        _
      // Predicated region
      $region21: #{coolnet_forward.1} parent=11 // pred_check
        %p322 = pneg %p107
      $region22: #{coolnet_forward.1} parent=11 // pred_check_branch
        %324 = sbr.rel (%p322) target = $region24
      $region23: #{coolnet_forward.1} parent=11 // pred_region
        _
      $region24: #{coolnet_forward.1} parent=11 // pred_fallthru
        _
      // Predicated region
      $region25: #{coolnet_forward.1} parent=11 // pred_check
        %p325 = pneg %p128
      $region26: #{coolnet_forward.1} parent=11 // pred_check_branch
        %327 = sbr.rel (%p325) target = $region28
      $region27: #{coolnet_forward.1} parent=11 // pred_region
        _
      $region28: #{coolnet_forward.1} parent=11 // pred_fallthru
        _
      // Predicated region
      $region29: #{coolnet_forward.1} parent=11 // pred_check
        %p328 = pneg %p149
      $region30: #{coolnet_forward.1} parent=11 // pred_check_branch
        %330 = sbr.rel (%p328) target = $region32
      $region31: #{coolnet_forward.1} parent=11 // pred_region
        _
      $region32: #{coolnet_forward.1} parent=11 // pred_fallthru
        _
      // Predicated region
      $region33: #{coolnet_forward.1} parent=11 // pred_check
        %p331 = pneg %p170
      $region34: #{coolnet_forward.1} parent=11 // pred_check_branch
        %333 = sbr.rel (%p331) target = $region36
      $region35: #{coolnet_forward.1} parent=11 // pred_region
        _
      $region36: #{coolnet_forward.1} parent=11 // pred_fallthru
        _
      // Predicated region
      $region37: #{coolnet_forward.1} parent=11 // pred_check
        %p334 = pneg %p191
      $region38: #{coolnet_forward.1} parent=11 // pred_check_branch
        %336 = sbr.rel (%p334) target = $region40
      $region39: #{coolnet_forward.1} parent=11 // pred_region
        _
      $region40: #{coolnet_forward.1} parent=11 // pred_fallthru
        _
      // Predicated region
      $region41: #{coolnet_forward.1} parent=11 // pred_check
        %p337 = pneg %p212
      $region42: #{coolnet_forward.1} parent=11 // pred_check_branch
        %339 = sbr.rel (%p337) target = $region44
      $region43: #{coolnet_forward.1} parent=11 // pred_region
        _
      $region44: #{coolnet_forward.1} parent=11 // pred_fallthru
        _
      // Predicated region
      $region45: #{coolnet_forward.1} parent=11 // pred_check
        %p340 = pneg %p233
      $region46: #{coolnet_forward.1} parent=11 // pred_check_branch
        %342 = sbr.rel (%p340) target = $region48
      $region47: #{coolnet_forward.1} parent=11 // pred_region
        _
      $region48: #{coolnet_forward.1} parent=11 // pred_fallthru
        _
      // Predicated region
      $region49: #{coolnet_forward.1} parent=11 // pred_check
        %p343 = pneg %p254
      $region50: #{coolnet_forward.1} parent=11 // pred_check_branch
        %345 = sbr.rel (%p343) target = $region52
      $region51: #{coolnet_forward.1} parent=11 // pred_region
        _
      $region52: #{coolnet_forward.1} parent=11 // pred_fallthru
        _
      // Predicated region
      $region53: #{coolnet_forward.1} parent=11 // pred_check
        %p346 = pneg %p275
      $region54: #{coolnet_forward.1} parent=11 // pred_check_branch
        %348 = sbr.rel (%p346) target = $region56
      $region55: #{coolnet_forward.1} parent=11 // pred_region
        _
      $region56: #{coolnet_forward.1} parent=11 // pred_fallthru
        _
    $region12: #{coolnet_forward.1} parent=5 // pred_fallthru
      _
    %p349 = scmp.lt.s32.totalorder %s18, 4
    // Predicated region
    $region57: #{coolnet_forward.1} parent=5 // pred_check
      %p350 = pneg %p349
    $region58: #{coolnet_forward.1} parent=5 // pred_check_branch
      %352 = sbr.rel (%p350) target = $region60
    $region59: #{coolnet_forward.1} parent=5 // pred_region
      // Predicated region
      $region61: #{coolnet_forward.1} parent=59 // pred_check
        %p353 = pneg %p38
      $region62: #{coolnet_forward.1} parent=59 // pred_check_branch
        %355 = sbr.rel (%p353) target = $region64
      $region63: #{coolnet_forward.1} parent=59 // pred_region
        %s356 = smul.u32 32, %s18
        %p357 = scmp.lt.s32.totalorder %s356, 127
        %s358 = scalar_select %p357, %s356, 127
        %s359 = smul.addr %s358, 4
        %s360 = scalar_lea.vmem %s0, %s359
        %s361 = smul.u32 32, %s18
      $region64: #{coolnet_forward.1} parent=59 // pred_fallthru
        _
    $region60: #{coolnet_forward.1} parent=5 // pred_fallthru
      _
    %p362 = scmp.le.s32.totalorder 1, %s18
    %p363 = scmp.lt.s32.totalorder %s18, 5
    %p364 = pnand %p362, %p363
    %p365 = pneg %p364
    // Predicated region
    $region65: #{coolnet_forward.1} parent=5 // pred_check
      _
    $region66: #{coolnet_forward.1} parent=5 // pred_check_branch
      %367 = sbr.rel (%p364) target = $region68
    $region67: #{coolnet_forward.1} parent=5 // pred_region
      %s368 = ssub.s32 %s18, 1
      %s369 = smul.u32 32, %s23
      %p370 = scmp.lt.s32.totalorder %s369, 127
      %s371 = scalar_select %p370, %s369, 127
      %s372 = smul.addr %s371, 4
      %s373 = scalar_lea.vmem %s0, %s372
      %p374 = pneg %p44
      %p375 = pneg %p41
      %p376 = pneg %p65
      %p377 = pneg %p62
      %p378 = pneg %p86
      %p379 = pneg %p83
      %p380 = pneg %p107
      %p381 = pneg %p104
      %p382 = pneg %p128
      %p383 = pneg %p125
      %p384 = pneg %p149
      %p385 = pneg %p146
      %p386 = pneg %p170
      %p387 = pneg %p167
      %p388 = pneg %p191
      %p389 = pneg %p188
      %p390 = pneg %p212
      %p391 = pneg %p209
      %p392 = pneg %p233
      %p393 = pneg %p230
      %p394 = pneg %p254
      %p395 = pneg %p251
      %p396 = pneg %p275
      %p397 = pneg %p272
      %p398 = pneg %p301
      %p399 = pneg %p298
      %p400 = scmp.lt.s32.totalorder %s23, 3
      %s401 = scalar_select %p400, %s23, 3
      %s402 = smul.addr %s401, 8
      %s403 = scalar_lea.vmem %s12, %s402
      %s404 = smul.u32 32, %s23
      %p405 = scmp.lt.s32.totalorder %s404, 127
      %s406 = scalar_select %p405, %s404, 127
      %s407 = smul.addr %s406, 4
      %s408 = scalar_lea.vmem %s0, %s407
      %s409 = smul.u32 32, %s23
      %p410 = scmp.lt.s32.totalorder %s23, 3
      %s411 = scalar_select %p410, %s23, 3
      %s412 = smul.addr %s411, 8
      %s413 = scalar_lea.vmem %s12, %s412
      %v415 = vld [vmem:[%s408] sm:$0xf]
      %v416 = vld [vmem:[%s408 + $0x4] sm:$0xf]
      %v417 = vld [vmem:[%s408 + $0x8] sm:$0xf]
      %v418 = vld [vmem:[%s408 + $0xc] sm:$0xf]
      %v419 = vld [vmem:[%s408 + $0x10] sm:$0xf]
      %v420 = vld [vmem:[%s408 + $0x14] sm:$0xf]
      %v421 = vld [vmem:[%s408 + $0x18] sm:$0xf]
      %v422 = vld [vmem:[%s408 + $0x1c] sm:$0xf]
      %v423 = vld [vmem:[%s408 + $0x20] sm:$0xf]
      %v424 = vld [vmem:[%s408 + $0x24] sm:$0xf]
      %v425 = vld [vmem:[%s408 + $0x28] sm:$0xf]
      %v426 = vld [vmem:[%s408 + $0x2c] sm:$0xf]
      %v427 = vld [vmem:[%s408 + $0x30] sm:$0xf]
      %v428 = vld [vmem:[%s408 + $0x34] sm:$0xf]
      %v429 = vld [vmem:[%s408 + $0x38] sm:$0xf]
      %v430 = vld [vmem:[%s408 + $0x3c] sm:$0xf]
      %v431 = vld [vmem:[%s408 + $0x40] sm:$0xf]
      %v432 = vld [vmem:[%s408 + $0x44] sm:$0xf]
      %v433 = vld [vmem:[%s408 + $0x48] sm:$0xf]
      %v434 = vld [vmem:[%s408 + $0x4c] sm:$0xf]
      %v435 = vld [vmem:[%s408 + $0x50] sm:$0xf]
      %v436 = vld [vmem:[%s408 + $0x54] sm:$0xf]
      %v437 = vld [vmem:[%s408 + $0x58] sm:$0xf]
      %v438 = vld [vmem:[%s408 + $0x5c] sm:$0xf]
      %v439 = vld [vmem:[%s408 + $0x60] sm:$0xf]
      %v440 = vld [vmem:[%s408 + $0x64] sm:$0xf]
      %v441 = vld [vmem:[%s408 + $0x68] sm:$0xf]
      %v442 = vld [vmem:[%s408 + $0x6c] sm:$0xf]
      %v443 = vld [vmem:[%s408 + $0x70] sm:$0xf]
      %v444 = vld [vmem:[%s408 + $0x74] sm:$0xf]
      %v445 = vld [vmem:[%s408 + $0x78] sm:$0xf]
      %v446 = vld [vmem:[%s408 + $0x7c] sm:$0xf]
      %v479 = vunpack.c.l.b16 %v415
      %v480 = vunpack.c.l.b16 %v416
      %v481 = vunpack.c.l.b16 %v417
      %v482 = vunpack.c.l.b16 %v418
      %v483 = vunpack.c.l.b16 %v419
      %v484 = vunpack.c.l.b16 %v420
      %v485 = vunpack.c.l.b16 %v421
      %v486 = vunpack.c.l.b16 %v422
      %v487 = vunpack.c.l.b16 %v423
      %v488 = vunpack.c.l.b16 %v424
      %v489 = vunpack.c.l.b16 %v425
      %v490 = vunpack.c.l.b16 %v426
      %v491 = vunpack.c.l.b16 %v427
      %v492 = vunpack.c.l.b16 %v428
      %v493 = vunpack.c.l.b16 %v429
      %v494 = vunpack.c.l.b16 %v430
      %v495 = vunpack.c.l.b16 %v431
      %v496 = vunpack.c.l.b16 %v432
      %v497 = vunpack.c.l.b16 %v433
      %v498 = vunpack.c.l.b16 %v434
      %v499 = vunpack.c.l.b16 %v435
      %v500 = vunpack.c.l.b16 %v436
      %v501 = vunpack.c.l.b16 %v437
      %v502 = vunpack.c.l.b16 %v438
      %v503 = vunpack.c.l.b16 %v439
      %v504 = vunpack.c.l.b16 %v440
      %v505 = vunpack.c.l.b16 %v441
      %v506 = vunpack.c.l.b16 %v442
      %v507 = vunpack.c.l.b16 %v443
      %v508 = vunpack.c.l.b16 %v444
      %v509 = vunpack.c.l.b16 %v445
      %v510 = vunpack.c.l.b16 %v446
      %v511 = vpack.c.b16 %v480, %v479
      %v512 = vpack.c.b16 %v482, %v481
      %v513 = vpack.c.b16 %v484, %v483
      %v514 = vpack.c.b16 %v486, %v485
      %v515 = vpack.c.b16 %v488, %v487
      %v516 = vpack.c.b16 %v490, %v489
      %v517 = vpack.c.b16 %v492, %v491
      %v518 = vpack.c.b16 %v494, %v493
      %v519 = vpack.c.b16 %v496, %v495
      %v520 = vpack.c.b16 %v498, %v497
      %v521 = vpack.c.b16 %v500, %v499
      %v522 = vpack.c.b16 %v502, %v501
      %v523 = vpack.c.b16 %v504, %v503
      %v524 = vpack.c.b16 %v506, %v505
      %v525 = vpack.c.b16 %v508, %v507
      %v526 = vpack.c.b16 %v510, %v509
      %vm527 = vsmask.f32 7424
      %v529 = vshrl.u32 %v511, 16
      %v531 = vshll.u32 %v511, 16
      %v533 = vrot.slane %v531, 1
      %v534 = vor.u32 %v529, %v533
      %v536 = vshll.u32 %v512, 16
      %v538 = vrot.slane %v536, 1
      %v539 = vsel %vm527, %v534, %v538
      %v540 = vshrl.u32 %v512, 16
      %v542 = vor.u32 %v540, %v538
      %v544 = vshll.u32 %v513, 16
      %v546 = vrot.slane %v544, 1
      %v547 = vsel %vm527, %v542, %v546
      %v548 = vshrl.u32 %v513, 16
      %v550 = vor.u32 %v548, %v546
      %v552 = vshll.u32 %v514, 16
      %v554 = vrot.slane %v552, 1
      %v555 = vsel %vm527, %v550, %v554
      %v556 = vshrl.u32 %v514, 16
      %v558 = vor.u32 %v556, %v554
      %v560 = vshll.u32 %v515, 16
      %v562 = vrot.slane %v560, 1
      %v563 = vsel %vm527, %v558, %v562
      %v564 = vshrl.u32 %v515, 16
      %v566 = vor.u32 %v564, %v562
      %v568 = vshll.u32 %v516, 16
      %v570 = vrot.slane %v568, 1
      %v571 = vsel %vm527, %v566, %v570
      %v572 = vshrl.u32 %v516, 16
      %v574 = vor.u32 %v572, %v570
      %v576 = vshll.u32 %v517, 16
      %v578 = vrot.slane %v576, 1
      %v579 = vsel %vm527, %v574, %v578
      %v580 = vshrl.u32 %v517, 16
      %v582 = vor.u32 %v580, %v578
      %v584 = vshll.u32 %v518, 16
      %v586 = vrot.slane %v584, 1
      %v587 = vsel %vm527, %v582, %v586
      %v588 = vshrl.u32 %v518, 16
      %v590 = vor.u32 %v588, %v586
      %v592 = vshll.u32 %v519, 16
      %v594 = vrot.slane %v592, 1
      %v595 = vsel %vm527, %v590, %v594
      %v596 = vshrl.u32 %v519, 16
      %v598 = vor.u32 %v596, %v594
      %v600 = vshll.u32 %v520, 16
      %v602 = vrot.slane %v600, 1
      %v603 = vsel %vm527, %v598, %v602
      %v604 = vshrl.u32 %v520, 16
      %v606 = vor.u32 %v604, %v602
      %v608 = vshll.u32 %v521, 16
      %v610 = vrot.slane %v608, 1
      %v611 = vsel %vm527, %v606, %v610
      %v612 = vshrl.u32 %v521, 16
      %v614 = vor.u32 %v612, %v610
      %v616 = vshll.u32 %v522, 16
      %v618 = vrot.slane %v616, 1
      %v619 = vsel %vm527, %v614, %v618
      %v620 = vshrl.u32 %v522, 16
      %v622 = vor.u32 %v620, %v618
      %v624 = vshll.u32 %v523, 16
      %v626 = vrot.slane %v624, 1
      %v627 = vsel %vm527, %v622, %v626
      %v628 = vshrl.u32 %v523, 16
      %v630 = vor.u32 %v628, %v626
      %v632 = vshll.u32 %v524, 16
      %v634 = vrot.slane %v632, 1
      %v635 = vsel %vm527, %v630, %v634
      %v636 = vshrl.u32 %v524, 16
      %v638 = vor.u32 %v636, %v634
      %v640 = vshll.u32 %v525, 16
      %v642 = vrot.slane %v640, 1
      %v643 = vsel %vm527, %v638, %v642
      %v644 = vshrl.u32 %v525, 16
      %v646 = vor.u32 %v644, %v642
      %v648 = vshll.u32 %v526, 16
      %v650 = vrot.slane %v648, 1
      %v651 = vsel %vm527, %v646, %v650
      %v652 = vshrl.u32 %v526, 16
      %v654 = vor.u32 %v652, %v650
      %v656 = vpack.c.b16 %v479, %v479
      %v658 = vshll.u32 %v656, 16
      %v660 = vrot.slane %v658, 1
      %vm662 = vcmask 1047552
      %vm663 = vmand %vm662, %vm527
      %v664 = vsel %vm663, %v654, %v660
      %vm665 = vcmask 1046528
      %v666 = vrot.slane %v511, 1
      %v667 = vrot.slane %v512, 1
      %v668 = vsel %vm665, %v666, %v667
      %v669 = vrot.slane %v513, 1
      %v670 = vsel %vm665, %v667, %v669
      %v671 = vrot.slane %v514, 1
      %v672 = vsel %vm665, %v669, %v671
      %v673 = vrot.slane %v515, 1
      %v674 = vsel %vm665, %v671, %v673
      %v675 = vrot.slane %v516, 1
      %v676 = vsel %vm665, %v673, %v675
      %v677 = vrot.slane %v517, 1
      %v678 = vsel %vm665, %v675, %v677
      %v679 = vrot.slane %v518, 1
      %v680 = vsel %vm665, %v677, %v679
      %v681 = vrot.slane %v519, 1
      %v682 = vsel %vm665, %v679, %v681
      %v683 = vrot.slane %v520, 1
      %v684 = vsel %vm665, %v681, %v683
      %v685 = vrot.slane %v521, 1
      %v686 = vsel %vm665, %v683, %v685
      %v687 = vrot.slane %v522, 1
      %v688 = vsel %vm665, %v685, %v687
      %v689 = vrot.slane %v523, 1
      %v690 = vsel %vm665, %v687, %v689
      %v691 = vrot.slane %v524, 1
      %v692 = vsel %vm665, %v689, %v691
      %v693 = vrot.slane %v525, 1
      %v694 = vsel %vm665, %v691, %v693
      %v695 = vrot.slane %v526, 1
      %v696 = vsel %vm665, %v693, %v695
      %v697 = vrot.slane %v656, 1
      %vm698 = vcmask 1046528
      %v701 = vsel %vm698, %v695, %v697
      %vm702 = vsmask.f32 6400
      %v703 = vrot.slane %v529, 1
      %v704 = vrot.slane %v531, 2
      %v705 = vor.u32 %v703, %v704
      %v706 = vrot.slane %v540, 1
      %v707 = vrot.slane %v536, 2
      %v708 = vor.u32 %v706, %v707
      %v709 = vsel %vm702, %v705, %v708
      %v710 = vrot.slane %v548, 1
      %v711 = vrot.slane %v544, 2
      %v712 = vor.u32 %v710, %v711
      %v713 = vsel %vm702, %v708, %v712
      %v714 = vrot.slane %v556, 1
      %v715 = vrot.slane %v552, 2
      %v716 = vor.u32 %v714, %v715
      %v717 = vsel %vm702, %v712, %v716
      %v718 = vrot.slane %v564, 1
      %v719 = vrot.slane %v560, 2
      %v720 = vor.u32 %v718, %v719
      %v721 = vsel %vm702, %v716, %v720
      %v722 = vrot.slane %v572, 1
      %v723 = vrot.slane %v568, 2
      %v724 = vor.u32 %v722, %v723
      %v725 = vsel %vm702, %v720, %v724
      %v726 = vrot.slane %v580, 1
      %v727 = vrot.slane %v576, 2
      %v728 = vor.u32 %v726, %v727
      %v729 = vsel %vm702, %v724, %v728
      %v730 = vrot.slane %v588, 1
      %v731 = vrot.slane %v584, 2
      %v732 = vor.u32 %v730, %v731
      %v733 = vsel %vm702, %v728, %v732
      %v734 = vrot.slane %v596, 1
      %v735 = vrot.slane %v592, 2
      %v736 = vor.u32 %v734, %v735
      %v737 = vsel %vm702, %v732, %v736
      %v738 = vrot.slane %v604, 1
      %v739 = vrot.slane %v600, 2
      %v740 = vor.u32 %v738, %v739
      %v741 = vsel %vm702, %v736, %v740
      %v742 = vrot.slane %v612, 1
      %v743 = vrot.slane %v608, 2
      %v744 = vor.u32 %v742, %v743
      %v745 = vsel %vm702, %v740, %v744
      %v746 = vrot.slane %v620, 1
      %v747 = vrot.slane %v616, 2
      %v748 = vor.u32 %v746, %v747
      %v749 = vsel %vm702, %v744, %v748
      %v750 = vrot.slane %v628, 1
      %v751 = vrot.slane %v624, 2
      %v752 = vor.u32 %v750, %v751
      %v753 = vsel %vm702, %v748, %v752
      %v754 = vrot.slane %v636, 1
      %v755 = vrot.slane %v632, 2
      %v756 = vor.u32 %v754, %v755
      %v757 = vsel %vm702, %v752, %v756
      %v758 = vrot.slane %v644, 1
      %v759 = vrot.slane %v640, 2
      %v760 = vor.u32 %v758, %v759
      %v761 = vsel %vm702, %v756, %v760
      %v762 = vrot.slane %v652, 1
      %v763 = vrot.slane %v648, 2
      %v764 = vor.u32 %v762, %v763
      %v765 = vsel %vm702, %v760, %v764
      %v767 = vshrl.u32 %v656, 16
      %v769 = vrot.slane %v767, 1
      %v770 = vrot.slane %v658, 2
      %v771 = vor.u32 %v769, %v770
      %vm773 = vmand %vm665, %vm702
      %v774 = vsel %vm773, %v764, %v771
      %vm775 = vcmask 1045504
      %v776 = vrot.slane %v511, 2
      %v777 = vrot.slane %v512, 2
      %v778 = vsel %vm775, %v776, %v777
      %v779 = vrot.slane %v513, 2
      %v780 = vsel %vm775, %v777, %v779
      %v781 = vrot.slane %v514, 2
      %v782 = vsel %vm775, %v779, %v781
      %v783 = vrot.slane %v515, 2
      %v784 = vsel %vm775, %v781, %v783
      %v785 = vrot.slane %v516, 2
      %v786 = vsel %vm775, %v783, %v785
      %v787 = vrot.slane %v517, 2
      %v788 = vsel %vm775, %v785, %v787
      %v789 = vrot.slane %v518, 2
      %v790 = vsel %vm775, %v787, %v789
      %v791 = vrot.slane %v519, 2
      %v792 = vsel %vm775, %v789, %v791
      %v793 = vrot.slane %v520, 2
      %v794 = vsel %vm775, %v791, %v793
      %v795 = vrot.slane %v521, 2
      %v796 = vsel %vm775, %v793, %v795
      %v797 = vrot.slane %v522, 2
      %v798 = vsel %vm775, %v795, %v797
      %v799 = vrot.slane %v523, 2
      %v800 = vsel %vm775, %v797, %v799
      %v801 = vrot.slane %v524, 2
      %v802 = vsel %vm775, %v799, %v801
      %v803 = vrot.slane %v525, 2
      %v804 = vsel %vm775, %v801, %v803
      %v805 = vrot.slane %v526, 2
      %v806 = vsel %vm775, %v803, %v805
      %v807 = vrot.slane %v656, 2
      %vm808 = vcmask 1045504
      %v811 = vsel %vm808, %v805, %v807
      %813 = vrot.lane.b32.xlu0 %v539, 96
      %v814 = vpop.permute.xlu0 %813
      %815 = vrot.lane.b32.xlu0 %v547, 96
      %v816 = vpop.permute.xlu0 %815
      %817 = vrot.lane.b32.xlu0 %v555, 96
      %v818 = vpop.permute.xlu0 %817
      %819 = vrot.lane.b32.xlu0 %v563, 96
      %v820 = vpop.permute.xlu0 %819
      %821 = vrot.lane.b32.xlu0 %v571, 96
      %v822 = vpop.permute.xlu0 %821
      %823 = vrot.lane.b32.xlu0 %v579, 96
      %v824 = vpop.permute.xlu0 %823
      %825 = vrot.lane.b32.xlu0 %v587, 96
      %v826 = vpop.permute.xlu0 %825
      %827 = vrot.lane.b32.xlu0 %v595, 96
      %v828 = vpop.permute.xlu0 %827
      %829 = vrot.lane.b32.xlu0 %v603, 96
      %v830 = vpop.permute.xlu0 %829
      %831 = vrot.lane.b32.xlu0 %v611, 96
      %v832 = vpop.permute.xlu0 %831
      %833 = vrot.lane.b32.xlu0 %v619, 96
      %v834 = vpop.permute.xlu0 %833
      %835 = vrot.lane.b32.xlu0 %v627, 96
      %v836 = vpop.permute.xlu0 %835
      %837 = vrot.lane.b32.xlu0 %v635, 96
      %v838 = vpop.permute.xlu0 %837
      %839 = vrot.lane.b32.xlu0 %v643, 96
      %v840 = vpop.permute.xlu0 %839
      %841 = vrot.lane.b32.xlu0 %v651, 96
      %v842 = vpop.permute.xlu0 %841
      %843 = vrot.lane.b32.xlu0 %v664, 96
      %v844 = vpop.permute.xlu0 %843
      %846 = vrot.lane.b32.xlu0 %v668, 64
      %v847 = vpop.permute.xlu0 %846
      %848 = vrot.lane.b32.xlu0 %v670, 64
      %v849 = vpop.permute.xlu0 %848
      %850 = vrot.lane.b32.xlu0 %v672, 64
      %v851 = vpop.permute.xlu0 %850
      %852 = vrot.lane.b32.xlu0 %v674, 64
      %v853 = vpop.permute.xlu0 %852
      %854 = vrot.lane.b32.xlu0 %v676, 64
      %v855 = vpop.permute.xlu0 %854
      %856 = vrot.lane.b32.xlu0 %v678, 64
      %v857 = vpop.permute.xlu0 %856
      %858 = vrot.lane.b32.xlu0 %v680, 64
      %v859 = vpop.permute.xlu0 %858
      %860 = vrot.lane.b32.xlu0 %v682, 64
      %v861 = vpop.permute.xlu0 %860
      %862 = vrot.lane.b32.xlu0 %v684, 64
      %v863 = vpop.permute.xlu0 %862
      %864 = vrot.lane.b32.xlu0 %v686, 64
      %v865 = vpop.permute.xlu0 %864
      %866 = vrot.lane.b32.xlu0 %v688, 64
      %v867 = vpop.permute.xlu0 %866
      %868 = vrot.lane.b32.xlu0 %v690, 64
      %v869 = vpop.permute.xlu0 %868
      %870 = vrot.lane.b32.xlu0 %v692, 64
      %v871 = vpop.permute.xlu0 %870
      %872 = vrot.lane.b32.xlu0 %v694, 64
      %v873 = vpop.permute.xlu0 %872
      %874 = vrot.lane.b32.xlu0 %v696, 64
      %v875 = vpop.permute.xlu0 %874
      %876 = vrot.lane.b32.xlu0 %v701, 64
      %v877 = vpop.permute.xlu0 %876
      %879 = vrot.lane.b32.xlu0 %v709, 32
      %v880 = vpop.permute.xlu0 %879
      %881 = vrot.lane.b32.xlu0 %v713, 32
      %v882 = vpop.permute.xlu0 %881
      %883 = vrot.lane.b32.xlu0 %v717, 32
      %v884 = vpop.permute.xlu0 %883
      %885 = vrot.lane.b32.xlu0 %v721, 32
      %v886 = vpop.permute.xlu0 %885
      %887 = vrot.lane.b32.xlu0 %v725, 32
      %v888 = vpop.permute.xlu0 %887
      %889 = vrot.lane.b32.xlu0 %v729, 32
      %v890 = vpop.permute.xlu0 %889
      %891 = vrot.lane.b32.xlu0 %v733, 32
      %v892 = vpop.permute.xlu0 %891
      %893 = vrot.lane.b32.xlu0 %v737, 32
      %v894 = vpop.permute.xlu0 %893
      %895 = vrot.lane.b32.xlu0 %v741, 32
      %v896 = vpop.permute.xlu0 %895
      %897 = vrot.lane.b32.xlu0 %v745, 32
      %v898 = vpop.permute.xlu0 %897
      %899 = vrot.lane.b32.xlu0 %v749, 32
      %v900 = vpop.permute.xlu0 %899
      %901 = vrot.lane.b32.xlu0 %v753, 32
      %v902 = vpop.permute.xlu0 %901
      %903 = vrot.lane.b32.xlu0 %v757, 32
      %v904 = vpop.permute.xlu0 %903
      %905 = vrot.lane.b32.xlu0 %v761, 32
      %v906 = vpop.permute.xlu0 %905
      %907 = vrot.lane.b32.xlu0 %v765, 32
      %v908 = vpop.permute.xlu0 %907
      %909 = vrot.lane.b32.xlu0 %v774, 32
      %v910 = vpop.permute.xlu0 %909
      %vm911 = vcmask 785408
      %v913 = vsel %vm911, %v511, %v814
      %v916 = vsel %vm911, %v512, %v816
      %v919 = vsel %vm911, %v513, %v818
      %v922 = vsel %vm911, %v514, %v820
      %v925 = vsel %vm911, %v515, %v822
      %v928 = vsel %vm911, %v516, %v824
      %v931 = vsel %vm911, %v517, %v826
      %v934 = vsel %vm911, %v518, %v828
      %v937 = vsel %vm911, %v519, %v830
      %v940 = vsel %vm911, %v520, %v832
      %v943 = vsel %vm911, %v521, %v834
      %v946 = vsel %vm911, %v522, %v836
      %v949 = vsel %vm911, %v523, %v838
      %v952 = vsel %vm911, %v524, %v840
      %v955 = vsel %vm911, %v525, %v842
      %v958 = vsel %vm911, %v526, %v844
      %vm960 = vcmask 523264
      %v962 = vsel %vm960, %v814, %v847
      %v965 = vsel %vm960, %v816, %v849
      %v968 = vsel %vm960, %v818, %v851
      %v971 = vsel %vm960, %v820, %v853
      %v974 = vsel %vm960, %v822, %v855
      %v977 = vsel %vm960, %v824, %v857
      %v980 = vsel %vm960, %v826, %v859
      %v983 = vsel %vm960, %v828, %v861
      %v986 = vsel %vm960, %v830, %v863
      %v989 = vsel %vm960, %v832, %v865
      %v992 = vsel %vm960, %v834, %v867
      %v995 = vsel %vm960, %v836, %v869
      %v998 = vsel %vm960, %v838, %v871
      %v1001 = vsel %vm960, %v840, %v873
      %v1004 = vsel %vm960, %v842, %v875
      %v1007 = vsel %vm960, %v844, %v877
      %vm1009 = vcmask 261120
      %v1011 = vsel %vm1009, %v847, %v880
      %v1014 = vsel %vm1009, %v849, %v882
      %v1017 = vsel %vm1009, %v851, %v884
      %v1020 = vsel %vm1009, %v853, %v886
      %v1023 = vsel %vm1009, %v855, %v888
      %v1026 = vsel %vm1009, %v857, %v890
      %v1029 = vsel %vm1009, %v859, %v892
      %v1032 = vsel %vm1009, %v861, %v894
      %v1035 = vsel %vm1009, %v863, %v896
      %v1038 = vsel %vm1009, %v865, %v898
      %v1041 = vsel %vm1009, %v867, %v900
      %v1044 = vsel %vm1009, %v869, %v902
      %v1047 = vsel %vm1009, %v871, %v904
      %v1050 = vsel %vm1009, %v873, %v906
      %v1053 = vsel %vm1009, %v875, %v908
      %v1056 = vsel %vm1009, %v877, %v910
      %v1058 = vld [vmem:[%s1] sm:$0xff]
      %v1059 = vld [vmem:[%s1 + $0x8] sm:$0xff]
      %v1060 = vld [vmem:[%s1 + $0x10] sm:$0xff]
      %v1061 = vld [vmem:[%s1 + $0x18] sm:$0xff]
      %v1062 = vld [vmem:[%s1 + $0x20] sm:$0xff]
      %v1063 = vld [vmem:[%s1 + $0x28] sm:$0xff]
      %v1064 = vld [vmem:[%s1 + $0x30] sm:$0xff]
      %v1065 = vld [vmem:[%s1 + $0x38] sm:$0xff]
      %v1066 = vld [vmem:[%s1 + $0x40] sm:$0xff]
      %v1067 = vld [vmem:[%s1 + $0x48] sm:$0xff]
      %v1068 = vld [vmem:[%s1 + $0x50] sm:$0xff]
      %v1069 = vld [vmem:[%s1 + $0x58] sm:$0xff]
      %v1070 = vld [vmem:[%s1 + $0x60] sm:$0xff]
      %v1071 = vld [vmem:[%s1 + $0x68] sm:$0xff]
      %v1072 = vld [vmem:[%s1 + $0x70] sm:$0xff]
      %v1073 = vld [vmem:[%s1 + $0x78] sm:$0xff]
      %v1074 = vld [vmem:[%s1 + $0x80] sm:$0xff]
      %v1075 = vld [vmem:[%s1 + $0x88] sm:$0xff]
      %v1076 = vld [vmem:[%s1 + $0x90] sm:$0xff]
      %v1077 = vld [vmem:[%s1 + $0x98] sm:$0xff]
      %v1078 = vld [vmem:[%s1 + $0xa0] sm:$0xff]
      %v1079 = vld [vmem:[%s1 + $0xa8] sm:$0xff]
      %v1080 = vld [vmem:[%s1 + $0xb0] sm:$0xff]
      %v1081 = vld [vmem:[%s1 + $0xb8] sm:$0xff]
      %v1082 = vld [vmem:[%s1 + $0xc0] sm:$0xff]
      %v1083 = vld [vmem:[%s1 + $0xc8] sm:$0xff]
      %v1084 = vld [vmem:[%s1 + $0xd0] sm:$0xff]
      %v1085 = vld [vmem:[%s1 + $0xd8] sm:$0xff]
      %v1086 = vld [vmem:[%s1 + $0xe0] sm:$0xff]
      %v1087 = vld [vmem:[%s1 + $0xe8] sm:$0xff]
      %v1088 = vld [vmem:[%s1 + $0xf0] sm:$0xff]
      %v1089 = vld [vmem:[%s1 + $0xf8] sm:$0xff]
      %v1090 = vld [vmem:[%s1 + $0x100] sm:$0xff]
      %v1091 = vld [vmem:[%s1 + $0x108] sm:$0xff]
      %v1092 = vld [vmem:[%s1 + $0x110] sm:$0xff]
      %v1093 = vld [vmem:[%s1 + $0x118] sm:$0xff]
      %v1094 = vld [vmem:[%s1 + $0x120] sm:$0xff]
      %v1095 = vld [vmem:[%s1 + $0x128] sm:$0xff]
      %v1096 = vld [vmem:[%s1 + $0x130] sm:$0xff]
      %v1097 = vld [vmem:[%s1 + $0x138] sm:$0xff]
      %v1098 = vld [vmem:[%s1 + $0x140] sm:$0xff]
      %v1099 = vld [vmem:[%s1 + $0x148] sm:$0xff]
      %v1100 = vld [vmem:[%s1 + $0x150] sm:$0xff]
      %v1101 = vld [vmem:[%s1 + $0x158] sm:$0xff]
      %v1102 = vld [vmem:[%s1 + $0x160] sm:$0xff]
      %v1103 = vld [vmem:[%s1 + $0x168] sm:$0xff]
      %v1104 = vld [vmem:[%s1 + $0x170] sm:$0xff]
      %v1105 = vld [vmem:[%s1 + $0x178] sm:$0xff]
      %v1106 = vld [vmem:[%s1 + $0x180] sm:$0xff]
      %v1107 = vld [vmem:[%s1 + $0x188] sm:$0xff]
      %v1108 = vld [vmem:[%s1 + $0x190] sm:$0xff]
      %v1109 = vld [vmem:[%s1 + $0x198] sm:$0xff]
      %v1110 = vld [vmem:[%s1 + $0x1a0] sm:$0xff]
      %v1111 = vld [vmem:[%s1 + $0x1a8] sm:$0xff]
      %v1112 = vld [vmem:[%s1 + $0x1b0] sm:$0xff]
      %v1113 = vld [vmem:[%s1 + $0x1b8] sm:$0xff]
      %v1114 = vld [vmem:[%s1 + $0x1c0] sm:$0xff]
      %v1115 = vld [vmem:[%s1 + $0x1c8] sm:$0xff]
      %v1116 = vld [vmem:[%s1 + $0x1d0] sm:$0xff]
      %v1117 = vld [vmem:[%s1 + $0x1d8] sm:$0xff]
      %v1178 = vunpack.c.l.b16 %v1058
      %v1179 = vunpack.c.h.b16 %v1058
      %v1180 = vunpack.c.l.b16 %v1059
      %v1181 = vunpack.c.h.b16 %v1059
      %v1182 = vunpack.c.l.b16 %v1060
      %v1183 = vunpack.c.h.b16 %v1060
      %v1184 = vunpack.c.l.b16 %v1061
      %v1185 = vunpack.c.h.b16 %v1061
      %v1186 = vunpack.c.l.b16 %v1062
      %v1187 = vunpack.c.h.b16 %v1062
      %v1188 = vunpack.c.l.b16 %v1063
      %v1189 = vunpack.c.h.b16 %v1063
      %v1190 = vunpack.c.l.b16 %v1064
      %v1191 = vunpack.c.h.b16 %v1064
      %v1192 = vunpack.c.l.b16 %v1065
      %v1193 = vunpack.c.h.b16 %v1065
      %v1194 = vunpack.c.l.b16 %v1066
      %v1195 = vunpack.c.h.b16 %v1066
      %v1196 = vunpack.c.l.b16 %v1067
      %v1197 = vunpack.c.h.b16 %v1067
      %v1198 = vunpack.c.l.b16 %v1068
      %v1199 = vunpack.c.h.b16 %v1068
      %v1200 = vunpack.c.l.b16 %v1069
      %v1201 = vunpack.c.h.b16 %v1069
      %v1202 = vunpack.c.l.b16 %v1070
      %v1203 = vunpack.c.h.b16 %v1070
      %v1204 = vunpack.c.l.b16 %v1071
      %v1205 = vunpack.c.h.b16 %v1071
      %v1206 = vunpack.c.l.b16 %v1072
      %v1207 = vunpack.c.h.b16 %v1072
      %v1208 = vunpack.c.l.b16 %v1073
      %v1209 = vunpack.c.h.b16 %v1073
      %v1210 = vunpack.c.l.b16 %v1074
      %v1211 = vunpack.c.h.b16 %v1074
      %v1212 = vunpack.c.l.b16 %v1075
      %v1213 = vunpack.c.h.b16 %v1075
      %v1214 = vunpack.c.l.b16 %v1076
      %v1215 = vunpack.c.h.b16 %v1076
      %v1216 = vunpack.c.l.b16 %v1077
      %v1217 = vunpack.c.h.b16 %v1077
      %v1218 = vunpack.c.l.b16 %v1078
      %v1219 = vunpack.c.h.b16 %v1078
      %v1220 = vunpack.c.l.b16 %v1079
      %v1221 = vunpack.c.h.b16 %v1079
      %v1222 = vunpack.c.l.b16 %v1080
      %v1223 = vunpack.c.h.b16 %v1080
      %v1224 = vunpack.c.l.b16 %v1081
      %v1225 = vunpack.c.h.b16 %v1081
      %v1226 = vunpack.c.l.b16 %v1082
      %v1227 = vunpack.c.h.b16 %v1082
      %v1228 = vunpack.c.l.b16 %v1083
      %v1229 = vunpack.c.h.b16 %v1083
      %v1230 = vunpack.c.l.b16 %v1084
      %v1231 = vunpack.c.h.b16 %v1084
      %v1232 = vunpack.c.l.b16 %v1085
      %v1233 = vunpack.c.h.b16 %v1085
      %v1234 = vunpack.c.l.b16 %v1086
      %v1235 = vunpack.c.h.b16 %v1086
      %v1236 = vunpack.c.l.b16 %v1087
      %v1237 = vunpack.c.h.b16 %v1087
      %v1238 = vunpack.c.l.b16 %v1088
      %v1239 = vunpack.c.h.b16 %v1088
      %v1240 = vunpack.c.l.b16 %v1089
      %v1241 = vunpack.c.h.b16 %v1089
      %v1242 = vunpack.c.l.b16 %v1090
      %v1243 = vunpack.c.h.b16 %v1090
      %v1244 = vunpack.c.l.b16 %v1091
      %v1245 = vunpack.c.h.b16 %v1091
      %v1246 = vunpack.c.l.b16 %v1092
      %v1247 = vunpack.c.h.b16 %v1092
      %v1248 = vunpack.c.l.b16 %v1093
      %v1249 = vunpack.c.h.b16 %v1093
      %v1250 = vunpack.c.l.b16 %v1094
      %v1251 = vunpack.c.h.b16 %v1094
      %v1252 = vunpack.c.l.b16 %v1095
      %v1253 = vunpack.c.h.b16 %v1095
      %v1254 = vunpack.c.l.b16 %v1096
      %v1255 = vunpack.c.h.b16 %v1096
      %v1256 = vunpack.c.l.b16 %v1097
      %v1257 = vunpack.c.h.b16 %v1097
      %v1258 = vunpack.c.l.b16 %v1098
      %v1259 = vunpack.c.h.b16 %v1098
      %v1260 = vunpack.c.l.b16 %v1099
      %v1261 = vunpack.c.h.b16 %v1099
      %v1262 = vunpack.c.l.b16 %v1100
      %v1263 = vunpack.c.h.b16 %v1100
      %v1264 = vunpack.c.l.b16 %v1101
      %v1265 = vunpack.c.h.b16 %v1101
      %v1266 = vunpack.c.l.b16 %v1102
      %v1267 = vunpack.c.h.b16 %v1102
      %v1268 = vunpack.c.l.b16 %v1103
      %v1269 = vunpack.c.h.b16 %v1103
      %v1270 = vunpack.c.l.b16 %v1104
      %v1271 = vunpack.c.h.b16 %v1104
      %v1272 = vunpack.c.l.b16 %v1105
      %v1273 = vunpack.c.h.b16 %v1105
      %v1274 = vunpack.c.l.b16 %v1106
      %v1275 = vunpack.c.h.b16 %v1106
      %v1276 = vunpack.c.l.b16 %v1107
      %v1277 = vunpack.c.h.b16 %v1107
      %v1278 = vunpack.c.l.b16 %v1108
      %v1279 = vunpack.c.h.b16 %v1108
      %v1280 = vunpack.c.l.b16 %v1109
      %v1281 = vunpack.c.h.b16 %v1109
      %v1282 = vunpack.c.l.b16 %v1110
      %v1283 = vunpack.c.h.b16 %v1110
      %v1284 = vunpack.c.l.b16 %v1111
      %v1285 = vunpack.c.h.b16 %v1111
      %v1286 = vunpack.c.l.b16 %v1112
      %v1287 = vunpack.c.h.b16 %v1112
      %v1288 = vunpack.c.l.b16 %v1113
      %v1289 = vunpack.c.h.b16 %v1113
      %v1290 = vunpack.c.l.b16 %v1114
      %v1291 = vunpack.c.h.b16 %v1114
      %v1292 = vunpack.c.l.b16 %v1115
      %v1293 = vunpack.c.h.b16 %v1115
      %v1294 = vunpack.c.l.b16 %v1116
      %v1295 = vunpack.c.h.b16 %v1116
      %v1296 = vunpack.c.l.b16 %v1117
      %v1297 = vunpack.c.h.b16 %v1117
      %v1298 = vpack.c.b16 %v1180, %v1178
      %v1299 = vpack.c.b16 %v1181, %v1179
      %v1300 = vpack.c.b16 %v1184, %v1182
      %v1301 = vpack.c.b16 %v1185, %v1183
      %v1302 = vpack.c.b16 %v1188, %v1186
      %v1303 = vpack.c.b16 %v1189, %v1187
      %v1304 = vpack.c.b16 %v1192, %v1190
      %v1305 = vpack.c.b16 %v1193, %v1191
      %v1306 = vpack.c.b16 %v1196, %v1194
      %v1307 = vpack.c.b16 %v1197, %v1195
      %v1308 = vpack.c.b16 %v1200, %v1198
      %v1309 = vpack.c.b16 %v1201, %v1199
      %v1310 = vpack.c.b16 %v1204, %v1202
      %v1311 = vpack.c.b16 %v1205, %v1203
      %v1312 = vpack.c.b16 %v1208, %v1206
      %v1313 = vpack.c.b16 %v1209, %v1207
      %v1314 = vpack.c.b16 %v1212, %v1210
      %v1315 = vpack.c.b16 %v1213, %v1211
      %v1316 = vpack.c.b16 %v1216, %v1214
      %v1317 = vpack.c.b16 %v1217, %v1215
      %v1318 = vpack.c.b16 %v1220, %v1218
      %v1319 = vpack.c.b16 %v1221, %v1219
      %v1320 = vpack.c.b16 %v1224, %v1222
      %v1321 = vpack.c.b16 %v1225, %v1223
      %v1322 = vpack.c.b16 %v1228, %v1226
      %v1323 = vpack.c.b16 %v1229, %v1227
      %v1324 = vpack.c.b16 %v1232, %v1230
      %v1325 = vpack.c.b16 %v1233, %v1231
      %v1326 = vpack.c.b16 %v1236, %v1234
      %v1327 = vpack.c.b16 %v1237, %v1235
      %v1328 = vpack.c.b16 %v1240, %v1238
      %v1329 = vpack.c.b16 %v1241, %v1239
      %v1330 = vpack.c.b16 %v1244, %v1242
      %v1331 = vpack.c.b16 %v1245, %v1243
      %v1332 = vpack.c.b16 %v1248, %v1246
      %v1333 = vpack.c.b16 %v1249, %v1247
      %v1334 = vpack.c.b16 %v1252, %v1250
      %v1335 = vpack.c.b16 %v1253, %v1251
      %v1336 = vpack.c.b16 %v1256, %v1254
      %v1337 = vpack.c.b16 %v1257, %v1255
      %v1338 = vpack.c.b16 %v1260, %v1258
      %v1339 = vpack.c.b16 %v1261, %v1259
      %v1340 = vpack.c.b16 %v1264, %v1262
      %v1341 = vpack.c.b16 %v1265, %v1263
      %v1342 = vpack.c.b16 %v1268, %v1266
      %v1343 = vpack.c.b16 %v1269, %v1267
      %v1344 = vpack.c.b16 %v1272, %v1270
      %v1345 = vpack.c.b16 %v1273, %v1271
      %v1346 = vpack.c.b16 %v1276, %v1274
      %v1347 = vpack.c.b16 %v1277, %v1275
      %v1348 = vpack.c.b16 %v1280, %v1278
      %v1349 = vpack.c.b16 %v1281, %v1279
      %v1350 = vpack.c.b16 %v1284, %v1282
      %v1351 = vpack.c.b16 %v1285, %v1283
      %v1352 = vpack.c.b16 %v1288, %v1286
      %v1353 = vpack.c.b16 %v1289, %v1287
      %v1354 = vpack.c.b16 %v1292, %v1290
      %v1355 = vpack.c.b16 %v1293, %v1291
      %v1356 = vpack.c.b16 %v1296, %v1294
      %v1357 = vpack.c.b16 %v1297, %v1295
      %v1419 = vsel %vm911, %v778, 0
      %v1422 = vsel %vm911, %v780, 0
      %v1425 = vsel %vm911, %v782, 0
      %v1428 = vsel %vm911, %v784, 0
      %v1431 = vsel %vm911, %v786, 0
      %v1434 = vsel %vm911, %v788, 0
      %v1437 = vsel %vm911, %v790, 0
      %v1440 = vsel %vm911, %v792, 0
      %v1443 = vsel %vm911, %v794, 0
      %v1446 = vsel %vm911, %v796, 0
      %v1449 = vsel %vm911, %v798, 0
      %v1452 = vsel %vm911, %v800, 0
      %v1455 = vsel %vm911, %v802, 0
      %v1458 = vsel %vm911, %v804, 0
      %v1461 = vsel %vm911, %v806, 0
      %v1463 = vsel %vm911, %v811, 0
      %1465 = vmatprep.subr.bf16.mxu0 %v1299
      %1466 = vmatpush1.bf16.msra.mxu0 %v1298
      %1467 = vmatprep.subr.bf16.mxu0 %v1301
      %1468 = vmatpush1.bf16.msra.mxu0 %v1300
      %1469 = vmatprep.subr.bf16.mxu0 %v1303
      %1470 = vmatpush1.bf16.msra.mxu0 %v1302
      %1471 = vmatprep.subr.bf16.mxu0 %v1305
      %1472 = vmatpush1.bf16.msra.mxu0 %v1304
      %1473 = vmatprep.subr.bf16.mxu0 %v1307
      %1474 = vmatpush1.bf16.msra.mxu0 %v1306
      %1475 = vmatprep.subr.bf16.mxu0 %v1309
      %1476 = vmatpush1.bf16.msra.mxu0 %v1308
      %1477 = vmatprep.subr.bf16.mxu0 %v1311
      %1478 = vmatpush1.bf16.msra.mxu0 %v1310
      %1479 = vmatprep.subr.bf16.mxu0 %v1313
      %1480 = vmatpush1.bf16.msra.mxu0 %v1312
      %1481 = vmatprep.subr.bf16.mxu0 %v1315
      %1482 = vmatpush1.bf16.msra.mxu0 %v1314
      %1483 = vmatprep.subr.bf16.mxu0 %v1317
      %1484 = vmatpush1.bf16.msra.mxu0 %v1316
      %1485 = vmatprep.subr.bf16.mxu0 %v1319
      %1486 = vmatpush1.bf16.msra.mxu0 %v1318
      %1487 = vmatprep.subr.bf16.mxu0 %v1321
      %1488 = vmatpush1.bf16.msra.mxu0 %v1320
      %1489 = vmatprep.subr.bf16.mxu0 %v1323
      %1490 = vmatpush1.bf16.msra.mxu0 %v1322
      %1491 = vmatprep.subr.bf16.mxu0 %v1325
      %1492 = vmatpush1.bf16.msra.mxu0 %v1324
      %1493 = vmatprep.subr.bf16.mxu0 %v1327
      %1494 = vmatpush1.bf16.msra.mxu0 %v1326
      %1495 = vmatprep.subr.bf16.mxu0 %v1329
      %1496 = vmatpush1.bf16.msra.mxu0 %v1328
      %1497 = vmatprep.mubr.bf16.mxu0 %v962
      %1498 = vmatmul.mubr.bf16.gmra.mrb[0].mxu0 %v913
      %v1499 = vpop.f32.mrb[0].mxu0
      %v1500 = vadd.f32 0.0, %v1499
      %v1501 = vpop.f32.mrb[0].mxu0
      %v1502 = vadd.f32 0.0, %v1501
      %v1503 = vpop.f32.mrb[0].mxu0
      %v1504 = vadd.f32 0.0, %v1503
      %v1505 = vpop.f32.mrb[0].mxu0
      %v1506 = vadd.f32 0.0, %v1505
      %1507 = vmatprep.mubr.bf16.mxu0 %v965
      %1508 = vmatmul.mubr.bf16.gmra.mrb[0].mxu0 %v916
      %v1509 = vpop.f32.mrb[0].mxu0
      %v1510 = vadd.f32 0.0, %v1509
      %v1511 = vpop.f32.mrb[0].mxu0
      %v1512 = vadd.f32 0.0, %v1511
      %v1513 = vpop.f32.mrb[0].mxu0
      %v1514 = vadd.f32 0.0, %v1513
      %v1515 = vpop.f32.mrb[0].mxu0
      %v1516 = vadd.f32 0.0, %v1515
      %1517 = vmatprep.mubr.bf16.mxu0 %v968
      %1518 = vmatmul.mubr.bf16.gmra.mrb[0].mxu0 %v919
      %v1519 = vpop.f32.mrb[0].mxu0
      %v1520 = vadd.f32 0.0, %v1519
      %v1521 = vpop.f32.mrb[0].mxu0
      %v1522 = vadd.f32 0.0, %v1521
      %v1523 = vpop.f32.mrb[0].mxu0
      %v1524 = vadd.f32 0.0, %v1523
      %v1525 = vpop.f32.mrb[0].mxu0
      %v1526 = vadd.f32 0.0, %v1525
      %1527 = vmatprep.mubr.bf16.mxu0 %v971
      %1528 = vmatmul.mubr.bf16.gmra.mrb[0].mxu0 %v922
      %v1529 = vpop.f32.mrb[0].mxu0
      %v1530 = vadd.f32 0.0, %v1529
      %v1531 = vpop.f32.mrb[0].mxu0
      %v1532 = vadd.f32 0.0, %v1531
      %v1533 = vpop.f32.mrb[0].mxu0
      %v1534 = vadd.f32 0.0, %v1533
      %v1535 = vpop.f32.mrb[0].mxu0
      %v1536 = vadd.f32 0.0, %v1535
      %1537 = vmatprep.mubr.bf16.mxu0 %v974
      %1538 = vmatmul.mubr.bf16.gmra.mrb[0].mxu0 %v925
      %v1539 = vpop.f32.mrb[0].mxu0
      %v1540 = vadd.f32 0.0, %v1539
      %v1541 = vpop.f32.mrb[0].mxu0
      %v1542 = vadd.f32 0.0, %v1541
      %v1543 = vpop.f32.mrb[0].mxu0
      %v1544 = vadd.f32 0.0, %v1543
      %v1545 = vpop.f32.mrb[0].mxu0
      %v1546 = vadd.f32 0.0, %v1545
      %1547 = vmatprep.mubr.bf16.mxu0 %v977
      %1548 = vmatmul.mubr.bf16.gmra.mrb[0].mxu0 %v928
      %v1549 = vpop.f32.mrb[0].mxu0
      %v1550 = vadd.f32 0.0, %v1549
      %v1551 = vpop.f32.mrb[0].mxu0
      %v1552 = vadd.f32 0.0, %v1551
      %v1553 = vpop.f32.mrb[0].mxu0
      %v1554 = vadd.f32 0.0, %v1553
      %v1555 = vpop.f32.mrb[0].mxu0
      %v1556 = vadd.f32 0.0, %v1555
      %1557 = vmatprep.mubr.bf16.mxu0 %v980
      %1558 = vmatmul.mubr.bf16.gmra.mrb[0].mxu0 %v931
      %v1559 = vpop.f32.mrb[0].mxu0
      %v1560 = vadd.f32 0.0, %v1559
      %v1561 = vpop.f32.mrb[0].mxu0
      %v1562 = vadd.f32 0.0, %v1561
      %v1563 = vpop.f32.mrb[0].mxu0
      %v1564 = vadd.f32 0.0, %v1563
      %v1565 = vpop.f32.mrb[0].mxu0
      %v1566 = vadd.f32 0.0, %v1565
      %1567 = vmatprep.mubr.bf16.mxu0 %v983
      %1568 = vmatmul.mubr.bf16.gmra.mrb[0].mxu0 %v934
      %v1569 = vpop.f32.mrb[0].mxu0
      %v1570 = vadd.f32 0.0, %v1569
      %v1571 = vpop.f32.mrb[0].mxu0
      %v1572 = vadd.f32 0.0, %v1571
      %v1573 = vpop.f32.mrb[0].mxu0
      %v1574 = vadd.f32 0.0, %v1573
      %v1575 = vpop.f32.mrb[0].mxu0
      %v1576 = vadd.f32 0.0, %v1575
      %1577 = vmatprep.mubr.bf16.mxu0 %v986
      %1578 = vmatmul.mubr.bf16.gmra.mrb[0].mxu0 %v937
      %v1579 = vpop.f32.mrb[0].mxu0
      %v1580 = vadd.f32 0.0, %v1579
      %v1581 = vpop.f32.mrb[0].mxu0
      %v1582 = vadd.f32 0.0, %v1581
      %v1583 = vpop.f32.mrb[0].mxu0
      %v1584 = vadd.f32 0.0, %v1583
      %v1585 = vpop.f32.mrb[0].mxu0
      %v1586 = vadd.f32 0.0, %v1585
      %1587 = vmatprep.mubr.bf16.mxu0 %v989
      %1588 = vmatmul.mubr.bf16.gmra.mrb[0].mxu0 %v940
      %v1589 = vpop.f32.mrb[0].mxu0
      %v1590 = vadd.f32 0.0, %v1589
      %v1591 = vpop.f32.mrb[0].mxu0
      %v1592 = vadd.f32 0.0, %v1591
      %v1593 = vpop.f32.mrb[0].mxu0
      %v1594 = vadd.f32 0.0, %v1593
      %v1595 = vpop.f32.mrb[0].mxu0
      %v1596 = vadd.f32 0.0, %v1595
      %1597 = vmatprep.mubr.bf16.mxu0 %v992
      %1598 = vmatmul.mubr.bf16.gmra.mrb[0].mxu0 %v943
      %v1599 = vpop.f32.mrb[0].mxu0
      %v1600 = vadd.f32 0.0, %v1599
      %v1601 = vpop.f32.mrb[0].mxu0
      %v1602 = vadd.f32 0.0, %v1601
      %v1603 = vpop.f32.mrb[0].mxu0
      %v1604 = vadd.f32 0.0, %v1603
      %v1605 = vpop.f32.mrb[0].mxu0
      %v1606 = vadd.f32 0.0, %v1605
      %1607 = vmatprep.mubr.bf16.mxu0 %v995
      %1608 = vmatmul.mubr.bf16.gmra.mrb[0].mxu0 %v946
      %v1609 = vpop.f32.mrb[0].mxu0
      %v1610 = vadd.f32 0.0, %v1609
      %v1611 = vpop.f32.mrb[0].mxu0
      %v1612 = vadd.f32 0.0, %v1611
      %v1613 = vpop.f32.mrb[0].mxu0
      %v1614 = vadd.f32 0.0, %v1613
      %v1615 = vpop.f32.mrb[0].mxu0
      %v1616 = vadd.f32 0.0, %v1615
      %1617 = vmatprep.mubr.bf16.mxu0 %v998
      %1618 = vmatmul.mubr.bf16.gmra.mrb[0].mxu0 %v949
      %v1619 = vpop.f32.mrb[0].mxu0
      %v1620 = vadd.f32 0.0, %v1619
      %v1621 = vpop.f32.mrb[0].mxu0
      %v1622 = vadd.f32 0.0, %v1621
      %v1623 = vpop.f32.mrb[0].mxu0
      %v1624 = vadd.f32 0.0, %v1623
      %v1625 = vpop.f32.mrb[0].mxu0
      %v1626 = vadd.f32 0.0, %v1625
      %1627 = vmatprep.mubr.bf16.mxu0 %v1001
      %1628 = vmatmul.mubr.bf16.gmra.mrb[0].mxu0 %v952
      %v1629 = vpop.f32.mrb[0].mxu0
      %v1630 = vadd.f32 0.0, %v1629
      %v1631 = vpop.f32.mrb[0].mxu0
      %v1632 = vadd.f32 0.0, %v1631
      %v1633 = vpop.f32.mrb[0].mxu0
      %v1634 = vadd.f32 0.0, %v1633
      %v1635 = vpop.f32.mrb[0].mxu0
      %v1636 = vadd.f32 0.0, %v1635
      %1637 = vmatprep.mubr.bf16.mxu0 %v1004
      %1638 = vmatmul.mubr.bf16.gmra.mrb[0].mxu0 %v955
      %v1639 = vpop.f32.mrb[0].mxu0
      %v1640 = vadd.f32 0.0, %v1639
      %v1641 = vpop.f32.mrb[0].mxu0
      %v1642 = vadd.f32 0.0, %v1641
      %v1643 = vpop.f32.mrb[0].mxu0
      %v1644 = vadd.f32 0.0, %v1643
      %v1645 = vpop.f32.mrb[0].mxu0
      %v1646 = vadd.f32 0.0, %v1645
      %1647 = vmatprep.mubr.bf16.mxu0 %v1007
      %1648 = vmatmul.mubr.bf16.gmra.mrb[0].mxu0 %v958
      %v1649 = vpop.f32.mrb[0].mxu0
      %v1650 = vadd.f32 0.0, %v1649
      %v1651 = vpop.f32.mrb[0].mxu0
      %v1652 = vadd.f32 0.0, %v1651
      %v1653 = vpop.f32.mrb[0].mxu0
      %v1654 = vadd.f32 0.0, %v1653
      %v1655 = vpop.f32.mrb[0].mxu0
      %v1656 = vadd.f32 0.0, %v1655
      %1657 = vdwg.mxu0
      %1658 = vmatprep.subr.bf16.mxu0 %v1331
      %1659 = vmatpush1.bf16.msra.mxu0 %v1330
      %1660 = vmatprep.subr.bf16.mxu0 %v1333
      %1661 = vmatpush1.bf16.msra.mxu0 %v1332
      %1662 = vmatprep.subr.bf16.mxu0 %v1335
      %1663 = vmatpush1.bf16.msra.mxu0 %v1334
      %1664 = vmatprep.subr.bf16.mxu0 %v1337
      %1665 = vmatpush1.bf16.msra.mxu0 %v1336
      %1666 = vmatprep.subr.bf16.mxu0 %v1339
      %1667 = vmatpush1.bf16.msra.mxu0 %v1338
      %1668 = vmatprep.subr.bf16.mxu0 %v1341
      %1669 = vmatpush1.bf16.msra.mxu0 %v1340
      %1670 = vmatprep.subr.bf16.mxu0 %v1343
      %1671 = vmatpush1.bf16.msra.mxu0 %v1342
      %1672 = vmatprep.subr.bf16.mxu0 %v1345
      %1673 = vmatpush1.bf16.msra.mxu0 %v1344
      %1674 = vmatprep.subr.bf16.mxu0 %v1347
      %1675 = vmatpush1.bf16.msra.mxu0 %v1346
      %1676 = vmatprep.subr.bf16.mxu0 %v1349
      %1677 = vmatpush1.bf16.msra.mxu0 %v1348
      %1678 = vmatprep.subr.bf16.mxu0 %v1351
      %1679 = vmatpush1.bf16.msra.mxu0 %v1350
      %1680 = vmatprep.subr.bf16.mxu0 %v1353
      %1681 = vmatpush1.bf16.msra.mxu0 %v1352
      %1682 = vmatprep.subr.bf16.mxu0 %v1355
      %1683 = vmatpush1.bf16.msra.mxu0 %v1354
      %1684 = vmatprep.subr.bf16.mxu0 %v1357
      %1685 = vmatpush1.bf16.msra.mxu0 %v1356
      %1686 = vmatprep.subr.bf16.mxu0 0
      %1687 = vmatpush1.bf16.msra.mxu0 0
      %1688 = vmatprep.subr.bf16.mxu0 0
      %1689 = vmatpush1.bf16.msra.mxu0 0
      %1690 = vmatprep.mubr.bf16.mxu0 %v1419
      %1691 = vmatmul.mubr.bf16.gmra.mrb[0].mxu0 %v1011
      %v1692 = vpop.f32.mrb[0].mxu0
      %v1693 = vadd.f32 %v1500, %v1692
      %v1694 = vpop.f32.mrb[0].mxu0
      %v1695 = vadd.f32 %v1502, %v1694
      %v1696 = vpop.f32.mrb[0].mxu0
      %v1697 = vadd.f32 %v1504, %v1696
      %v1698 = vpop.f32.mrb[0].mxu0
      %v1699 = vadd.f32 %v1506, %v1698
      %1700 = vmatprep.mubr.bf16.mxu0 %v1422
      %1701 = vmatmul.mubr.bf16.gmra.mrb[0].mxu0 %v1014
      %v1702 = vpop.f32.mrb[0].mxu0
      %v1703 = vadd.f32 %v1510, %v1702
      %v1704 = vpop.f32.mrb[0].mxu0
      %v1705 = vadd.f32 %v1512, %v1704
      %v1706 = vpop.f32.mrb[0].mxu0
      %v1707 = vadd.f32 %v1514, %v1706
      %v1708 = vpop.f32.mrb[0].mxu0
      %v1709 = vadd.f32 %v1516, %v1708
      %1710 = vmatprep.mubr.bf16.mxu0 %v1425
      %1711 = vmatmul.mubr.bf16.gmra.mrb[0].mxu0 %v1017
      %v1712 = vpop.f32.mrb[0].mxu0
      %v1713 = vadd.f32 %v1520, %v1712
      %v1714 = vpop.f32.mrb[0].mxu0
      %v1715 = vadd.f32 %v1522, %v1714
      %v1716 = vpop.f32.mrb[0].mxu0
      %v1717 = vadd.f32 %v1524, %v1716
      %v1718 = vpop.f32.mrb[0].mxu0
      %v1719 = vadd.f32 %v1526, %v1718
      %1720 = vmatprep.mubr.bf16.mxu0 %v1428
      %1721 = vmatmul.mubr.bf16.gmra.mrb[0].mxu0 %v1020
      %v1722 = vpop.f32.mrb[0].mxu0
      %v1723 = vadd.f32 %v1530, %v1722
      %v1724 = vpop.f32.mrb[0].mxu0
      %v1725 = vadd.f32 %v1532, %v1724
      %v1726 = vpop.f32.mrb[0].mxu0
      %v1727 = vadd.f32 %v1534, %v1726
      %v1728 = vpop.f32.mrb[0].mxu0
      %v1729 = vadd.f32 %v1536, %v1728
      %1730 = vmatprep.mubr.bf16.mxu0 %v1431
      %1731 = vmatmul.mubr.bf16.gmra.mrb[0].mxu0 %v1023
      %v1732 = vpop.f32.mrb[0].mxu0
      %v1733 = vadd.f32 %v1540, %v1732
      %v1734 = vpop.f32.mrb[0].mxu0
      %v1735 = vadd.f32 %v1542, %v1734
      %v1736 = vpop.f32.mrb[0].mxu0
      %v1737 = vadd.f32 %v1544, %v1736
      %v1738 = vpop.f32.mrb[0].mxu0
      %v1739 = vadd.f32 %v1546, %v1738
      %1740 = vmatprep.mubr.bf16.mxu0 %v1434
      %1741 = vmatmul.mubr.bf16.gmra.mrb[0].mxu0 %v1026
      %v1742 = vpop.f32.mrb[0].mxu0
      %v1743 = vadd.f32 %v1550, %v1742
      %v1744 = vpop.f32.mrb[0].mxu0
      %v1745 = vadd.f32 %v1552, %v1744
      %v1746 = vpop.f32.mrb[0].mxu0
      %v1747 = vadd.f32 %v1554, %v1746
      %v1748 = vpop.f32.mrb[0].mxu0
      %v1749 = vadd.f32 %v1556, %v1748
      %1750 = vmatprep.mubr.bf16.mxu0 %v1437
      %1751 = vmatmul.mubr.bf16.gmra.mrb[0].mxu0 %v1029
      %v1752 = vpop.f32.mrb[0].mxu0
      %v1753 = vadd.f32 %v1560, %v1752
      %v1754 = vpop.f32.mrb[0].mxu0
      %v1755 = vadd.f32 %v1562, %v1754
      %v1756 = vpop.f32.mrb[0].mxu0
      %v1757 = vadd.f32 %v1564, %v1756
      %v1758 = vpop.f32.mrb[0].mxu0
      %v1759 = vadd.f32 %v1566, %v1758
      %1760 = vmatprep.mubr.bf16.mxu0 %v1440
      %1761 = vmatmul.mubr.bf16.gmra.mrb[0].mxu0 %v1032
      %v1762 = vpop.f32.mrb[0].mxu0
      %v1763 = vadd.f32 %v1570, %v1762
      %v1764 = vpop.f32.mrb[0].mxu0
      %v1765 = vadd.f32 %v1572, %v1764
      %v1766 = vpop.f32.mrb[0].mxu0
      %v1767 = vadd.f32 %v1574, %v1766
      %v1768 = vpop.f32.mrb[0].mxu0
      %v1769 = vadd.f32 %v1576, %v1768
      %1770 = vmatprep.mubr.bf16.mxu0 %v1443
      %1771 = vmatmul.mubr.bf16.gmra.mrb[0].mxu0 %v1035
      %v1772 = vpop.f32.mrb[0].mxu0
      %v1773 = vadd.f32 %v1580, %v1772
      %v1774 = vpop.f32.mrb[0].mxu0
      %v1775 = vadd.f32 %v1582, %v1774
      %v1776 = vpop.f32.mrb[0].mxu0
      %v1777 = vadd.f32 %v1584, %v1776
      %v1778 = vpop.f32.mrb[0].mxu0
      %v1779 = vadd.f32 %v1586, %v1778
      %1780 = vmatprep.mubr.bf16.mxu0 %v1446
      %1781 = vmatmul.mubr.bf16.gmra.mrb[0].mxu0 %v1038
      %v1782 = vpop.f32.mrb[0].mxu0
      %v1783 = vadd.f32 %v1590, %v1782
      %v1784 = vpop.f32.mrb[0].mxu0
      %v1785 = vadd.f32 %v1592, %v1784
      %v1786 = vpop.f32.mrb[0].mxu0
      %v1787 = vadd.f32 %v1594, %v1786
      %v1788 = vpop.f32.mrb[0].mxu0
      %v1789 = vadd.f32 %v1596, %v1788
      %1790 = vmatprep.mubr.bf16.mxu0 %v1449
      %1791 = vmatmul.mubr.bf16.gmra.mrb[0].mxu0 %v1041
      %v1792 = vpop.f32.mrb[0].mxu0
      %v1793 = vadd.f32 %v1600, %v1792
      %v1794 = vpop.f32.mrb[0].mxu0
      %v1795 = vadd.f32 %v1602, %v1794
      %v1796 = vpop.f32.mrb[0].mxu0
      %v1797 = vadd.f32 %v1604, %v1796
      %v1798 = vpop.f32.mrb[0].mxu0
      %v1799 = vadd.f32 %v1606, %v1798
      %1800 = vmatprep.mubr.bf16.mxu0 %v1452
      %1801 = vmatmul.mubr.bf16.gmra.mrb[0].mxu0 %v1044
      %v1802 = vpop.f32.mrb[0].mxu0
      %v1803 = vadd.f32 %v1610, %v1802
      %v1804 = vpop.f32.mrb[0].mxu0
      %v1805 = vadd.f32 %v1612, %v1804
      %v1806 = vpop.f32.mrb[0].mxu0
      %v1807 = vadd.f32 %v1614, %v1806
      %v1808 = vpop.f32.mrb[0].mxu0
      %v1809 = vadd.f32 %v1616, %v1808
      %1810 = vmatprep.mubr.bf16.mxu0 %v1455
      %1811 = vmatmul.mubr.bf16.gmra.mrb[0].mxu0 %v1047
      %v1812 = vpop.f32.mrb[0].mxu0
      %v1813 = vadd.f32 %v1620, %v1812
      %v1814 = vpop.f32.mrb[0].mxu0
      %v1815 = vadd.f32 %v1622, %v1814
      %v1816 = vpop.f32.mrb[0].mxu0
      %v1817 = vadd.f32 %v1624, %v1816
      %v1818 = vpop.f32.mrb[0].mxu0
      %v1819 = vadd.f32 %v1626, %v1818
      %1820 = vmatprep.mubr.bf16.mxu0 %v1458
      %1821 = vmatmul.mubr.bf16.gmra.mrb[0].mxu0 %v1050
      %v1822 = vpop.f32.mrb[0].mxu0
      %v1823 = vadd.f32 %v1630, %v1822
      %v1824 = vpop.f32.mrb[0].mxu0
      %v1825 = vadd.f32 %v1632, %v1824
      %v1826 = vpop.f32.mrb[0].mxu0
      %v1827 = vadd.f32 %v1634, %v1826
      %v1828 = vpop.f32.mrb[0].mxu0
      %v1829 = vadd.f32 %v1636, %v1828
      %1830 = vmatprep.mubr.bf16.mxu0 %v1461
      %1831 = vmatmul.mubr.bf16.gmra.mrb[0].mxu0 %v1053
      %v1832 = vpop.f32.mrb[0].mxu0
      %v1833 = vadd.f32 %v1640, %v1832
      %v1834 = vpop.f32.mrb[0].mxu0
      %v1835 = vadd.f32 %v1642, %v1834
      %v1836 = vpop.f32.mrb[0].mxu0
      %v1837 = vadd.f32 %v1644, %v1836
      %v1838 = vpop.f32.mrb[0].mxu0
      %v1839 = vadd.f32 %v1646, %v1838
      %1840 = vmatprep.mubr.bf16.mxu0 %v1463
      %1841 = vmatmul.mubr.bf16.gmra.mrb[0].mxu0 %v1056
      %v1842 = vpop.f32.mrb[0].mxu0
      %v1843 = vadd.f32 %v1650, %v1842
      %v1844 = vpop.f32.mrb[0].mxu0
      %v1845 = vadd.f32 %v1652, %v1844
      %v1846 = vpop.f32.mrb[0].mxu0
      %v1847 = vadd.f32 %v1654, %v1846
      %v1848 = vpop.f32.mrb[0].mxu0
      %v1849 = vadd.f32 %v1656, %v1848
      %1850 = vdwg.mxu0
      %1915 = vrot.lane.b32.xlu0 %v1693, 44
      %v1916 = vpop.permute.xlu0 %1915
      %1917 = vrot.lane.b32.xlu0 %v1695, 44
      %v1918 = vpop.permute.xlu0 %1917
      %1919 = vrot.lane.b32.xlu0 %v1697, 44
      %v1920 = vpop.permute.xlu0 %1919
      %1921 = vrot.lane.b32.xlu0 %v1699, 44
      %v1922 = vpop.permute.xlu0 %1921
      %1923 = vrot.lane.b32.xlu0 %v1703, 44
      %v1924 = vpop.permute.xlu0 %1923
      %1925 = vrot.lane.b32.xlu0 %v1705, 44
      %v1926 = vpop.permute.xlu0 %1925
      %1927 = vrot.lane.b32.xlu0 %v1707, 44
      %v1928 = vpop.permute.xlu0 %1927
      %1929 = vrot.lane.b32.xlu0 %v1709, 44
      %v1930 = vpop.permute.xlu0 %1929
      %1931 = vrot.lane.b32.xlu0 %v1713, 44
      %v1932 = vpop.permute.xlu0 %1931
      %1933 = vrot.lane.b32.xlu0 %v1715, 44
      %v1934 = vpop.permute.xlu0 %1933
      %1935 = vrot.lane.b32.xlu0 %v1717, 44
      %v1936 = vpop.permute.xlu0 %1935
      %1937 = vrot.lane.b32.xlu0 %v1719, 44
      %v1938 = vpop.permute.xlu0 %1937
      %1939 = vrot.lane.b32.xlu0 %v1723, 44
      %v1940 = vpop.permute.xlu0 %1939
      %1941 = vrot.lane.b32.xlu0 %v1725, 44
      %v1942 = vpop.permute.xlu0 %1941
      %1943 = vrot.lane.b32.xlu0 %v1727, 44
      %v1944 = vpop.permute.xlu0 %1943
      %1945 = vrot.lane.b32.xlu0 %v1729, 44
      %v1946 = vpop.permute.xlu0 %1945
      %1947 = vrot.lane.b32.xlu0 %v1733, 44
      %v1948 = vpop.permute.xlu0 %1947
      %1949 = vrot.lane.b32.xlu0 %v1735, 44
      %v1950 = vpop.permute.xlu0 %1949
      %1951 = vrot.lane.b32.xlu0 %v1737, 44
      %v1952 = vpop.permute.xlu0 %1951
      %1953 = vrot.lane.b32.xlu0 %v1739, 44
      %v1954 = vpop.permute.xlu0 %1953
      %1955 = vrot.lane.b32.xlu0 %v1743, 44
      %v1956 = vpop.permute.xlu0 %1955
      %1957 = vrot.lane.b32.xlu0 %v1745, 44
      %v1958 = vpop.permute.xlu0 %1957
      %1959 = vrot.lane.b32.xlu0 %v1747, 44
      %v1960 = vpop.permute.xlu0 %1959
      %1961 = vrot.lane.b32.xlu0 %v1749, 44
      %v1962 = vpop.permute.xlu0 %1961
      %1963 = vrot.lane.b32.xlu0 %v1753, 44
      %v1964 = vpop.permute.xlu0 %1963
      %1965 = vrot.lane.b32.xlu0 %v1755, 44
      %v1966 = vpop.permute.xlu0 %1965
      %1967 = vrot.lane.b32.xlu0 %v1757, 44
      %v1968 = vpop.permute.xlu0 %1967
      %1969 = vrot.lane.b32.xlu0 %v1759, 44
      %v1970 = vpop.permute.xlu0 %1969
      %1971 = vrot.lane.b32.xlu0 %v1763, 44
      %v1972 = vpop.permute.xlu0 %1971
      %1973 = vrot.lane.b32.xlu0 %v1765, 44
      %v1974 = vpop.permute.xlu0 %1973
      %1975 = vrot.lane.b32.xlu0 %v1767, 44
      %v1976 = vpop.permute.xlu0 %1975
      %1977 = vrot.lane.b32.xlu0 %v1769, 44
      %v1978 = vpop.permute.xlu0 %1977
      %1979 = vrot.lane.b32.xlu0 %v1773, 44
      %v1980 = vpop.permute.xlu0 %1979
      %1981 = vrot.lane.b32.xlu0 %v1775, 44
      %v1982 = vpop.permute.xlu0 %1981
      %1983 = vrot.lane.b32.xlu0 %v1777, 44
      %v1984 = vpop.permute.xlu0 %1983
      %1985 = vrot.lane.b32.xlu0 %v1779, 44
      %v1986 = vpop.permute.xlu0 %1985
      %1987 = vrot.lane.b32.xlu0 %v1783, 44
      %v1988 = vpop.permute.xlu0 %1987
      %1989 = vrot.lane.b32.xlu0 %v1785, 44
      %v1990 = vpop.permute.xlu0 %1989
      %1991 = vrot.lane.b32.xlu0 %v1787, 44
      %v1992 = vpop.permute.xlu0 %1991
      %1993 = vrot.lane.b32.xlu0 %v1789, 44
      %v1994 = vpop.permute.xlu0 %1993
      %1995 = vrot.lane.b32.xlu0 %v1793, 44
      %v1996 = vpop.permute.xlu0 %1995
      %1997 = vrot.lane.b32.xlu0 %v1795, 44
      %v1998 = vpop.permute.xlu0 %1997
      %1999 = vrot.lane.b32.xlu0 %v1797, 44
      %v2000 = vpop.permute.xlu0 %1999
      %2001 = vrot.lane.b32.xlu0 %v1799, 44
      %v2002 = vpop.permute.xlu0 %2001
      %2003 = vrot.lane.b32.xlu0 %v1803, 44
      %v2004 = vpop.permute.xlu0 %2003
      %2005 = vrot.lane.b32.xlu0 %v1805, 44
      %v2006 = vpop.permute.xlu0 %2005
      %2007 = vrot.lane.b32.xlu0 %v1807, 44
      %v2008 = vpop.permute.xlu0 %2007
      %2009 = vrot.lane.b32.xlu0 %v1809, 44
      %v2010 = vpop.permute.xlu0 %2009
      %2011 = vrot.lane.b32.xlu0 %v1813, 44
      %v2012 = vpop.permute.xlu0 %2011
      %2013 = vrot.lane.b32.xlu0 %v1815, 44
      %v2014 = vpop.permute.xlu0 %2013
      %2015 = vrot.lane.b32.xlu0 %v1817, 44
      %v2016 = vpop.permute.xlu0 %2015
      %2017 = vrot.lane.b32.xlu0 %v1819, 44
      %v2018 = vpop.permute.xlu0 %2017
      %2019 = vrot.lane.b32.xlu0 %v1823, 44
      %v2020 = vpop.permute.xlu0 %2019
      %2021 = vrot.lane.b32.xlu0 %v1825, 44
      %v2022 = vpop.permute.xlu0 %2021
      %2023 = vrot.lane.b32.xlu0 %v1827, 44
      %v2024 = vpop.permute.xlu0 %2023
      %2025 = vrot.lane.b32.xlu0 %v1829, 44
      %v2026 = vpop.permute.xlu0 %2025
      %2027 = vrot.lane.b32.xlu0 %v1833, 44
      %v2028 = vpop.permute.xlu0 %2027
      %2029 = vrot.lane.b32.xlu0 %v1835, 44
      %v2030 = vpop.permute.xlu0 %2029
      %2031 = vrot.lane.b32.xlu0 %v1837, 44
      %v2032 = vpop.permute.xlu0 %2031
      %2033 = vrot.lane.b32.xlu0 %v1839, 44
      %v2034 = vpop.permute.xlu0 %2033
      %2035 = vrot.lane.b32.xlu0 %v1843, 44
      %v2036 = vpop.permute.xlu0 %2035
      %2037 = vrot.lane.b32.xlu0 %v1845, 44
      %v2038 = vpop.permute.xlu0 %2037
      %2039 = vrot.lane.b32.xlu0 %v1847, 44
      %v2040 = vpop.permute.xlu0 %2039
      %2041 = vrot.lane.b32.xlu0 %v1849, 44
      %v2042 = vpop.permute.xlu0 %2041
      %vm2043 = vcmask 359424
      %v2044 = vsel %vm2043, %v1916, %v1918
      %v2045 = vsel %vm2043, %v1920, %v1922
      %v2046 = vsel %vm2043, %v1924, %v1926
      %v2047 = vsel %vm2043, %v1928, %v1930
      %v2048 = vsel %vm2043, %v1932, %v1934
      %v2049 = vsel %vm2043, %v1936, %v1938
      %v2050 = vsel %vm2043, %v1940, %v1942
      %v2051 = vsel %vm2043, %v1944, %v1946
      %v2052 = vsel %vm2043, %v1948, %v1950
      %v2053 = vsel %vm2043, %v1952, %v1954
      %v2054 = vsel %vm2043, %v1956, %v1958
      %v2055 = vsel %vm2043, %v1960, %v1962
      %v2056 = vsel %vm2043, %v1964, %v1966
      %v2057 = vsel %vm2043, %v1968, %v1970
      %v2058 = vsel %vm2043, %v1972, %v1974
      %v2059 = vsel %vm2043, %v1976, %v1978
      %v2060 = vsel %vm2043, %v1980, %v1982
      %v2061 = vsel %vm2043, %v1984, %v1986
      %v2062 = vsel %vm2043, %v1988, %v1990
      %v2063 = vsel %vm2043, %v1992, %v1994
      %v2064 = vsel %vm2043, %v1996, %v1998
      %v2065 = vsel %vm2043, %v2000, %v2002
      %v2066 = vsel %vm2043, %v2004, %v2006
      %v2067 = vsel %vm2043, %v2008, %v2010
      %v2068 = vsel %vm2043, %v2012, %v2014
      %v2069 = vsel %vm2043, %v2016, %v2018
      %v2070 = vsel %vm2043, %v2020, %v2022
      %v2071 = vsel %vm2043, %v2024, %v2026
      %v2072 = vsel %vm2043, %v2028, %v2030
      %v2073 = vsel %vm2043, %v2032, %v2034
      %v2074 = vsel %vm2043, %v2036, %v2038
      %v2075 = vsel %vm2043, %v2040, %v2042
      %v2108 = vmax.f32 %v1693, %v2044
      %v2109 = vmax.f32 %v1697, %v2045
      %v2110 = vmax.f32 %v1703, %v2046
      %v2111 = vmax.f32 %v1707, %v2047
      %v2112 = vmax.f32 %v1713, %v2048
      %v2113 = vmax.f32 %v1717, %v2049
      %v2114 = vmax.f32 %v1723, %v2050
      %v2115 = vmax.f32 %v1727, %v2051
      %v2116 = vmax.f32 %v1733, %v2052
      %v2117 = vmax.f32 %v1737, %v2053
      %v2118 = vmax.f32 %v1743, %v2054
      %v2119 = vmax.f32 %v1747, %v2055
      %v2120 = vmax.f32 %v1753, %v2056
      %v2121 = vmax.f32 %v1757, %v2057
      %v2122 = vmax.f32 %v1763, %v2058
      %v2123 = vmax.f32 %v1767, %v2059
      %v2124 = vmax.f32 %v1773, %v2060
      %v2125 = vmax.f32 %v1777, %v2061
      %v2126 = vmax.f32 %v1783, %v2062
      %v2127 = vmax.f32 %v1787, %v2063
      %v2128 = vmax.f32 %v1793, %v2064
      %v2129 = vmax.f32 %v1797, %v2065
      %v2130 = vmax.f32 %v1803, %v2066
      %v2131 = vmax.f32 %v1807, %v2067
      %v2132 = vmax.f32 %v1813, %v2068
      %v2133 = vmax.f32 %v1817, %v2069
      %v2134 = vmax.f32 %v1823, %v2070
      %v2135 = vmax.f32 %v1827, %v2071
      %v2136 = vmax.f32 %v1833, %v2072
      %v2137 = vmax.f32 %v1837, %v2073
      %v2138 = vmax.f32 %v1843, %v2074
      %v2139 = vmax.f32 %v1847, %v2075
      %v2172 = vrot.slane %v2108, 1
      %v2173 = vrot.slane %v2109, 1
      %v2174 = vsel %vm698, %v2172, %v2173
      %v2175 = vrot.slane %v2110, 1
      %v2176 = vsel %vm698, %v2173, %v2175
      %v2177 = vrot.slane %v2111, 1
      %v2178 = vsel %vm698, %v2175, %v2177
      %v2179 = vrot.slane %v2112, 1
      %v2180 = vsel %vm698, %v2177, %v2179
      %v2181 = vrot.slane %v2113, 1
      %v2182 = vsel %vm698, %v2179, %v2181
      %v2183 = vrot.slane %v2114, 1
      %v2184 = vsel %vm698, %v2181, %v2183
      %v2185 = vrot.slane %v2115, 1
      %v2186 = vsel %vm698, %v2183, %v2185
      %v2187 = vrot.slane %v2116, 1
      %v2188 = vsel %vm698, %v2185, %v2187
      %v2189 = vrot.slane %v2117, 1
      %v2190 = vsel %vm698, %v2187, %v2189
      %v2191 = vrot.slane %v2118, 1
      %v2192 = vsel %vm698, %v2189, %v2191
      %v2193 = vrot.slane %v2119, 1
      %v2194 = vsel %vm698, %v2191, %v2193
      %v2195 = vrot.slane %v2120, 1
      %v2196 = vsel %vm698, %v2193, %v2195
      %v2197 = vrot.slane %v2121, 1
      %v2198 = vsel %vm698, %v2195, %v2197
      %v2199 = vrot.slane %v2122, 1
      %v2200 = vsel %vm698, %v2197, %v2199
      %v2201 = vrot.slane %v2123, 1
      %v2202 = vsel %vm698, %v2199, %v2201
      %v2203 = vrot.slane %v2124, 1
      %v2204 = vsel %vm698, %v2201, %v2203
      %v2205 = vrot.slane %v2125, 1
      %v2206 = vsel %vm698, %v2203, %v2205
      %v2207 = vrot.slane %v2126, 1
      %v2208 = vsel %vm698, %v2205, %v2207
      %v2209 = vrot.slane %v2127, 1
      %v2210 = vsel %vm698, %v2207, %v2209
      %v2211 = vrot.slane %v2128, 1
      %v2212 = vsel %vm698, %v2209, %v2211
      %v2213 = vrot.slane %v2129, 1
      %v2214 = vsel %vm698, %v2211, %v2213
      %v2215 = vrot.slane %v2130, 1
      %v2216 = vsel %vm698, %v2213, %v2215
      %v2217 = vrot.slane %v2131, 1
      %v2218 = vsel %vm698, %v2215, %v2217
      %v2219 = vrot.slane %v2132, 1
      %v2220 = vsel %vm698, %v2217, %v2219
      %v2221 = vrot.slane %v2133, 1
      %v2222 = vsel %vm698, %v2219, %v2221
      %v2223 = vrot.slane %v2134, 1
      %v2224 = vsel %vm698, %v2221, %v2223
      %v2225 = vrot.slane %v2135, 1
      %v2226 = vsel %vm698, %v2223, %v2225
      %v2227 = vrot.slane %v2136, 1
      %v2228 = vsel %vm698, %v2225, %v2227
      %v2229 = vrot.slane %v2137, 1
      %v2230 = vsel %vm698, %v2227, %v2229
      %v2231 = vrot.slane %v2138, 1
      %v2232 = vsel %vm698, %v2229, %v2231
      %v2233 = vrot.slane %v2139, 1
      %v2234 = vsel %vm698, %v2231, %v2233
      %v2268 = vsel %vm698, %v2233, %v2172
      %v2269 = vmax.f32 %v2108, %v2174
      %v2270 = vmax.f32 %v2109, %v2176
      %v2271 = vmax.f32 %v2110, %v2178
      %v2272 = vmax.f32 %v2111, %v2180
      %v2273 = vmax.f32 %v2112, %v2182
      %v2274 = vmax.f32 %v2113, %v2184
      %v2275 = vmax.f32 %v2114, %v2186
      %v2276 = vmax.f32 %v2115, %v2188
      %v2277 = vmax.f32 %v2116, %v2190
      %v2278 = vmax.f32 %v2117, %v2192
      %v2279 = vmax.f32 %v2118, %v2194
      %v2280 = vmax.f32 %v2119, %v2196
      %v2281 = vmax.f32 %v2120, %v2198
      %v2282 = vmax.f32 %v2121, %v2200
      %v2283 = vmax.f32 %v2122, %v2202
      %v2284 = vmax.f32 %v2123, %v2204
      %v2285 = vmax.f32 %v2124, %v2206
      %v2286 = vmax.f32 %v2125, %v2208
      %v2287 = vmax.f32 %v2126, %v2210
      %v2288 = vmax.f32 %v2127, %v2212
      %v2289 = vmax.f32 %v2128, %v2214
      %v2290 = vmax.f32 %v2129, %v2216
      %v2291 = vmax.f32 %v2130, %v2218
      %v2292 = vmax.f32 %v2131, %v2220
      %v2293 = vmax.f32 %v2132, %v2222
      %v2294 = vmax.f32 %v2133, %v2224
      %v2295 = vmax.f32 %v2134, %v2226
      %v2296 = vmax.f32 %v2135, %v2228
      %v2297 = vmax.f32 %v2136, %v2230
      %v2298 = vmax.f32 %v2137, %v2232
      %v2299 = vmax.f32 %v2138, %v2234
      %v2300 = vmax.f32 %v2139, %v2268
      %v2301 = vld [vmem:[%s2] sm:$0x1]
      %v2303 = vlaneseq
      %v2304 = vshrl.u32 %v2303, 7
      %v2305 = vsub.s32 0, %v2304
      %v2306 = vrot.slane %v2301, %v2305
      %v2308 = vadd.f32 %v2269, %v2306
      %v2309 = vadd.f32 %v2270, %v2306
      %v2310 = vadd.f32 %v2271, %v2306
      %v2311 = vadd.f32 %v2272, %v2306
      %v2312 = vadd.f32 %v2273, %v2306
      %v2313 = vadd.f32 %v2274, %v2306
      %v2314 = vadd.f32 %v2275, %v2306
      %v2315 = vadd.f32 %v2276, %v2306
      %v2316 = vadd.f32 %v2277, %v2306
      %v2317 = vadd.f32 %v2278, %v2306
      %v2318 = vadd.f32 %v2279, %v2306
      %v2319 = vadd.f32 %v2280, %v2306
      %v2320 = vadd.f32 %v2281, %v2306
      %v2321 = vadd.f32 %v2282, %v2306
      %v2322 = vadd.f32 %v2283, %v2306
      %v2323 = vadd.f32 %v2284, %v2306
      %v2324 = vadd.f32 %v2285, %v2306
      %v2325 = vadd.f32 %v2286, %v2306
      %v2326 = vadd.f32 %v2287, %v2306
      %v2327 = vadd.f32 %v2288, %v2306
      %v2328 = vadd.f32 %v2289, %v2306
      %v2329 = vadd.f32 %v2290, %v2306
      %v2330 = vadd.f32 %v2291, %v2306
      %v2331 = vadd.f32 %v2292, %v2306
      %v2332 = vadd.f32 %v2293, %v2306
      %v2333 = vadd.f32 %v2294, %v2306
      %v2334 = vadd.f32 %v2295, %v2306
      %v2335 = vadd.f32 %v2296, %v2306
      %v2336 = vadd.f32 %v2297, %v2306
      %v2337 = vadd.f32 %v2298, %v2306
      %v2338 = vadd.f32 %v2299, %v2306
      %v2339 = vadd.f32 %v2300, %v2306
      %v2340 = vmax.f32 %v2308, 0.0
      %v2341 = vmax.f32 %v2309, 0.0
      %v2342 = vmax.f32 %v2310, 0.0
      %v2343 = vmax.f32 %v2311, 0.0
      %v2344 = vmax.f32 %v2312, 0.0
      %v2345 = vmax.f32 %v2313, 0.0
      %v2346 = vmax.f32 %v2314, 0.0
      %v2347 = vmax.f32 %v2315, 0.0
      %v2348 = vmax.f32 %v2316, 0.0
      %v2349 = vmax.f32 %v2317, 0.0
      %v2350 = vmax.f32 %v2318, 0.0
      %v2351 = vmax.f32 %v2319, 0.0
      %v2352 = vmax.f32 %v2320, 0.0
      %v2353 = vmax.f32 %v2321, 0.0
      %v2354 = vmax.f32 %v2322, 0.0
      %v2355 = vmax.f32 %v2323, 0.0
      %v2356 = vmax.f32 %v2324, 0.0
      %v2357 = vmax.f32 %v2325, 0.0
      %v2358 = vmax.f32 %v2326, 0.0
      %v2359 = vmax.f32 %v2327, 0.0
      %v2360 = vmax.f32 %v2328, 0.0
      %v2361 = vmax.f32 %v2329, 0.0
      %v2362 = vmax.f32 %v2330, 0.0
      %v2363 = vmax.f32 %v2331, 0.0
      %v2364 = vmax.f32 %v2332, 0.0
      %v2365 = vmax.f32 %v2333, 0.0
      %v2366 = vmax.f32 %v2334, 0.0
      %v2367 = vmax.f32 %v2335, 0.0
      %v2368 = vmax.f32 %v2336, 0.0
      %v2369 = vmax.f32 %v2337, 0.0
      %v2370 = vmax.f32 %v2338, 0.0
      %v2371 = vmax.f32 %v2339, 0.0
      %v2372 = vpack.c.bf16 %v2341, %v2340
      %v2373 = vpack.c.bf16 %v2343, %v2342
      %v2374 = vpack.c.bf16 %v2345, %v2344
      %v2375 = vpack.c.bf16 %v2347, %v2346
      %v2376 = vpack.c.bf16 %v2349, %v2348
      %v2377 = vpack.c.bf16 %v2351, %v2350
      %v2378 = vpack.c.bf16 %v2353, %v2352
      %v2379 = vpack.c.bf16 %v2355, %v2354
      %v2380 = vpack.c.bf16 %v2357, %v2356
      %v2381 = vpack.c.bf16 %v2359, %v2358
      %v2382 = vpack.c.bf16 %v2361, %v2360
      %v2383 = vpack.c.bf16 %v2363, %v2362
      %v2384 = vpack.c.bf16 %v2365, %v2364
      %v2385 = vpack.c.bf16 %v2367, %v2366
      %v2386 = vpack.c.bf16 %v2369, %v2368
      %v2387 = vpack.c.bf16 %v2371, %v2370
      %v2404 = vrot.slane %v2372, 1
      %v2405 = vrot.slane %v2373, 1
      %v2406 = vsel %vm665, %v2404, %v2405
      %v2407 = vrot.slane %v2374, 1
      %v2408 = vsel %vm665, %v2405, %v2407
      %v2409 = vrot.slane %v2375, 1
      %v2410 = vsel %vm665, %v2407, %v2409
      %v2411 = vrot.slane %v2376, 1
      %v2412 = vsel %vm665, %v2409, %v2411
      %v2413 = vrot.slane %v2377, 1
      %v2414 = vsel %vm665, %v2411, %v2413
      %v2415 = vrot.slane %v2378, 1
      %v2416 = vsel %vm665, %v2413, %v2415
      %v2417 = vrot.slane %v2379, 1
      %v2418 = vsel %vm665, %v2415, %v2417
      %v2419 = vrot.slane %v2380, 1
      %v2420 = vsel %vm665, %v2417, %v2419
      %v2421 = vrot.slane %v2381, 1
      %v2422 = vsel %vm665, %v2419, %v2421
      %v2423 = vrot.slane %v2382, 1
      %v2424 = vsel %vm665, %v2421, %v2423
      %v2425 = vrot.slane %v2383, 1
      %v2426 = vsel %vm665, %v2423, %v2425
      %v2427 = vrot.slane %v2384, 1
      %v2428 = vsel %vm665, %v2425, %v2427
      %v2429 = vrot.slane %v2385, 1
      %v2430 = vsel %vm665, %v2427, %v2429
      %v2431 = vrot.slane %v2386, 1
      %v2432 = vsel %vm665, %v2429, %v2431
      %v2433 = vrot.slane %v2387, 1
      %v2434 = vsel %vm665, %v2431, %v2433
      %v2437 = vsel %vm698, %v2433, %v2404
      %v2438 = vrot.slane %v2372, 2
      %v2439 = vrot.slane %v2373, 2
      %v2440 = vsel %vm775, %v2438, %v2439
      %v2441 = vrot.slane %v2374, 2
      %v2442 = vsel %vm775, %v2439, %v2441
      %v2443 = vrot.slane %v2375, 2
      %v2444 = vsel %vm775, %v2441, %v2443
      %v2445 = vrot.slane %v2376, 2
      %v2446 = vsel %vm775, %v2443, %v2445
      %v2447 = vrot.slane %v2377, 2
      %v2448 = vsel %vm775, %v2445, %v2447
      %v2449 = vrot.slane %v2378, 2
      %v2450 = vsel %vm775, %v2447, %v2449
      %v2451 = vrot.slane %v2379, 2
      %v2452 = vsel %vm775, %v2449, %v2451
      %v2453 = vrot.slane %v2380, 2
      %v2454 = vsel %vm775, %v2451, %v2453
      %v2455 = vrot.slane %v2381, 2
      %v2456 = vsel %vm775, %v2453, %v2455
      %v2457 = vrot.slane %v2382, 2
      %v2458 = vsel %vm775, %v2455, %v2457
      %v2459 = vrot.slane %v2383, 2
      %v2460 = vsel %vm775, %v2457, %v2459
      %v2461 = vrot.slane %v2384, 2
      %v2462 = vsel %vm775, %v2459, %v2461
      %v2463 = vrot.slane %v2385, 2
      %v2464 = vsel %vm775, %v2461, %v2463
      %v2465 = vrot.slane %v2386, 2
      %v2466 = vsel %vm775, %v2463, %v2465
      %v2467 = vrot.slane %v2387, 2
      %v2468 = vsel %vm775, %v2465, %v2467
      %v2471 = vsel %vm808, %v2467, %v2438
      %vm2472 = vcmask 1044480
      %v2473 = vrot.slane %v2372, 3
      %v2474 = vrot.slane %v2373, 3
      %v2475 = vsel %vm2472, %v2473, %v2474
      %v2476 = vrot.slane %v2374, 3
      %v2477 = vsel %vm2472, %v2474, %v2476
      %v2478 = vrot.slane %v2375, 3
      %v2479 = vsel %vm2472, %v2476, %v2478
      %v2480 = vrot.slane %v2376, 3
      %v2481 = vsel %vm2472, %v2478, %v2480
      %v2482 = vrot.slane %v2377, 3
      %v2483 = vsel %vm2472, %v2480, %v2482
      %v2484 = vrot.slane %v2378, 3
      %v2485 = vsel %vm2472, %v2482, %v2484
      %v2486 = vrot.slane %v2379, 3
      %v2487 = vsel %vm2472, %v2484, %v2486
      %v2488 = vrot.slane %v2380, 3
      %v2489 = vsel %vm2472, %v2486, %v2488
      %v2490 = vrot.slane %v2381, 3
      %v2491 = vsel %vm2472, %v2488, %v2490
      %v2492 = vrot.slane %v2382, 3
      %v2493 = vsel %vm2472, %v2490, %v2492
      %v2494 = vrot.slane %v2383, 3
      %v2495 = vsel %vm2472, %v2492, %v2494
      %v2496 = vrot.slane %v2384, 3
      %v2497 = vsel %vm2472, %v2494, %v2496
      %v2498 = vrot.slane %v2385, 3
      %v2499 = vsel %vm2472, %v2496, %v2498
      %v2500 = vrot.slane %v2386, 3
      %v2501 = vsel %vm2472, %v2498, %v2500
      %v2502 = vrot.slane %v2387, 3
      %v2503 = vsel %vm2472, %v2500, %v2502
      %vm2504 = vcmask 1044480
      %v2507 = vsel %vm2504, %v2502, %v2473
      %vm2508 = vcmask 1043456
      %v2509 = vrot.slane %v2372, 4
      %v2510 = vrot.slane %v2373, 4
      %v2511 = vsel %vm2508, %v2509, %v2510
      %v2512 = vrot.slane %v2374, 4
      %v2513 = vsel %vm2508, %v2510, %v2512
      %v2514 = vrot.slane %v2375, 4
      %v2515 = vsel %vm2508, %v2512, %v2514
      %v2516 = vrot.slane %v2376, 4
      %v2517 = vsel %vm2508, %v2514, %v2516
      %v2518 = vrot.slane %v2377, 4
      %v2519 = vsel %vm2508, %v2516, %v2518
      %v2520 = vrot.slane %v2378, 4
      %v2521 = vsel %vm2508, %v2518, %v2520
      %v2522 = vrot.slane %v2379, 4
      %v2523 = vsel %vm2508, %v2520, %v2522
      %v2524 = vrot.slane %v2380, 4
      %v2525 = vsel %vm2508, %v2522, %v2524
      %v2526 = vrot.slane %v2381, 4
      %v2527 = vsel %vm2508, %v2524, %v2526
      %v2528 = vrot.slane %v2382, 4
      %v2529 = vsel %vm2508, %v2526, %v2528
      %v2530 = vrot.slane %v2383, 4
      %v2531 = vsel %vm2508, %v2528, %v2530
      %v2532 = vrot.slane %v2384, 4
      %v2533 = vsel %vm2508, %v2530, %v2532
      %v2534 = vrot.slane %v2385, 4
      %v2535 = vsel %vm2508, %v2532, %v2534
      %v2536 = vrot.slane %v2386, 4
      %v2537 = vsel %vm2508, %v2534, %v2536
      %v2538 = vrot.slane %v2387, 4
      %v2539 = vsel %vm2508, %v2536, %v2538
      %vm2540 = vcmask 1043456
      %v2543 = vsel %vm2540, %v2538, %v2509
      %2545 = vrot.lane.b32.xlu0 %v2406, 84
      %v2546 = vpop.permute.xlu0 %2545
      %2547 = vrot.lane.b32.xlu0 %v2408, 84
      %v2548 = vpop.permute.xlu0 %2547
      %2549 = vrot.lane.b32.xlu0 %v2410, 84
      %v2550 = vpop.permute.xlu0 %2549
      %2551 = vrot.lane.b32.xlu0 %v2412, 84
      %v2552 = vpop.permute.xlu0 %2551
      %2553 = vrot.lane.b32.xlu0 %v2414, 84
      %v2554 = vpop.permute.xlu0 %2553
      %2555 = vrot.lane.b32.xlu0 %v2416, 84
      %v2556 = vpop.permute.xlu0 %2555
      %2557 = vrot.lane.b32.xlu0 %v2418, 84
      %v2558 = vpop.permute.xlu0 %2557
      %2559 = vrot.lane.b32.xlu0 %v2420, 84
      %v2560 = vpop.permute.xlu0 %2559
      %2561 = vrot.lane.b32.xlu0 %v2422, 84
      %v2562 = vpop.permute.xlu0 %2561
      %2563 = vrot.lane.b32.xlu0 %v2424, 84
      %v2564 = vpop.permute.xlu0 %2563
      %2565 = vrot.lane.b32.xlu0 %v2426, 84
      %v2566 = vpop.permute.xlu0 %2565
      %2567 = vrot.lane.b32.xlu0 %v2428, 84
      %v2568 = vpop.permute.xlu0 %2567
      %2569 = vrot.lane.b32.xlu0 %v2430, 84
      %v2570 = vpop.permute.xlu0 %2569
      %2571 = vrot.lane.b32.xlu0 %v2432, 84
      %v2572 = vpop.permute.xlu0 %2571
      %2573 = vrot.lane.b32.xlu0 %v2434, 84
      %v2574 = vpop.permute.xlu0 %2573
      %2575 = vrot.lane.b32.xlu0 %v2437, 84
      %v2576 = vpop.permute.xlu0 %2575
      %2578 = vrot.lane.b32.xlu0 %v2440, 40
      %v2579 = vpop.permute.xlu0 %2578
      %2580 = vrot.lane.b32.xlu0 %v2442, 40
      %v2581 = vpop.permute.xlu0 %2580
      %2582 = vrot.lane.b32.xlu0 %v2444, 40
      %v2583 = vpop.permute.xlu0 %2582
      %2584 = vrot.lane.b32.xlu0 %v2446, 40
      %v2585 = vpop.permute.xlu0 %2584
      %2586 = vrot.lane.b32.xlu0 %v2448, 40
      %v2587 = vpop.permute.xlu0 %2586
      %2588 = vrot.lane.b32.xlu0 %v2450, 40
      %v2589 = vpop.permute.xlu0 %2588
      %2590 = vrot.lane.b32.xlu0 %v2452, 40
      %v2591 = vpop.permute.xlu0 %2590
      %2592 = vrot.lane.b32.xlu0 %v2454, 40
      %v2593 = vpop.permute.xlu0 %2592
      %2594 = vrot.lane.b32.xlu0 %v2456, 40
      %v2595 = vpop.permute.xlu0 %2594
      %2596 = vrot.lane.b32.xlu0 %v2458, 40
      %v2597 = vpop.permute.xlu0 %2596
      %2598 = vrot.lane.b32.xlu0 %v2460, 40
      %v2599 = vpop.permute.xlu0 %2598
      %2600 = vrot.lane.b32.xlu0 %v2462, 40
      %v2601 = vpop.permute.xlu0 %2600
      %2602 = vrot.lane.b32.xlu0 %v2464, 40
      %v2603 = vpop.permute.xlu0 %2602
      %2604 = vrot.lane.b32.xlu0 %v2466, 40
      %v2605 = vpop.permute.xlu0 %2604
      %2606 = vrot.lane.b32.xlu0 %v2468, 40
      %v2607 = vpop.permute.xlu0 %2606
      %2608 = vrot.lane.b32.xlu0 %v2471, 40
      %v2609 = vpop.permute.xlu0 %2608
      %2611 = vrot.lane.b32.xlu0 %v2475, 124
      %v2612 = vpop.permute.xlu0 %2611
      %2613 = vrot.lane.b32.xlu0 %v2477, 124
      %v2614 = vpop.permute.xlu0 %2613
      %2615 = vrot.lane.b32.xlu0 %v2479, 124
      %v2616 = vpop.permute.xlu0 %2615
      %2617 = vrot.lane.b32.xlu0 %v2481, 124
      %v2618 = vpop.permute.xlu0 %2617
      %2619 = vrot.lane.b32.xlu0 %v2483, 124
      %v2620 = vpop.permute.xlu0 %2619
      %2621 = vrot.lane.b32.xlu0 %v2485, 124
      %v2622 = vpop.permute.xlu0 %2621
      %2623 = vrot.lane.b32.xlu0 %v2487, 124
      %v2624 = vpop.permute.xlu0 %2623
      %2625 = vrot.lane.b32.xlu0 %v2489, 124
      %v2626 = vpop.permute.xlu0 %2625
      %2627 = vrot.lane.b32.xlu0 %v2491, 124
      %v2628 = vpop.permute.xlu0 %2627
      %2629 = vrot.lane.b32.xlu0 %v2493, 124
      %v2630 = vpop.permute.xlu0 %2629
      %2631 = vrot.lane.b32.xlu0 %v2495, 124
      %v2632 = vpop.permute.xlu0 %2631
      %2633 = vrot.lane.b32.xlu0 %v2497, 124
      %v2634 = vpop.permute.xlu0 %2633
      %2635 = vrot.lane.b32.xlu0 %v2499, 124
      %v2636 = vpop.permute.xlu0 %2635
      %2637 = vrot.lane.b32.xlu0 %v2501, 124
      %v2638 = vpop.permute.xlu0 %2637
      %2639 = vrot.lane.b32.xlu0 %v2503, 124
      %v2640 = vpop.permute.xlu0 %2639
      %2641 = vrot.lane.b32.xlu0 %v2507, 124
      %v2642 = vpop.permute.xlu0 %2641
      %2644 = vrot.lane.b32.xlu0 %v2511, 80
      %v2645 = vpop.permute.xlu0 %2644
      %2646 = vrot.lane.b32.xlu0 %v2513, 80
      %v2647 = vpop.permute.xlu0 %2646
      %2648 = vrot.lane.b32.xlu0 %v2515, 80
      %v2649 = vpop.permute.xlu0 %2648
      %2650 = vrot.lane.b32.xlu0 %v2517, 80
      %v2651 = vpop.permute.xlu0 %2650
      %2652 = vrot.lane.b32.xlu0 %v2519, 80
      %v2653 = vpop.permute.xlu0 %2652
      %2654 = vrot.lane.b32.xlu0 %v2521, 80
      %v2655 = vpop.permute.xlu0 %2654
      %2656 = vrot.lane.b32.xlu0 %v2523, 80
      %v2657 = vpop.permute.xlu0 %2656
      %2658 = vrot.lane.b32.xlu0 %v2525, 80
      %v2659 = vpop.permute.xlu0 %2658
      %2660 = vrot.lane.b32.xlu0 %v2527, 80
      %v2661 = vpop.permute.xlu0 %2660
      %2662 = vrot.lane.b32.xlu0 %v2529, 80
      %v2663 = vpop.permute.xlu0 %2662
      %2664 = vrot.lane.b32.xlu0 %v2531, 80
      %v2665 = vpop.permute.xlu0 %2664
      %2666 = vrot.lane.b32.xlu0 %v2533, 80
      %v2667 = vpop.permute.xlu0 %2666
      %2668 = vrot.lane.b32.xlu0 %v2535, 80
      %v2669 = vpop.permute.xlu0 %2668
      %2670 = vrot.lane.b32.xlu0 %v2537, 80
      %v2671 = vpop.permute.xlu0 %2670
      %2672 = vrot.lane.b32.xlu0 %v2539, 80
      %v2673 = vpop.permute.xlu0 %2672
      %2674 = vrot.lane.b32.xlu0 %v2543, 80
      %v2675 = vpop.permute.xlu0 %2674
      %vm2676 = vcmask 687104
      %v2679 = vsel %vm2676, %v2372, %v2546
      %v2683 = vsel %vm2676, %v2373, %v2548
      %v2687 = vsel %vm2676, %v2374, %v2550
      %v2691 = vsel %vm2676, %v2375, %v2552
      %v2695 = vsel %vm2676, %v2376, %v2554
      %v2699 = vsel %vm2676, %v2377, %v2556
      %v2703 = vsel %vm2676, %v2378, %v2558
      %v2707 = vsel %vm2676, %v2379, %v2560
      %v2711 = vsel %vm2676, %v2380, %v2562
      %v2715 = vsel %vm2676, %v2381, %v2564
      %v2719 = vsel %vm2676, %v2382, %v2566
      %v2723 = vsel %vm2676, %v2383, %v2568
      %v2727 = vsel %vm2676, %v2384, %v2570
      %v2731 = vsel %vm2676, %v2385, %v2572
      %v2735 = vsel %vm2676, %v2386, %v2574
      %v2739 = vsel %vm2676, %v2387, %v2576
      %vm2741 = vcmask 326656
      %v2743 = vsel %vm2741, %v2546, %v2579
      %v2745 = vsel %vm2741, %v2548, %v2581
      %v2747 = vsel %vm2741, %v2550, %v2583
      %v2749 = vsel %vm2741, %v2552, %v2585
      %v2751 = vsel %vm2741, %v2554, %v2587
      %v2753 = vsel %vm2741, %v2556, %v2589
      %v2755 = vsel %vm2741, %v2558, %v2591
      %v2757 = vsel %vm2741, %v2560, %v2593
      %v2759 = vsel %vm2741, %v2562, %v2595
      %v2761 = vsel %vm2741, %v2564, %v2597
      %v2763 = vsel %vm2741, %v2566, %v2599
      %v2765 = vsel %vm2741, %v2568, %v2601
      %v2767 = vsel %vm2741, %v2570, %v2603
      %v2769 = vsel %vm2741, %v2572, %v2605
      %v2771 = vsel %vm2741, %v2574, %v2607
      %v2773 = vsel %vm2741, %v2576, %v2609
      %vm2774 = vcmask 1014784
      %v2776 = vsel %vm2774, %v2743, %v2612
      %v2779 = vsel %vm2774, %v2745, %v2614
      %v2782 = vsel %vm2774, %v2747, %v2616
      %v2785 = vsel %vm2774, %v2749, %v2618
      %v2788 = vsel %vm2774, %v2751, %v2620
      %v2791 = vsel %vm2774, %v2753, %v2622
      %v2794 = vsel %vm2774, %v2755, %v2624
      %v2797 = vsel %vm2774, %v2757, %v2626
      %v2800 = vsel %vm2774, %v2759, %v2628
      %v2803 = vsel %vm2774, %v2761, %v2630
      %v2806 = vsel %vm2774, %v2763, %v2632
      %v2809 = vsel %vm2774, %v2765, %v2634
      %v2812 = vsel %vm2774, %v2767, %v2636
      %v2815 = vsel %vm2774, %v2769, %v2638
      %v2818 = vsel %vm2774, %v2771, %v2640
      %v2821 = vsel %vm2774, %v2773, %v2642
      %vm2823 = vcmask 654336
      %v2825 = vsel %vm2823, %v2612, %v2645
      %v2828 = vsel %vm2823, %v2614, %v2647
      %v2831 = vsel %vm2823, %v2616, %v2649
      %v2834 = vsel %vm2823, %v2618, %v2651
      %v2837 = vsel %vm2823, %v2620, %v2653
      %v2840 = vsel %vm2823, %v2622, %v2655
      %v2843 = vsel %vm2823, %v2624, %v2657
      %v2846 = vsel %vm2823, %v2626, %v2659
      %v2849 = vsel %vm2823, %v2628, %v2661
      %v2852 = vsel %vm2823, %v2630, %v2663
      %v2855 = vsel %vm2823, %v2632, %v2665
      %v2858 = vsel %vm2823, %v2634, %v2667
      %v2861 = vsel %vm2823, %v2636, %v2669
      %v2864 = vsel %vm2823, %v2638, %v2671
      %v2867 = vsel %vm2823, %v2640, %v2673
      %v2870 = vsel %vm2823, %v2642, %v2675
      %v2872 = vld [vmem:[%s3] sm:$0xff]
      %v2873 = vld [vmem:[%s3 + $0x8] sm:$0xff]
      %v2874 = vld [vmem:[%s3 + $0x10] sm:$0xff]
      %v2875 = vld [vmem:[%s3 + $0x18] sm:$0xff]
      %v2876 = vld [vmem:[%s3 + $0x20] sm:$0xff]
      %v2877 = vld [vmem:[%s3 + $0x28] sm:$0xff]
      %v2878 = vld [vmem:[%s3 + $0x30] sm:$0xff]
      %v2879 = vld [vmem:[%s3 + $0x38] sm:$0xff]
      %v2880 = vld [vmem:[%s3 + $0x40] sm:$0xff]
      %v2881 = vld [vmem:[%s3 + $0x48] sm:$0xff]
      %v2882 = vld [vmem:[%s3 + $0x50] sm:$0xff]
      %v2883 = vld [vmem:[%s3 + $0x58] sm:$0xff]
      %v2884 = vld [vmem:[%s3 + $0x60] sm:$0xff]
      %v2885 = vld [vmem:[%s3 + $0x68] sm:$0xff]
      %v2886 = vld [vmem:[%s3 + $0x70] sm:$0xff]
      %v2887 = vld [vmem:[%s3 + $0x78] sm:$0xff]
      %v2888 = vld [vmem:[%s3 + $0x80] sm:$0xff]
      %v2889 = vld [vmem:[%s3 + $0x88] sm:$0xff]
      %v2890 = vld [vmem:[%s3 + $0x90] sm:$0xff]
      %v2891 = vld [vmem:[%s3 + $0x98] sm:$0xff]
      %v2892 = vld [vmem:[%s3 + $0xa0] sm:$0xff]
      %v2893 = vld [vmem:[%s3 + $0xa8] sm:$0xff]
      %v2894 = vld [vmem:[%s3 + $0xb0] sm:$0xff]
      %v2895 = vld [vmem:[%s3 + $0xb8] sm:$0xff]
      %v2896 = vld [vmem:[%s3 + $0xc0] sm:$0xff]
      %v2897 = vld [vmem:[%s3 + $0xc8] sm:$0xff]
      %v2898 = vld [vmem:[%s3 + $0xd0] sm:$0xff]
      %v2899 = vld [vmem:[%s3 + $0xd8] sm:$0xff]
      %v2900 = vld [vmem:[%s3 + $0xe0] sm:$0xff]
      %v2901 = vld [vmem:[%s3 + $0xe8] sm:$0xff]
      %v2902 = vld [vmem:[%s3 + $0xf0] sm:$0xff]
      %v2903 = vld [vmem:[%s3 + $0xf8] sm:$0xff]
      %v2904 = vld [vmem:[%s3 + $0x100] sm:$0xff]
      %v2905 = vld [vmem:[%s3 + $0x108] sm:$0xff]
      %v2906 = vld [vmem:[%s3 + $0x110] sm:$0xff]
      %v2907 = vld [vmem:[%s3 + $0x118] sm:$0xff]
      %v2908 = vld [vmem:[%s3 + $0x120] sm:$0xff]
      %v2909 = vld [vmem:[%s3 + $0x128] sm:$0xff]
      %v2910 = vld [vmem:[%s3 + $0x130] sm:$0xff]
      %v2911 = vld [vmem:[%s3 + $0x138] sm:$0xff]
      %v2912 = vld [vmem:[%s3 + $0x140] sm:$0xff]
      %v2913 = vld [vmem:[%s3 + $0x148] sm:$0xff]
      %v2914 = vld [vmem:[%s3 + $0x150] sm:$0xff]
      %v2915 = vld [vmem:[%s3 + $0x158] sm:$0xff]
      %v2916 = vld [vmem:[%s3 + $0x160] sm:$0xff]
      %v2917 = vld [vmem:[%s3 + $0x168] sm:$0xff]
      %v2918 = vld [vmem:[%s3 + $0x170] sm:$0xff]
      %v2919 = vld [vmem:[%s3 + $0x178] sm:$0xff]
      %v2920 = vld [vmem:[%s3 + $0x180] sm:$0xff]
      %v2921 = vld [vmem:[%s3 + $0x188] sm:$0xff]
      %v2922 = vld [vmem:[%s3 + $0x190] sm:$0xff]
      %v2923 = vld [vmem:[%s3 + $0x198] sm:$0xff]
      %v2924 = vld [vmem:[%s3 + $0x1a0] sm:$0x33]
      %v2978 = vunpack.c.l.b16 %v2872
      %v2979 = vunpack.c.h.b16 %v2872
      %v2980 = vunpack.c.l.b16 %v2873
      %v2981 = vunpack.c.h.b16 %v2873
      %v2982 = vunpack.c.l.b16 %v2874
      %v2983 = vunpack.c.h.b16 %v2874
      %v2984 = vunpack.c.l.b16 %v2875
      %v2985 = vunpack.c.h.b16 %v2875
      %v2986 = vunpack.c.l.b16 %v2876
      %v2987 = vunpack.c.h.b16 %v2876
      %v2988 = vunpack.c.l.b16 %v2877
      %v2989 = vunpack.c.h.b16 %v2877
      %v2990 = vunpack.c.l.b16 %v2878
      %v2991 = vunpack.c.h.b16 %v2878
      %v2992 = vunpack.c.l.b16 %v2879
      %v2993 = vunpack.c.h.b16 %v2879
      %v2994 = vunpack.c.l.b16 %v2880
      %v2995 = vunpack.c.h.b16 %v2880
      %v2996 = vunpack.c.l.b16 %v2881
      %v2997 = vunpack.c.h.b16 %v2881
      %v2998 = vunpack.c.l.b16 %v2882
      %v2999 = vunpack.c.h.b16 %v2882
      %v3000 = vunpack.c.l.b16 %v2883
      %v3001 = vunpack.c.h.b16 %v2883
      %v3002 = vunpack.c.l.b16 %v2884
      %v3003 = vunpack.c.h.b16 %v2884
      %v3004 = vunpack.c.l.b16 %v2885
      %v3005 = vunpack.c.h.b16 %v2885
      %v3006 = vunpack.c.l.b16 %v2886
      %v3007 = vunpack.c.h.b16 %v2886
      %v3008 = vunpack.c.l.b16 %v2887
      %v3009 = vunpack.c.h.b16 %v2887
      %v3010 = vunpack.c.l.b16 %v2888
      %v3011 = vunpack.c.h.b16 %v2888
      %v3012 = vunpack.c.l.b16 %v2889
      %v3013 = vunpack.c.h.b16 %v2889
      %v3014 = vunpack.c.l.b16 %v2890
      %v3015 = vunpack.c.h.b16 %v2890
      %v3016 = vunpack.c.l.b16 %v2891
      %v3017 = vunpack.c.h.b16 %v2891
      %v3018 = vunpack.c.l.b16 %v2892
      %v3019 = vunpack.c.h.b16 %v2892
      %v3020 = vunpack.c.l.b16 %v2893
      %v3021 = vunpack.c.h.b16 %v2893
      %v3022 = vunpack.c.l.b16 %v2894
      %v3023 = vunpack.c.h.b16 %v2894
      %v3024 = vunpack.c.l.b16 %v2895
      %v3025 = vunpack.c.h.b16 %v2895
      %v3026 = vunpack.c.l.b16 %v2896
      %v3027 = vunpack.c.h.b16 %v2896
      %v3028 = vunpack.c.l.b16 %v2897
      %v3029 = vunpack.c.h.b16 %v2897
      %v3030 = vunpack.c.l.b16 %v2898
      %v3031 = vunpack.c.h.b16 %v2898
      %v3032 = vunpack.c.l.b16 %v2899
      %v3033 = vunpack.c.h.b16 %v2899
      %v3034 = vunpack.c.l.b16 %v2900
      %v3035 = vunpack.c.h.b16 %v2900
      %v3036 = vunpack.c.l.b16 %v2901
      %v3037 = vunpack.c.h.b16 %v2901
      %v3038 = vunpack.c.l.b16 %v2902
      %v3039 = vunpack.c.h.b16 %v2902
      %v3040 = vunpack.c.l.b16 %v2903
      %v3041 = vunpack.c.h.b16 %v2903
      %v3042 = vunpack.c.l.b16 %v2904
      %v3043 = vunpack.c.h.b16 %v2904
      %v3044 = vunpack.c.l.b16 %v2905
      %v3045 = vunpack.c.h.b16 %v2905
      %v3046 = vunpack.c.l.b16 %v2906
      %v3047 = vunpack.c.h.b16 %v2906
      %v3048 = vunpack.c.l.b16 %v2907
      %v3049 = vunpack.c.h.b16 %v2907
      %v3050 = vunpack.c.l.b16 %v2908
      %v3051 = vunpack.c.h.b16 %v2908
      %v3052 = vunpack.c.l.b16 %v2909
      %v3053 = vunpack.c.h.b16 %v2909
      %v3054 = vunpack.c.l.b16 %v2910
      %v3055 = vunpack.c.h.b16 %v2910
      %v3056 = vunpack.c.l.b16 %v2911
      %v3057 = vunpack.c.h.b16 %v2911
      %v3058 = vunpack.c.l.b16 %v2912
      %v3059 = vunpack.c.h.b16 %v2912
      %v3060 = vunpack.c.l.b16 %v2913
      %v3061 = vunpack.c.h.b16 %v2913
      %v3062 = vunpack.c.l.b16 %v2914
      %v3063 = vunpack.c.h.b16 %v2914
      %v3064 = vunpack.c.l.b16 %v2915
      %v3065 = vunpack.c.h.b16 %v2915
      %v3066 = vunpack.c.l.b16 %v2916
      %v3067 = vunpack.c.h.b16 %v2916
      %v3068 = vunpack.c.l.b16 %v2917
      %v3069 = vunpack.c.h.b16 %v2917
      %v3070 = vunpack.c.l.b16 %v2918
      %v3071 = vunpack.c.h.b16 %v2918
      %v3072 = vunpack.c.l.b16 %v2919
      %v3073 = vunpack.c.h.b16 %v2919
      %v3074 = vunpack.c.l.b16 %v2920
      %v3075 = vunpack.c.h.b16 %v2920
      %v3076 = vunpack.c.l.b16 %v2921
      %v3077 = vunpack.c.h.b16 %v2921
      %v3078 = vunpack.c.l.b16 %v2922
      %v3079 = vunpack.c.h.b16 %v2922
      %v3080 = vunpack.c.l.b16 %v2923
      %v3081 = vunpack.c.h.b16 %v2923
      %v3082 = vunpack.c.l.b16 %v2924
      %v3083 = vunpack.c.h.b16 %v2924
      %v3084 = vpack.c.b16 %v2980, %v2978
      %v3085 = vpack.c.b16 %v2981, %v2979
      %v3086 = vpack.c.b16 %v2984, %v2982
      %v3087 = vpack.c.b16 %v2985, %v2983
      %v3088 = vpack.c.b16 %v2988, %v2986
      %v3089 = vpack.c.b16 %v2989, %v2987
      %v3090 = vpack.c.b16 %v2992, %v2990
      %v3091 = vpack.c.b16 %v2993, %v2991
      %v3092 = vpack.c.b16 %v2996, %v2994
      %v3093 = vpack.c.b16 %v2997, %v2995
      %v3094 = vpack.c.b16 %v3000, %v2998
      %v3095 = vpack.c.b16 %v3001, %v2999
      %v3096 = vpack.c.b16 %v3004, %v3002
      %v3097 = vpack.c.b16 %v3005, %v3003
      %v3098 = vpack.c.b16 %v3008, %v3006
      %v3099 = vpack.c.b16 %v3009, %v3007
      %v3100 = vpack.c.b16 %v3012, %v3010
      %v3101 = vpack.c.b16 %v3013, %v3011
      %v3102 = vpack.c.b16 %v3016, %v3014
      %v3103 = vpack.c.b16 %v3017, %v3015
      %v3104 = vpack.c.b16 %v3020, %v3018
      %v3105 = vpack.c.b16 %v3021, %v3019
      %v3106 = vpack.c.b16 %v3024, %v3022
      %v3107 = vpack.c.b16 %v3025, %v3023
      %v3108 = vpack.c.b16 %v3028, %v3026
      %v3109 = vpack.c.b16 %v3029, %v3027
      %v3110 = vpack.c.b16 %v3032, %v3030
      %v3111 = vpack.c.b16 %v3033, %v3031
      %v3112 = vpack.c.b16 %v3036, %v3034
      %v3113 = vpack.c.b16 %v3037, %v3035
      %v3114 = vpack.c.b16 %v3040, %v3038
      %v3115 = vpack.c.b16 %v3041, %v3039
      %v3116 = vpack.c.b16 %v3044, %v3042
      %v3117 = vpack.c.b16 %v3045, %v3043
      %v3118 = vpack.c.b16 %v3048, %v3046
      %v3119 = vpack.c.b16 %v3049, %v3047
      %v3120 = vpack.c.b16 %v3052, %v3050
      %v3121 = vpack.c.b16 %v3053, %v3051
      %v3122 = vpack.c.b16 %v3056, %v3054
      %v3123 = vpack.c.b16 %v3057, %v3055
      %v3124 = vpack.c.b16 %v3060, %v3058
      %v3125 = vpack.c.b16 %v3061, %v3059
      %v3126 = vpack.c.b16 %v3064, %v3062
      %v3127 = vpack.c.b16 %v3065, %v3063
      %v3128 = vpack.c.b16 %v3068, %v3066
      %v3129 = vpack.c.b16 %v3069, %v3067
      %v3130 = vpack.c.b16 %v3072, %v3070
      %v3131 = vpack.c.b16 %v3073, %v3071
      %v3132 = vpack.c.b16 %v3076, %v3074
      %v3133 = vpack.c.b16 %v3077, %v3075
      %v3134 = vpack.c.b16 %v3080, %v3078
      %v3135 = vpack.c.b16 %v3081, %v3079
      %v3136 = vpack.c.b16 %v3082, %v3082
      %v3137 = vpack.c.b16 %v3083, %v3083
      %vm3190 = vcmask 293888
      %v3191 = vsel %vm3190, %v2645, 0
      %v3193 = vsel %vm3190, %v2647, 0
      %v3195 = vsel %vm3190, %v2649, 0
      %v3197 = vsel %vm3190, %v2651, 0
      %v3199 = vsel %vm3190, %v2653, 0
      %v3201 = vsel %vm3190, %v2655, 0
      %v3203 = vsel %vm3190, %v2657, 0
      %v3205 = vsel %vm3190, %v2659, 0
      %v3207 = vsel %vm3190, %v2661, 0
      %v3209 = vsel %vm3190, %v2663, 0
      %v3211 = vsel %vm3190, %v2665, 0
      %v3213 = vsel %vm3190, %v2667, 0
      %v3215 = vsel %vm3190, %v2669, 0
      %v3217 = vsel %vm3190, %v2671, 0
      %v3219 = vsel %vm3190, %v2673, 0
      %v3221 = vsel %vm3190, %v2675, 0
      %vm3223 = vcmask 1041408
      %v3225 = vsel %vm3223, %v3136, 0
      %v3228 = vsel %vm3223, %v3137, 0
      %3230 = vmatprep.subr.bf16.mxu0 %v3085
      %3231 = vmatpush1.bf16.msra.mxu0 %v3084
      %3232 = vmatprep.subr.bf16.mxu0 %v3087
      %3233 = vmatpush1.bf16.msra.mxu0 %v3086
      %3234 = vmatprep.subr.bf16.mxu0 %v3089
      %3235 = vmatpush1.bf16.msra.mxu0 %v3088
      %3236 = vmatprep.subr.bf16.mxu0 %v3091
      %3237 = vmatpush1.bf16.msra.mxu0 %v3090
      %3238 = vmatprep.subr.bf16.mxu0 %v3093
      %3239 = vmatpush1.bf16.msra.mxu0 %v3092
      %3240 = vmatprep.subr.bf16.mxu0 %v3095
      %3241 = vmatpush1.bf16.msra.mxu0 %v3094
      %3242 = vmatprep.subr.bf16.mxu0 %v3097
      %3243 = vmatpush1.bf16.msra.mxu0 %v3096
      %3244 = vmatprep.subr.bf16.mxu0 %v3099
      %3245 = vmatpush1.bf16.msra.mxu0 %v3098
      %3246 = vmatprep.subr.bf16.mxu0 %v3101
      %3247 = vmatpush1.bf16.msra.mxu0 %v3100
      %3248 = vmatprep.subr.bf16.mxu0 %v3103
      %3249 = vmatpush1.bf16.msra.mxu0 %v3102
      %3250 = vmatprep.subr.bf16.mxu0 %v3105
      %3251 = vmatpush1.bf16.msra.mxu0 %v3104
      %3252 = vmatprep.subr.bf16.mxu0 %v3107
      %3253 = vmatpush1.bf16.msra.mxu0 %v3106
      %3254 = vmatprep.subr.bf16.mxu0 %v3109
      %3255 = vmatpush1.bf16.msra.mxu0 %v3108
      %3256 = vmatprep.subr.bf16.mxu0 %v3111
      %3257 = vmatpush1.bf16.msra.mxu0 %v3110
      %3258 = vmatprep.subr.bf16.mxu0 %v3113
      %3259 = vmatpush1.bf16.msra.mxu0 %v3112
      %3260 = vmatprep.subr.bf16.mxu0 %v3115
      %3261 = vmatpush1.bf16.msra.mxu0 %v3114
      %3262 = vmatprep.mubr.bf16.mxu0 %v2776
      %3263 = vmatmul.mubr.bf16.gmra.mrb[0].mxu0 %v2679
      %v3264 = vpop.f32.mrb[0].mxu0
      %v3265 = vadd.f32 0.0, %v3264
      %v3266 = vpop.f32.mrb[0].mxu0
      %v3267 = vadd.f32 0.0, %v3266
      %v3268 = vpop.f32.mrb[0].mxu0
      %v3269 = vadd.f32 0.0, %v3268
      %v3270 = vpop.f32.mrb[0].mxu0
      %v3271 = vadd.f32 0.0, %v3270
      %3272 = vmatprep.mubr.bf16.mxu0 %v2779
      %3273 = vmatmul.mubr.bf16.gmra.mrb[0].mxu0 %v2683
      %v3274 = vpop.f32.mrb[0].mxu0
      %v3275 = vadd.f32 0.0, %v3274
      %v3276 = vpop.f32.mrb[0].mxu0
      %v3277 = vadd.f32 0.0, %v3276
      %v3278 = vpop.f32.mrb[0].mxu0
      %v3279 = vadd.f32 0.0, %v3278
      %v3280 = vpop.f32.mrb[0].mxu0
      %v3281 = vadd.f32 0.0, %v3280
      %3282 = vmatprep.mubr.bf16.mxu0 %v2782
      %3283 = vmatmul.mubr.bf16.gmra.mrb[0].mxu0 %v2687
      %v3284 = vpop.f32.mrb[0].mxu0
      %v3285 = vadd.f32 0.0, %v3284
      %v3286 = vpop.f32.mrb[0].mxu0
      %v3287 = vadd.f32 0.0, %v3286
      %v3288 = vpop.f32.mrb[0].mxu0
      %v3289 = vadd.f32 0.0, %v3288
      %v3290 = vpop.f32.mrb[0].mxu0
      %v3291 = vadd.f32 0.0, %v3290
      %3292 = vmatprep.mubr.bf16.mxu0 %v2785
      %3293 = vmatmul.mubr.bf16.gmra.mrb[0].mxu0 %v2691
      %v3294 = vpop.f32.mrb[0].mxu0
      %v3295 = vadd.f32 0.0, %v3294
      %v3296 = vpop.f32.mrb[0].mxu0
      %v3297 = vadd.f32 0.0, %v3296
      %v3298 = vpop.f32.mrb[0].mxu0
      %v3299 = vadd.f32 0.0, %v3298
      %v3300 = vpop.f32.mrb[0].mxu0
      %v3301 = vadd.f32 0.0, %v3300
      %3302 = vmatprep.mubr.bf16.mxu0 %v2788
      %3303 = vmatmul.mubr.bf16.gmra.mrb[0].mxu0 %v2695
      %v3304 = vpop.f32.mrb[0].mxu0
      %v3305 = vadd.f32 0.0, %v3304
      %v3306 = vpop.f32.mrb[0].mxu0
      %v3307 = vadd.f32 0.0, %v3306
      %v3308 = vpop.f32.mrb[0].mxu0
      %v3309 = vadd.f32 0.0, %v3308
      %v3310 = vpop.f32.mrb[0].mxu0
      %v3311 = vadd.f32 0.0, %v3310
      %3312 = vmatprep.mubr.bf16.mxu0 %v2791
      %3313 = vmatmul.mubr.bf16.gmra.mrb[0].mxu0 %v2699
      %v3314 = vpop.f32.mrb[0].mxu0
      %v3315 = vadd.f32 0.0, %v3314
      %v3316 = vpop.f32.mrb[0].mxu0
      %v3317 = vadd.f32 0.0, %v3316
      %v3318 = vpop.f32.mrb[0].mxu0
      %v3319 = vadd.f32 0.0, %v3318
      %v3320 = vpop.f32.mrb[0].mxu0
      %v3321 = vadd.f32 0.0, %v3320
      %3322 = vmatprep.mubr.bf16.mxu0 %v2794
      %3323 = vmatmul.mubr.bf16.gmra.mrb[0].mxu0 %v2703
      %v3324 = vpop.f32.mrb[0].mxu0
      %v3325 = vadd.f32 0.0, %v3324
      %v3326 = vpop.f32.mrb[0].mxu0
      %v3327 = vadd.f32 0.0, %v3326
      %v3328 = vpop.f32.mrb[0].mxu0
      %v3329 = vadd.f32 0.0, %v3328
      %v3330 = vpop.f32.mrb[0].mxu0
      %v3331 = vadd.f32 0.0, %v3330
      %3332 = vmatprep.mubr.bf16.mxu0 %v2797
      %3333 = vmatmul.mubr.bf16.gmra.mrb[0].mxu0 %v2707
      %v3334 = vpop.f32.mrb[0].mxu0
      %v3335 = vadd.f32 0.0, %v3334
      %v3336 = vpop.f32.mrb[0].mxu0
      %v3337 = vadd.f32 0.0, %v3336
      %v3338 = vpop.f32.mrb[0].mxu0
      %v3339 = vadd.f32 0.0, %v3338
      %v3340 = vpop.f32.mrb[0].mxu0
      %v3341 = vadd.f32 0.0, %v3340
      %3342 = vmatprep.mubr.bf16.mxu0 %v2800
      %3343 = vmatmul.mubr.bf16.gmra.mrb[0].mxu0 %v2711
      %v3344 = vpop.f32.mrb[0].mxu0
      %v3345 = vadd.f32 0.0, %v3344
      %v3346 = vpop.f32.mrb[0].mxu0
      %v3347 = vadd.f32 0.0, %v3346
      %v3348 = vpop.f32.mrb[0].mxu0
      %v3349 = vadd.f32 0.0, %v3348
      %v3350 = vpop.f32.mrb[0].mxu0
      %v3351 = vadd.f32 0.0, %v3350
      %3352 = vmatprep.mubr.bf16.mxu0 %v2803
      %3353 = vmatmul.mubr.bf16.gmra.mrb[0].mxu0 %v2715
      %v3354 = vpop.f32.mrb[0].mxu0
      %v3355 = vadd.f32 0.0, %v3354
      %v3356 = vpop.f32.mrb[0].mxu0
      %v3357 = vadd.f32 0.0, %v3356
      %v3358 = vpop.f32.mrb[0].mxu0
      %v3359 = vadd.f32 0.0, %v3358
      %v3360 = vpop.f32.mrb[0].mxu0
      %v3361 = vadd.f32 0.0, %v3360
      %3362 = vmatprep.mubr.bf16.mxu0 %v2806
      %3363 = vmatmul.mubr.bf16.gmra.mrb[0].mxu0 %v2719
      %v3364 = vpop.f32.mrb[0].mxu0
      %v3365 = vadd.f32 0.0, %v3364
      %v3366 = vpop.f32.mrb[0].mxu0
      %v3367 = vadd.f32 0.0, %v3366
      %v3368 = vpop.f32.mrb[0].mxu0
      %v3369 = vadd.f32 0.0, %v3368
      %v3370 = vpop.f32.mrb[0].mxu0
      %v3371 = vadd.f32 0.0, %v3370
      %3372 = vmatprep.mubr.bf16.mxu0 %v2809
      %3373 = vmatmul.mubr.bf16.gmra.mrb[0].mxu0 %v2723
      %v3374 = vpop.f32.mrb[0].mxu0
      %v3375 = vadd.f32 0.0, %v3374
      %v3376 = vpop.f32.mrb[0].mxu0
      %v3377 = vadd.f32 0.0, %v3376
      %v3378 = vpop.f32.mrb[0].mxu0
      %v3379 = vadd.f32 0.0, %v3378
      %v3380 = vpop.f32.mrb[0].mxu0
      %v3381 = vadd.f32 0.0, %v3380
      %3382 = vmatprep.mubr.bf16.mxu0 %v2812
      %3383 = vmatmul.mubr.bf16.gmra.mrb[0].mxu0 %v2727
      %v3384 = vpop.f32.mrb[0].mxu0
      %v3385 = vadd.f32 0.0, %v3384
      %v3386 = vpop.f32.mrb[0].mxu0
      %v3387 = vadd.f32 0.0, %v3386
      %v3388 = vpop.f32.mrb[0].mxu0
      %v3389 = vadd.f32 0.0, %v3388
      %v3390 = vpop.f32.mrb[0].mxu0
      %v3391 = vadd.f32 0.0, %v3390
      %3392 = vmatprep.mubr.bf16.mxu0 %v2815
      %3393 = vmatmul.mubr.bf16.gmra.mrb[0].mxu0 %v2731
      %v3394 = vpop.f32.mrb[0].mxu0
      %v3395 = vadd.f32 0.0, %v3394
      %v3396 = vpop.f32.mrb[0].mxu0
      %v3397 = vadd.f32 0.0, %v3396
      %v3398 = vpop.f32.mrb[0].mxu0
      %v3399 = vadd.f32 0.0, %v3398
      %v3400 = vpop.f32.mrb[0].mxu0
      %v3401 = vadd.f32 0.0, %v3400
      %3402 = vmatprep.mubr.bf16.mxu0 %v2818
      %3403 = vmatmul.mubr.bf16.gmra.mrb[0].mxu0 %v2735
      %v3404 = vpop.f32.mrb[0].mxu0
      %v3405 = vadd.f32 0.0, %v3404
      %v3406 = vpop.f32.mrb[0].mxu0
      %v3407 = vadd.f32 0.0, %v3406
      %v3408 = vpop.f32.mrb[0].mxu0
      %v3409 = vadd.f32 0.0, %v3408
      %v3410 = vpop.f32.mrb[0].mxu0
      %v3411 = vadd.f32 0.0, %v3410
      %3412 = vmatprep.mubr.bf16.mxu0 %v2821
      %3413 = vmatmul.mubr.bf16.gmra.mrb[0].mxu0 %v2739
      %v3414 = vpop.f32.mrb[0].mxu0
      %v3415 = vadd.f32 0.0, %v3414
      %v3416 = vpop.f32.mrb[0].mxu0
      %v3417 = vadd.f32 0.0, %v3416
      %v3418 = vpop.f32.mrb[0].mxu0
      %v3419 = vadd.f32 0.0, %v3418
      %v3420 = vpop.f32.mrb[0].mxu0
      %v3421 = vadd.f32 0.0, %v3420
      %3422 = vdwg.mxu0
      %3423 = vmatprep.subr.bf16.mxu0 %v3117
      %3424 = vmatpush1.bf16.msra.mxu0 %v3116
      %3425 = vmatprep.subr.bf16.mxu0 %v3119
      %3426 = vmatpush1.bf16.msra.mxu0 %v3118
      %3427 = vmatprep.subr.bf16.mxu0 %v3121
      %3428 = vmatpush1.bf16.msra.mxu0 %v3120
      %3429 = vmatprep.subr.bf16.mxu0 %v3123
      %3430 = vmatpush1.bf16.msra.mxu0 %v3122
      %3431 = vmatprep.subr.bf16.mxu0 %v3125
      %3432 = vmatpush1.bf16.msra.mxu0 %v3124
      %3433 = vmatprep.subr.bf16.mxu0 %v3127
      %3434 = vmatpush1.bf16.msra.mxu0 %v3126
      %3435 = vmatprep.subr.bf16.mxu0 %v3129
      %3436 = vmatpush1.bf16.msra.mxu0 %v3128
      %3437 = vmatprep.subr.bf16.mxu0 %v3131
      %3438 = vmatpush1.bf16.msra.mxu0 %v3130
      %3439 = vmatprep.subr.bf16.mxu0 %v3133
      %3440 = vmatpush1.bf16.msra.mxu0 %v3132
      %3441 = vmatprep.subr.bf16.mxu0 %v3135
      %3442 = vmatpush1.bf16.msra.mxu0 %v3134
      %3443 = vmatprep.subr.bf16.mxu0 %v3228
      %3444 = vmatpush1.bf16.msra.mxu0 %v3225
      %3445 = vmatprep.subr.bf16.mxu0 0
      %3446 = vmatpush1.bf16.msra.mxu0 0
      %3447 = vmatprep.subr.bf16.mxu0 0
      %3448 = vmatpush1.bf16.msra.mxu0 0
      %3449 = vmatprep.subr.bf16.mxu0 0
      %3450 = vmatpush1.bf16.msra.mxu0 0
      %3451 = vmatprep.subr.bf16.mxu0 0
      %3452 = vmatpush1.bf16.msra.mxu0 0
      %3453 = vmatprep.subr.bf16.mxu0 0
      %3454 = vmatpush1.bf16.msra.mxu0 0
      %3455 = vmatprep.mubr.bf16.mxu0 %v3191
      %3456 = vmatmul.mubr.bf16.gmra.mrb[0].mxu0 %v2825
      %v3457 = vpop.f32.mrb[0].mxu0
      %v3458 = vadd.f32 %v3265, %v3457
      %v3459 = vpop.f32.mrb[0].mxu0
      %v3460 = vadd.f32 %v3267, %v3459
      %v3461 = vpop.f32.mrb[0].mxu0
      %v3462 = vadd.f32 %v3269, %v3461
      %v3463 = vpop.f32.mrb[0].mxu0
      %v3464 = vadd.f32 %v3271, %v3463
      %3465 = vmatprep.mubr.bf16.mxu0 %v3193
      %3466 = vmatmul.mubr.bf16.gmra.mrb[0].mxu0 %v2828
      %v3467 = vpop.f32.mrb[0].mxu0
      %v3468 = vadd.f32 %v3275, %v3467
      %v3469 = vpop.f32.mrb[0].mxu0
      %v3470 = vadd.f32 %v3277, %v3469
      %v3471 = vpop.f32.mrb[0].mxu0
      %v3472 = vadd.f32 %v3279, %v3471
      %v3473 = vpop.f32.mrb[0].mxu0
      %v3474 = vadd.f32 %v3281, %v3473
      %3475 = vmatprep.mubr.bf16.mxu0 %v3195
      %3476 = vmatmul.mubr.bf16.gmra.mrb[0].mxu0 %v2831
      %v3477 = vpop.f32.mrb[0].mxu0
      %v3478 = vadd.f32 %v3285, %v3477
      %v3479 = vpop.f32.mrb[0].mxu0
      %v3480 = vadd.f32 %v3287, %v3479
      %v3481 = vpop.f32.mrb[0].mxu0
      %v3482 = vadd.f32 %v3289, %v3481
      %v3483 = vpop.f32.mrb[0].mxu0
      %v3484 = vadd.f32 %v3291, %v3483
      %3485 = vmatprep.mubr.bf16.mxu0 %v3197
      %3486 = vmatmul.mubr.bf16.gmra.mrb[0].mxu0 %v2834
      %v3487 = vpop.f32.mrb[0].mxu0
      %v3488 = vadd.f32 %v3295, %v3487
      %v3489 = vpop.f32.mrb[0].mxu0
      %v3490 = vadd.f32 %v3297, %v3489
      %v3491 = vpop.f32.mrb[0].mxu0
      %v3492 = vadd.f32 %v3299, %v3491
      %v3493 = vpop.f32.mrb[0].mxu0
      %v3494 = vadd.f32 %v3301, %v3493
      %3495 = vmatprep.mubr.bf16.mxu0 %v3199
      %3496 = vmatmul.mubr.bf16.gmra.mrb[0].mxu0 %v2837
      %v3497 = vpop.f32.mrb[0].mxu0
      %v3498 = vadd.f32 %v3305, %v3497
      %v3499 = vpop.f32.mrb[0].mxu0
      %v3500 = vadd.f32 %v3307, %v3499
      %v3501 = vpop.f32.mrb[0].mxu0
      %v3502 = vadd.f32 %v3309, %v3501
      %v3503 = vpop.f32.mrb[0].mxu0
      %v3504 = vadd.f32 %v3311, %v3503
      %3505 = vmatprep.mubr.bf16.mxu0 %v3201
      %3506 = vmatmul.mubr.bf16.gmra.mrb[0].mxu0 %v2840
      %v3507 = vpop.f32.mrb[0].mxu0
      %v3508 = vadd.f32 %v3315, %v3507
      %v3509 = vpop.f32.mrb[0].mxu0
      %v3510 = vadd.f32 %v3317, %v3509
      %v3511 = vpop.f32.mrb[0].mxu0
      %v3512 = vadd.f32 %v3319, %v3511
      %v3513 = vpop.f32.mrb[0].mxu0
      %v3514 = vadd.f32 %v3321, %v3513
      %3515 = vmatprep.mubr.bf16.mxu0 %v3203
      %3516 = vmatmul.mubr.bf16.gmra.mrb[0].mxu0 %v2843
      %v3517 = vpop.f32.mrb[0].mxu0
      %v3518 = vadd.f32 %v3325, %v3517
      %v3519 = vpop.f32.mrb[0].mxu0
      %v3520 = vadd.f32 %v3327, %v3519
      %v3521 = vpop.f32.mrb[0].mxu0
      %v3522 = vadd.f32 %v3329, %v3521
      %v3523 = vpop.f32.mrb[0].mxu0
      %v3524 = vadd.f32 %v3331, %v3523
      %3525 = vmatprep.mubr.bf16.mxu0 %v3205
      %3526 = vmatmul.mubr.bf16.gmra.mrb[0].mxu0 %v2846
      %v3527 = vpop.f32.mrb[0].mxu0
      %v3528 = vadd.f32 %v3335, %v3527
      %v3529 = vpop.f32.mrb[0].mxu0
      %v3530 = vadd.f32 %v3337, %v3529
      %v3531 = vpop.f32.mrb[0].mxu0
      %v3532 = vadd.f32 %v3339, %v3531
      %v3533 = vpop.f32.mrb[0].mxu0
      %v3534 = vadd.f32 %v3341, %v3533
      %3535 = vmatprep.mubr.bf16.mxu0 %v3207
      %3536 = vmatmul.mubr.bf16.gmra.mrb[0].mxu0 %v2849
      %v3537 = vpop.f32.mrb[0].mxu0
      %v3538 = vadd.f32 %v3345, %v3537
      %v3539 = vpop.f32.mrb[0].mxu0
      %v3540 = vadd.f32 %v3347, %v3539
      %v3541 = vpop.f32.mrb[0].mxu0
      %v3542 = vadd.f32 %v3349, %v3541
      %v3543 = vpop.f32.mrb[0].mxu0
      %v3544 = vadd.f32 %v3351, %v3543
      %3545 = vmatprep.mubr.bf16.mxu0 %v3209
      %3546 = vmatmul.mubr.bf16.gmra.mrb[0].mxu0 %v2852
      %v3547 = vpop.f32.mrb[0].mxu0
      %v3548 = vadd.f32 %v3355, %v3547
      %v3549 = vpop.f32.mrb[0].mxu0
      %v3550 = vadd.f32 %v3357, %v3549
      %v3551 = vpop.f32.mrb[0].mxu0
      %v3552 = vadd.f32 %v3359, %v3551
      %v3553 = vpop.f32.mrb[0].mxu0
      %v3554 = vadd.f32 %v3361, %v3553
      %3555 = vmatprep.mubr.bf16.mxu0 %v3211
      %3556 = vmatmul.mubr.bf16.gmra.mrb[0].mxu0 %v2855
      %v3557 = vpop.f32.mrb[0].mxu0
      %v3558 = vadd.f32 %v3365, %v3557
      %v3559 = vpop.f32.mrb[0].mxu0
      %v3560 = vadd.f32 %v3367, %v3559
      %v3561 = vpop.f32.mrb[0].mxu0
      %v3562 = vadd.f32 %v3369, %v3561
      %v3563 = vpop.f32.mrb[0].mxu0
      %v3564 = vadd.f32 %v3371, %v3563
      %3565 = vmatprep.mubr.bf16.mxu0 %v3213
      %3566 = vmatmul.mubr.bf16.gmra.mrb[0].mxu0 %v2858
      %v3567 = vpop.f32.mrb[0].mxu0
      %v3568 = vadd.f32 %v3375, %v3567
      %v3569 = vpop.f32.mrb[0].mxu0
      %v3570 = vadd.f32 %v3377, %v3569
      %v3571 = vpop.f32.mrb[0].mxu0
      %v3572 = vadd.f32 %v3379, %v3571
      %v3573 = vpop.f32.mrb[0].mxu0
      %v3574 = vadd.f32 %v3381, %v3573
      %3575 = vmatprep.mubr.bf16.mxu0 %v3215
      %3576 = vmatmul.mubr.bf16.gmra.mrb[0].mxu0 %v2861
      %v3577 = vpop.f32.mrb[0].mxu0
      %v3578 = vadd.f32 %v3385, %v3577
      %v3579 = vpop.f32.mrb[0].mxu0
      %v3580 = vadd.f32 %v3387, %v3579
      %v3581 = vpop.f32.mrb[0].mxu0
      %v3582 = vadd.f32 %v3389, %v3581
      %v3583 = vpop.f32.mrb[0].mxu0
      %v3584 = vadd.f32 %v3391, %v3583
      %3585 = vmatprep.mubr.bf16.mxu0 %v3217
      %3586 = vmatmul.mubr.bf16.gmra.mrb[0].mxu0 %v2864
      %v3587 = vpop.f32.mrb[0].mxu0
      %v3588 = vadd.f32 %v3395, %v3587
      %v3589 = vpop.f32.mrb[0].mxu0
      %v3590 = vadd.f32 %v3397, %v3589
      %v3591 = vpop.f32.mrb[0].mxu0
      %v3592 = vadd.f32 %v3399, %v3591
      %v3593 = vpop.f32.mrb[0].mxu0
      %v3594 = vadd.f32 %v3401, %v3593
      %3595 = vmatprep.mubr.bf16.mxu0 %v3219
      %3596 = vmatmul.mubr.bf16.gmra.mrb[0].mxu0 %v2867
      %v3597 = vpop.f32.mrb[0].mxu0
      %v3598 = vadd.f32 %v3405, %v3597
      %v3599 = vpop.f32.mrb[0].mxu0
      %v3600 = vadd.f32 %v3407, %v3599
      %v3601 = vpop.f32.mrb[0].mxu0
      %v3602 = vadd.f32 %v3409, %v3601
      %v3603 = vpop.f32.mrb[0].mxu0
      %v3604 = vadd.f32 %v3411, %v3603
      %3605 = vmatprep.mubr.bf16.mxu0 %v3221
      %3606 = vmatmul.mubr.bf16.gmra.mrb[0].mxu0 %v2870
      %v3607 = vpop.f32.mrb[0].mxu0
      %v3608 = vadd.f32 %v3415, %v3607
      %v3609 = vpop.f32.mrb[0].mxu0
      %v3610 = vadd.f32 %v3417, %v3609
      %v3611 = vpop.f32.mrb[0].mxu0
      %v3612 = vadd.f32 %v3419, %v3611
      %v3613 = vpop.f32.mrb[0].mxu0
      %v3614 = vadd.f32 %v3421, %v3613
      %3615 = vdwg.mxu0
      %3680 = vrot.lane.b32.xlu0 %v3458, 48
      %v3681 = vpop.permute.xlu0 %3680
      %3682 = vrot.lane.b32.xlu0 %v3460, 48
      %v3683 = vpop.permute.xlu0 %3682
      %3684 = vrot.lane.b32.xlu0 %v3462, 48
      %v3685 = vpop.permute.xlu0 %3684
      %3686 = vrot.lane.b32.xlu0 %v3464, 48
      %v3687 = vpop.permute.xlu0 %3686
      %3688 = vrot.lane.b32.xlu0 %v3468, 48
      %v3689 = vpop.permute.xlu0 %3688
      %3690 = vrot.lane.b32.xlu0 %v3470, 48
      %v3691 = vpop.permute.xlu0 %3690
      %3692 = vrot.lane.b32.xlu0 %v3472, 48
      %v3693 = vpop.permute.xlu0 %3692
      %3694 = vrot.lane.b32.xlu0 %v3474, 48
      %v3695 = vpop.permute.xlu0 %3694
      %3696 = vrot.lane.b32.xlu0 %v3478, 48
      %v3697 = vpop.permute.xlu0 %3696
      %3698 = vrot.lane.b32.xlu0 %v3480, 48
      %v3699 = vpop.permute.xlu0 %3698
      %3700 = vrot.lane.b32.xlu0 %v3482, 48
      %v3701 = vpop.permute.xlu0 %3700
      %3702 = vrot.lane.b32.xlu0 %v3484, 48
      %v3703 = vpop.permute.xlu0 %3702
      %3704 = vrot.lane.b32.xlu0 %v3488, 48
      %v3705 = vpop.permute.xlu0 %3704
      %3706 = vrot.lane.b32.xlu0 %v3490, 48
      %v3707 = vpop.permute.xlu0 %3706
      %3708 = vrot.lane.b32.xlu0 %v3492, 48
      %v3709 = vpop.permute.xlu0 %3708
      %3710 = vrot.lane.b32.xlu0 %v3494, 48
      %v3711 = vpop.permute.xlu0 %3710
      %3712 = vrot.lane.b32.xlu0 %v3498, 48
      %v3713 = vpop.permute.xlu0 %3712
      %3714 = vrot.lane.b32.xlu0 %v3500, 48
      %v3715 = vpop.permute.xlu0 %3714
      %3716 = vrot.lane.b32.xlu0 %v3502, 48
      %v3717 = vpop.permute.xlu0 %3716
      %3718 = vrot.lane.b32.xlu0 %v3504, 48
      %v3719 = vpop.permute.xlu0 %3718
      %3720 = vrot.lane.b32.xlu0 %v3508, 48
      %v3721 = vpop.permute.xlu0 %3720
      %3722 = vrot.lane.b32.xlu0 %v3510, 48
      %v3723 = vpop.permute.xlu0 %3722
      %3724 = vrot.lane.b32.xlu0 %v3512, 48
      %v3725 = vpop.permute.xlu0 %3724
      %3726 = vrot.lane.b32.xlu0 %v3514, 48
      %v3727 = vpop.permute.xlu0 %3726
      %3728 = vrot.lane.b32.xlu0 %v3518, 48
      %v3729 = vpop.permute.xlu0 %3728
      %3730 = vrot.lane.b32.xlu0 %v3520, 48
      %v3731 = vpop.permute.xlu0 %3730
      %3732 = vrot.lane.b32.xlu0 %v3522, 48
      %v3733 = vpop.permute.xlu0 %3732
      %3734 = vrot.lane.b32.xlu0 %v3524, 48
      %v3735 = vpop.permute.xlu0 %3734
      %3736 = vrot.lane.b32.xlu0 %v3528, 48
      %v3737 = vpop.permute.xlu0 %3736
      %3738 = vrot.lane.b32.xlu0 %v3530, 48
      %v3739 = vpop.permute.xlu0 %3738
      %3740 = vrot.lane.b32.xlu0 %v3532, 48
      %v3741 = vpop.permute.xlu0 %3740
      %3742 = vrot.lane.b32.xlu0 %v3534, 48
      %v3743 = vpop.permute.xlu0 %3742
      %3744 = vrot.lane.b32.xlu0 %v3538, 48
      %v3745 = vpop.permute.xlu0 %3744
      %3746 = vrot.lane.b32.xlu0 %v3540, 48
      %v3747 = vpop.permute.xlu0 %3746
      %3748 = vrot.lane.b32.xlu0 %v3542, 48
      %v3749 = vpop.permute.xlu0 %3748
      %3750 = vrot.lane.b32.xlu0 %v3544, 48
      %v3751 = vpop.permute.xlu0 %3750
      %3752 = vrot.lane.b32.xlu0 %v3548, 48
      %v3753 = vpop.permute.xlu0 %3752
      %3754 = vrot.lane.b32.xlu0 %v3550, 48
      %v3755 = vpop.permute.xlu0 %3754
      %3756 = vrot.lane.b32.xlu0 %v3552, 48
      %v3757 = vpop.permute.xlu0 %3756
      %3758 = vrot.lane.b32.xlu0 %v3554, 48
      %v3759 = vpop.permute.xlu0 %3758
      %3760 = vrot.lane.b32.xlu0 %v3558, 48
      %v3761 = vpop.permute.xlu0 %3760
      %3762 = vrot.lane.b32.xlu0 %v3560, 48
      %v3763 = vpop.permute.xlu0 %3762
      %3764 = vrot.lane.b32.xlu0 %v3562, 48
      %v3765 = vpop.permute.xlu0 %3764
      %3766 = vrot.lane.b32.xlu0 %v3564, 48
      %v3767 = vpop.permute.xlu0 %3766
      %3768 = vrot.lane.b32.xlu0 %v3568, 48
      %v3769 = vpop.permute.xlu0 %3768
      %3770 = vrot.lane.b32.xlu0 %v3570, 48
      %v3771 = vpop.permute.xlu0 %3770
      %3772 = vrot.lane.b32.xlu0 %v3572, 48
      %v3773 = vpop.permute.xlu0 %3772
      %3774 = vrot.lane.b32.xlu0 %v3574, 48
      %v3775 = vpop.permute.xlu0 %3774
      %3776 = vrot.lane.b32.xlu0 %v3578, 48
      %v3777 = vpop.permute.xlu0 %3776
      %3778 = vrot.lane.b32.xlu0 %v3580, 48
      %v3779 = vpop.permute.xlu0 %3778
      %3780 = vrot.lane.b32.xlu0 %v3582, 48
      %v3781 = vpop.permute.xlu0 %3780
      %3782 = vrot.lane.b32.xlu0 %v3584, 48
      %v3783 = vpop.permute.xlu0 %3782
      %3784 = vrot.lane.b32.xlu0 %v3588, 48
      %v3785 = vpop.permute.xlu0 %3784
      %3786 = vrot.lane.b32.xlu0 %v3590, 48
      %v3787 = vpop.permute.xlu0 %3786
      %3788 = vrot.lane.b32.xlu0 %v3592, 48
      %v3789 = vpop.permute.xlu0 %3788
      %3790 = vrot.lane.b32.xlu0 %v3594, 48
      %v3791 = vpop.permute.xlu0 %3790
      %3792 = vrot.lane.b32.xlu0 %v3598, 48
      %v3793 = vpop.permute.xlu0 %3792
      %3794 = vrot.lane.b32.xlu0 %v3600, 48
      %v3795 = vpop.permute.xlu0 %3794
      %3796 = vrot.lane.b32.xlu0 %v3602, 48
      %v3797 = vpop.permute.xlu0 %3796
      %3798 = vrot.lane.b32.xlu0 %v3604, 48
      %v3799 = vpop.permute.xlu0 %3798
      %3800 = vrot.lane.b32.xlu0 %v3608, 48
      %v3801 = vpop.permute.xlu0 %3800
      %3802 = vrot.lane.b32.xlu0 %v3610, 48
      %v3803 = vpop.permute.xlu0 %3802
      %3804 = vrot.lane.b32.xlu0 %v3612, 48
      %v3805 = vpop.permute.xlu0 %3804
      %3806 = vrot.lane.b32.xlu0 %v3614, 48
      %v3807 = vpop.permute.xlu0 %3806
      %vm3808 = vcmask 392192
      %v3809 = vsel %vm3808, %v3681, %v3683
      %v3810 = vsel %vm3808, %v3685, %v3687
      %v3811 = vsel %vm3808, %v3689, %v3691
      %v3812 = vsel %vm3808, %v3693, %v3695
      %v3813 = vsel %vm3808, %v3697, %v3699
      %v3814 = vsel %vm3808, %v3701, %v3703
      %v3815 = vsel %vm3808, %v3705, %v3707
      %v3816 = vsel %vm3808, %v3709, %v3711
      %v3817 = vsel %vm3808, %v3713, %v3715
      %v3818 = vsel %vm3808, %v3717, %v3719
      %v3819 = vsel %vm3808, %v3721, %v3723
      %v3820 = vsel %vm3808, %v3725, %v3727
      %v3821 = vsel %vm3808, %v3729, %v3731
      %v3822 = vsel %vm3808, %v3733, %v3735
      %v3823 = vsel %vm3808, %v3737, %v3739
      %v3824 = vsel %vm3808, %v3741, %v3743
      %v3825 = vsel %vm3808, %v3745, %v3747
      %v3826 = vsel %vm3808, %v3749, %v3751
      %v3827 = vsel %vm3808, %v3753, %v3755
      %v3828 = vsel %vm3808, %v3757, %v3759
      %v3829 = vsel %vm3808, %v3761, %v3763
      %v3830 = vsel %vm3808, %v3765, %v3767
      %v3831 = vsel %vm3808, %v3769, %v3771
      %v3832 = vsel %vm3808, %v3773, %v3775
      %v3833 = vsel %vm3808, %v3777, %v3779
      %v3834 = vsel %vm3808, %v3781, %v3783
      %v3835 = vsel %vm3808, %v3785, %v3787
      %v3836 = vsel %vm3808, %v3789, %v3791
      %v3837 = vsel %vm3808, %v3793, %v3795
      %v3838 = vsel %vm3808, %v3797, %v3799
      %v3839 = vsel %vm3808, %v3801, %v3803
      %v3840 = vsel %vm3808, %v3805, %v3807
      %v3873 = vmax.f32 %v3458, %v3809
      %v3874 = vmax.f32 %v3462, %v3810
      %v3875 = vmax.f32 %v3468, %v3811
      %v3876 = vmax.f32 %v3472, %v3812
      %v3877 = vmax.f32 %v3478, %v3813
      %v3878 = vmax.f32 %v3482, %v3814
      %v3879 = vmax.f32 %v3488, %v3815
      %v3880 = vmax.f32 %v3492, %v3816
      %v3881 = vmax.f32 %v3498, %v3817
      %v3882 = vmax.f32 %v3502, %v3818
      %v3883 = vmax.f32 %v3508, %v3819
      %v3884 = vmax.f32 %v3512, %v3820
      %v3885 = vmax.f32 %v3518, %v3821
      %v3886 = vmax.f32 %v3522, %v3822
      %v3887 = vmax.f32 %v3528, %v3823
      %v3888 = vmax.f32 %v3532, %v3824
      %v3889 = vmax.f32 %v3538, %v3825
      %v3890 = vmax.f32 %v3542, %v3826
      %v3891 = vmax.f32 %v3548, %v3827
      %v3892 = vmax.f32 %v3552, %v3828
      %v3893 = vmax.f32 %v3558, %v3829
      %v3894 = vmax.f32 %v3562, %v3830
      %v3895 = vmax.f32 %v3568, %v3831
      %v3896 = vmax.f32 %v3572, %v3832
      %v3897 = vmax.f32 %v3578, %v3833
      %v3898 = vmax.f32 %v3582, %v3834
      %v3899 = vmax.f32 %v3588, %v3835
      %v3900 = vmax.f32 %v3592, %v3836
      %v3901 = vmax.f32 %v3598, %v3837
      %v3902 = vmax.f32 %v3602, %v3838
      %v3903 = vmax.f32 %v3608, %v3839
      %v3904 = vmax.f32 %v3612, %v3840
      %v3937 = vrot.slane %v3873, 2
      %v3938 = vrot.slane %v3874, 2
      %v3939 = vsel %vm808, %v3937, %v3938
      %v3940 = vrot.slane %v3875, 2
      %v3941 = vsel %vm808, %v3938, %v3940
      %v3942 = vrot.slane %v3876, 2
      %v3943 = vsel %vm808, %v3940, %v3942
      %v3944 = vrot.slane %v3877, 2
      %v3945 = vsel %vm808, %v3942, %v3944
      %v3946 = vrot.slane %v3878, 2
      %v3947 = vsel %vm808, %v3944, %v3946
      %v3948 = vrot.slane %v3879, 2
      %v3949 = vsel %vm808, %v3946, %v3948
      %v3950 = vrot.slane %v3880, 2
      %v3951 = vsel %vm808, %v3948, %v3950
      %v3952 = vrot.slane %v3881, 2
      %v3953 = vsel %vm808, %v3950, %v3952
      %v3954 = vrot.slane %v3882, 2
      %v3955 = vsel %vm808, %v3952, %v3954
      %v3956 = vrot.slane %v3883, 2
      %v3957 = vsel %vm808, %v3954, %v3956
      %v3958 = vrot.slane %v3884, 2
      %v3959 = vsel %vm808, %v3956, %v3958
      %v3960 = vrot.slane %v3885, 2
      %v3961 = vsel %vm808, %v3958, %v3960
      %v3962 = vrot.slane %v3886, 2
      %v3963 = vsel %vm808, %v3960, %v3962
      %v3964 = vrot.slane %v3887, 2
      %v3965 = vsel %vm808, %v3962, %v3964
      %v3966 = vrot.slane %v3888, 2
      %v3967 = vsel %vm808, %v3964, %v3966
      %v3968 = vrot.slane %v3889, 2
      %v3969 = vsel %vm808, %v3966, %v3968
      %v3970 = vrot.slane %v3890, 2
      %v3971 = vsel %vm808, %v3968, %v3970
      %v3972 = vrot.slane %v3891, 2
      %v3973 = vsel %vm808, %v3970, %v3972
      %v3974 = vrot.slane %v3892, 2
      %v3975 = vsel %vm808, %v3972, %v3974
      %v3976 = vrot.slane %v3893, 2
      %v3977 = vsel %vm808, %v3974, %v3976
      %v3978 = vrot.slane %v3894, 2
      %v3979 = vsel %vm808, %v3976, %v3978
      %v3980 = vrot.slane %v3895, 2
      %v3981 = vsel %vm808, %v3978, %v3980
      %v3982 = vrot.slane %v3896, 2
      %v3983 = vsel %vm808, %v3980, %v3982
      %v3984 = vrot.slane %v3897, 2
      %v3985 = vsel %vm808, %v3982, %v3984
      %v3986 = vrot.slane %v3898, 2
      %v3987 = vsel %vm808, %v3984, %v3986
      %v3988 = vrot.slane %v3899, 2
      %v3989 = vsel %vm808, %v3986, %v3988
      %v3990 = vrot.slane %v3900, 2
      %v3991 = vsel %vm808, %v3988, %v3990
      %v3992 = vrot.slane %v3901, 2
      %v3993 = vsel %vm808, %v3990, %v3992
      %v3994 = vrot.slane %v3902, 2
      %v3995 = vsel %vm808, %v3992, %v3994
      %v3996 = vrot.slane %v3903, 2
      %v3997 = vsel %vm808, %v3994, %v3996
      %v3998 = vrot.slane %v3904, 2
      %v3999 = vsel %vm808, %v3996, %v3998
      %v4033 = vsel %vm808, %v3998, %v3937
      %v4034 = vmax.f32 %v3873, %v3939
      %v4035 = vmax.f32 %v3874, %v3941
      %v4036 = vmax.f32 %v3875, %v3943
      %v4037 = vmax.f32 %v3876, %v3945
      %v4038 = vmax.f32 %v3877, %v3947
      %v4039 = vmax.f32 %v3878, %v3949
      %v4040 = vmax.f32 %v3879, %v3951
      %v4041 = vmax.f32 %v3880, %v3953
      %v4042 = vmax.f32 %v3881, %v3955
      %v4043 = vmax.f32 %v3882, %v3957
      %v4044 = vmax.f32 %v3883, %v3959
      %v4045 = vmax.f32 %v3884, %v3961
      %v4046 = vmax.f32 %v3885, %v3963
      %v4047 = vmax.f32 %v3886, %v3965
      %v4048 = vmax.f32 %v3887, %v3967
      %v4049 = vmax.f32 %v3888, %v3969
      %v4050 = vmax.f32 %v3889, %v3971
      %v4051 = vmax.f32 %v3890, %v3973
      %v4052 = vmax.f32 %v3891, %v3975
      %v4053 = vmax.f32 %v3892, %v3977
      %v4054 = vmax.f32 %v3893, %v3979
      %v4055 = vmax.f32 %v3894, %v3981
      %v4056 = vmax.f32 %v3895, %v3983
      %v4057 = vmax.f32 %v3896, %v3985
      %v4058 = vmax.f32 %v3897, %v3987
      %v4059 = vmax.f32 %v3898, %v3989
      %v4060 = vmax.f32 %v3899, %v3991
      %v4061 = vmax.f32 %v3900, %v3993
      %v4062 = vmax.f32 %v3901, %v3995
      %v4063 = vmax.f32 %v3902, %v3997
      %v4064 = vmax.f32 %v3903, %v3999
      %v4065 = vmax.f32 %v3904, %v4033
      %v4066 = vld [vmem:[%s4] sm:$0x1]
      %v4068 = vlaneseq
      %v4069 = vshrl.u32 %v4068, 7
      %v4070 = vsub.s32 0, %v4069
      %v4071 = vrot.slane %v4066, %v4070
      %v4073 = vadd.f32 %v4034, %v4071
      %v4074 = vadd.f32 %v4035, %v4071
      %v4075 = vadd.f32 %v4036, %v4071
      %v4076 = vadd.f32 %v4037, %v4071
      %v4077 = vadd.f32 %v4038, %v4071
      %v4078 = vadd.f32 %v4039, %v4071
      %v4079 = vadd.f32 %v4040, %v4071
      %v4080 = vadd.f32 %v4041, %v4071
      %v4081 = vadd.f32 %v4042, %v4071
      %v4082 = vadd.f32 %v4043, %v4071
      %v4083 = vadd.f32 %v4044, %v4071
      %v4084 = vadd.f32 %v4045, %v4071
      %v4085 = vadd.f32 %v4046, %v4071
      %v4086 = vadd.f32 %v4047, %v4071
      %v4087 = vadd.f32 %v4048, %v4071
      %v4088 = vadd.f32 %v4049, %v4071
      %v4089 = vadd.f32 %v4050, %v4071
      %v4090 = vadd.f32 %v4051, %v4071
      %v4091 = vadd.f32 %v4052, %v4071
      %v4092 = vadd.f32 %v4053, %v4071
      %v4093 = vadd.f32 %v4054, %v4071
      %v4094 = vadd.f32 %v4055, %v4071
      %v4095 = vadd.f32 %v4056, %v4071
      %v4096 = vadd.f32 %v4057, %v4071
      %v4097 = vadd.f32 %v4058, %v4071
      %v4098 = vadd.f32 %v4059, %v4071
      %v4099 = vadd.f32 %v4060, %v4071
      %v4100 = vadd.f32 %v4061, %v4071
      %v4101 = vadd.f32 %v4062, %v4071
      %v4102 = vadd.f32 %v4063, %v4071
      %v4103 = vadd.f32 %v4064, %v4071
      %v4104 = vadd.f32 %v4065, %v4071
      %v4105 = vmax.f32 %v4073, 0.0
      %v4106 = vmax.f32 %v4074, 0.0
      %v4107 = vmax.f32 %v4075, 0.0
      %v4108 = vmax.f32 %v4076, 0.0
      %v4109 = vmax.f32 %v4077, 0.0
      %v4110 = vmax.f32 %v4078, 0.0
      %v4111 = vmax.f32 %v4079, 0.0
      %v4112 = vmax.f32 %v4080, 0.0
      %v4113 = vmax.f32 %v4081, 0.0
      %v4114 = vmax.f32 %v4082, 0.0
      %v4115 = vmax.f32 %v4083, 0.0
      %v4116 = vmax.f32 %v4084, 0.0
      %v4117 = vmax.f32 %v4085, 0.0
      %v4118 = vmax.f32 %v4086, 0.0
      %v4119 = vmax.f32 %v4087, 0.0
      %v4120 = vmax.f32 %v4088, 0.0
      %v4121 = vmax.f32 %v4089, 0.0
      %v4122 = vmax.f32 %v4090, 0.0
      %v4123 = vmax.f32 %v4091, 0.0
      %v4124 = vmax.f32 %v4092, 0.0
      %v4125 = vmax.f32 %v4093, 0.0
      %v4126 = vmax.f32 %v4094, 0.0
      %v4127 = vmax.f32 %v4095, 0.0
      %v4128 = vmax.f32 %v4096, 0.0
      %v4129 = vmax.f32 %v4097, 0.0
      %v4130 = vmax.f32 %v4098, 0.0
      %v4131 = vmax.f32 %v4099, 0.0
      %v4132 = vmax.f32 %v4100, 0.0
      %v4133 = vmax.f32 %v4101, 0.0
      %v4134 = vmax.f32 %v4102, 0.0
      %v4135 = vmax.f32 %v4103, 0.0
      %v4136 = vmax.f32 %v4104, 0.0
      %v4137 = vpack.c.bf16 %v4106, %v4105
      %v4138 = vpack.c.bf16 %v4108, %v4107
      %v4139 = vpack.c.bf16 %v4110, %v4109
      %v4140 = vpack.c.bf16 %v4112, %v4111
      %v4141 = vpack.c.bf16 %v4114, %v4113
      %v4142 = vpack.c.bf16 %v4116, %v4115
      %v4143 = vpack.c.bf16 %v4118, %v4117
      %v4144 = vpack.c.bf16 %v4120, %v4119
      %v4145 = vpack.c.bf16 %v4122, %v4121
      %v4146 = vpack.c.bf16 %v4124, %v4123
      %v4147 = vpack.c.bf16 %v4126, %v4125
      %v4148 = vpack.c.bf16 %v4128, %v4127
      %v4149 = vpack.c.bf16 %v4130, %v4129
      %v4150 = vpack.c.bf16 %v4132, %v4131
      %v4151 = vpack.c.bf16 %v4134, %v4133
      %v4152 = vpack.c.bf16 %v4136, %v4135
      %v4169 = vrot.slane %v4137, 2
      %v4170 = vrot.slane %v4138, 2
      %v4171 = vsel %vm775, %v4169, %v4170
      %v4172 = vrot.slane %v4139, 2
      %v4173 = vsel %vm775, %v4170, %v4172
      %v4174 = vrot.slane %v4140, 2
      %v4175 = vsel %vm775, %v4172, %v4174
      %v4176 = vrot.slane %v4141, 2
      %v4177 = vsel %vm775, %v4174, %v4176
      %v4178 = vrot.slane %v4142, 2
      %v4179 = vsel %vm775, %v4176, %v4178
      %v4180 = vrot.slane %v4143, 2
      %v4181 = vsel %vm775, %v4178, %v4180
      %v4182 = vrot.slane %v4144, 2
      %v4183 = vsel %vm775, %v4180, %v4182
      %v4184 = vrot.slane %v4145, 2
      %v4185 = vsel %vm775, %v4182, %v4184
      %v4186 = vrot.slane %v4146, 2
      %v4187 = vsel %vm775, %v4184, %v4186
      %v4188 = vrot.slane %v4147, 2
      %v4189 = vsel %vm775, %v4186, %v4188
      %v4190 = vrot.slane %v4148, 2
      %v4191 = vsel %vm775, %v4188, %v4190
      %v4192 = vrot.slane %v4149, 2
      %v4193 = vsel %vm775, %v4190, %v4192
      %v4194 = vrot.slane %v4150, 2
      %v4195 = vsel %vm775, %v4192, %v4194
      %v4196 = vrot.slane %v4151, 2
      %v4197 = vsel %vm775, %v4194, %v4196
      %v4198 = vrot.slane %v4152, 2
      %v4199 = vsel %vm775, %v4196, %v4198
      %v4202 = vsel %vm808, %v4198, %v4169
      %v4203 = vrot.slane %v4137, 4
      %v4204 = vrot.slane %v4138, 4
      %v4205 = vsel %vm2508, %v4203, %v4204
      %v4206 = vrot.slane %v4139, 4
      %v4207 = vsel %vm2508, %v4204, %v4206
      %v4208 = vrot.slane %v4140, 4
      %v4209 = vsel %vm2508, %v4206, %v4208
      %v4210 = vrot.slane %v4141, 4
      %v4211 = vsel %vm2508, %v4208, %v4210
      %v4212 = vrot.slane %v4142, 4
      %v4213 = vsel %vm2508, %v4210, %v4212
      %v4214 = vrot.slane %v4143, 4
      %v4215 = vsel %vm2508, %v4212, %v4214
      %v4216 = vrot.slane %v4144, 4
      %v4217 = vsel %vm2508, %v4214, %v4216
      %v4218 = vrot.slane %v4145, 4
      %v4219 = vsel %vm2508, %v4216, %v4218
      %v4220 = vrot.slane %v4146, 4
      %v4221 = vsel %vm2508, %v4218, %v4220
      %v4222 = vrot.slane %v4147, 4
      %v4223 = vsel %vm2508, %v4220, %v4222
      %v4224 = vrot.slane %v4148, 4
      %v4225 = vsel %vm2508, %v4222, %v4224
      %v4226 = vrot.slane %v4149, 4
      %v4227 = vsel %vm2508, %v4224, %v4226
      %v4228 = vrot.slane %v4150, 4
      %v4229 = vsel %vm2508, %v4226, %v4228
      %v4230 = vrot.slane %v4151, 4
      %v4231 = vsel %vm2508, %v4228, %v4230
      %v4232 = vrot.slane %v4152, 4
      %v4233 = vsel %vm2508, %v4230, %v4232
      %v4236 = vsel %vm2540, %v4232, %v4203
      %vm4237 = vcmask 1041408
      %v4238 = vrot.slane %v4137, 6
      %v4239 = vrot.slane %v4138, 6
      %v4240 = vsel %vm4237, %v4238, %v4239
      %v4241 = vrot.slane %v4139, 6
      %v4242 = vsel %vm4237, %v4239, %v4241
      %v4243 = vrot.slane %v4140, 6
      %v4244 = vsel %vm4237, %v4241, %v4243
      %v4245 = vrot.slane %v4141, 6
      %v4246 = vsel %vm4237, %v4243, %v4245
      %v4247 = vrot.slane %v4142, 6
      %v4248 = vsel %vm4237, %v4245, %v4247
      %v4249 = vrot.slane %v4143, 6
      %v4250 = vsel %vm4237, %v4247, %v4249
      %v4251 = vrot.slane %v4144, 6
      %v4252 = vsel %vm4237, %v4249, %v4251
      %v4253 = vrot.slane %v4145, 6
      %v4254 = vsel %vm4237, %v4251, %v4253
      %v4255 = vrot.slane %v4146, 6
      %v4256 = vsel %vm4237, %v4253, %v4255
      %v4257 = vrot.slane %v4147, 6
      %v4258 = vsel %vm4237, %v4255, %v4257
      %v4259 = vrot.slane %v4148, 6
      %v4260 = vsel %vm4237, %v4257, %v4259
      %v4261 = vrot.slane %v4149, 6
      %v4262 = vsel %vm4237, %v4259, %v4261
      %v4263 = vrot.slane %v4150, 6
      %v4264 = vsel %vm4237, %v4261, %v4263
      %v4265 = vrot.slane %v4151, 6
      %v4266 = vsel %vm4237, %v4263, %v4265
      %v4267 = vrot.slane %v4152, 6
      %v4268 = vsel %vm4237, %v4265, %v4267
      %v4271 = vsel %vm3223, %v4267, %v4238
      %4273 = vrot.lane.b32.xlu0 %v4171, 80
      %v4274 = vpop.permute.xlu0 %4273
      %4275 = vrot.lane.b32.xlu0 %v4173, 80
      %v4276 = vpop.permute.xlu0 %4275
      %4277 = vrot.lane.b32.xlu0 %v4175, 80
      %v4278 = vpop.permute.xlu0 %4277
      %4279 = vrot.lane.b32.xlu0 %v4177, 80
      %v4280 = vpop.permute.xlu0 %4279
      %4281 = vrot.lane.b32.xlu0 %v4179, 80
      %v4282 = vpop.permute.xlu0 %4281
      %4283 = vrot.lane.b32.xlu0 %v4181, 80
      %v4284 = vpop.permute.xlu0 %4283
      %4285 = vrot.lane.b32.xlu0 %v4183, 80
      %v4286 = vpop.permute.xlu0 %4285
      %4287 = vrot.lane.b32.xlu0 %v4185, 80
      %v4288 = vpop.permute.xlu0 %4287
      %4289 = vrot.lane.b32.xlu0 %v4187, 80
      %v4290 = vpop.permute.xlu0 %4289
      %4291 = vrot.lane.b32.xlu0 %v4189, 80
      %v4292 = vpop.permute.xlu0 %4291
      %4293 = vrot.lane.b32.xlu0 %v4191, 80
      %v4294 = vpop.permute.xlu0 %4293
      %4295 = vrot.lane.b32.xlu0 %v4193, 80
      %v4296 = vpop.permute.xlu0 %4295
      %4297 = vrot.lane.b32.xlu0 %v4195, 80
      %v4298 = vpop.permute.xlu0 %4297
      %4299 = vrot.lane.b32.xlu0 %v4197, 80
      %v4300 = vpop.permute.xlu0 %4299
      %4301 = vrot.lane.b32.xlu0 %v4199, 80
      %v4302 = vpop.permute.xlu0 %4301
      %4303 = vrot.lane.b32.xlu0 %v4202, 80
      %v4304 = vpop.permute.xlu0 %4303
      %4306 = vrot.lane.b32.xlu0 %v4205, 32
      %v4307 = vpop.permute.xlu0 %4306
      %4308 = vrot.lane.b32.xlu0 %v4207, 32
      %v4309 = vpop.permute.xlu0 %4308
      %4310 = vrot.lane.b32.xlu0 %v4209, 32
      %v4311 = vpop.permute.xlu0 %4310
      %4312 = vrot.lane.b32.xlu0 %v4211, 32
      %v4313 = vpop.permute.xlu0 %4312
      %4314 = vrot.lane.b32.xlu0 %v4213, 32
      %v4315 = vpop.permute.xlu0 %4314
      %4316 = vrot.lane.b32.xlu0 %v4215, 32
      %v4317 = vpop.permute.xlu0 %4316
      %4318 = vrot.lane.b32.xlu0 %v4217, 32
      %v4319 = vpop.permute.xlu0 %4318
      %4320 = vrot.lane.b32.xlu0 %v4219, 32
      %v4321 = vpop.permute.xlu0 %4320
      %4322 = vrot.lane.b32.xlu0 %v4221, 32
      %v4323 = vpop.permute.xlu0 %4322
      %4324 = vrot.lane.b32.xlu0 %v4223, 32
      %v4325 = vpop.permute.xlu0 %4324
      %4326 = vrot.lane.b32.xlu0 %v4225, 32
      %v4327 = vpop.permute.xlu0 %4326
      %4328 = vrot.lane.b32.xlu0 %v4227, 32
      %v4329 = vpop.permute.xlu0 %4328
      %4330 = vrot.lane.b32.xlu0 %v4229, 32
      %v4331 = vpop.permute.xlu0 %4330
      %4332 = vrot.lane.b32.xlu0 %v4231, 32
      %v4333 = vpop.permute.xlu0 %4332
      %4334 = vrot.lane.b32.xlu0 %v4233, 32
      %v4335 = vpop.permute.xlu0 %4334
      %4336 = vrot.lane.b32.xlu0 %v4236, 32
      %v4337 = vpop.permute.xlu0 %4336
      %4339 = vrot.lane.b32.xlu0 %v4240, 112
      %v4340 = vpop.permute.xlu0 %4339
      %4341 = vrot.lane.b32.xlu0 %v4242, 112
      %v4342 = vpop.permute.xlu0 %4341
      %4343 = vrot.lane.b32.xlu0 %v4244, 112
      %v4344 = vpop.permute.xlu0 %4343
      %4345 = vrot.lane.b32.xlu0 %v4246, 112
      %v4346 = vpop.permute.xlu0 %4345
      %4347 = vrot.lane.b32.xlu0 %v4248, 112
      %v4348 = vpop.permute.xlu0 %4347
      %4349 = vrot.lane.b32.xlu0 %v4250, 112
      %v4350 = vpop.permute.xlu0 %4349
      %4351 = vrot.lane.b32.xlu0 %v4252, 112
      %v4352 = vpop.permute.xlu0 %4351
      %4353 = vrot.lane.b32.xlu0 %v4254, 112
      %v4354 = vpop.permute.xlu0 %4353
      %4355 = vrot.lane.b32.xlu0 %v4256, 112
      %v4356 = vpop.permute.xlu0 %4355
      %4357 = vrot.lane.b32.xlu0 %v4258, 112
      %v4358 = vpop.permute.xlu0 %4357
      %4359 = vrot.lane.b32.xlu0 %v4260, 112
      %v4360 = vpop.permute.xlu0 %4359
      %4361 = vrot.lane.b32.xlu0 %v4262, 112
      %v4362 = vpop.permute.xlu0 %4361
      %4363 = vrot.lane.b32.xlu0 %v4264, 112
      %v4364 = vpop.permute.xlu0 %4363
      %4365 = vrot.lane.b32.xlu0 %v4266, 112
      %v4366 = vpop.permute.xlu0 %4365
      %4367 = vrot.lane.b32.xlu0 %v4268, 112
      %v4368 = vpop.permute.xlu0 %4367
      %4369 = vrot.lane.b32.xlu0 %v4271, 112
      %v4370 = vpop.permute.xlu0 %4369
      %4371 = vrot.lane.b32.xlu0 %v4138, 64
      %v4372 = vpop.permute.xlu0 %4371
      %4373 = vrot.lane.b32.xlu0 %v4139, 64
      %v4374 = vpop.permute.xlu0 %4373
      %4375 = vrot.lane.b32.xlu0 %v4140, 64
      %v4376 = vpop.permute.xlu0 %4375
      %4377 = vrot.lane.b32.xlu0 %v4141, 64
      %v4378 = vpop.permute.xlu0 %4377
      %4379 = vrot.lane.b32.xlu0 %v4142, 64
      %v4380 = vpop.permute.xlu0 %4379
      %4381 = vrot.lane.b32.xlu0 %v4143, 64
      %v4382 = vpop.permute.xlu0 %4381
      %4383 = vrot.lane.b32.xlu0 %v4144, 64
      %v4384 = vpop.permute.xlu0 %4383
      %4385 = vrot.lane.b32.xlu0 %v4145, 64
      %v4386 = vpop.permute.xlu0 %4385
      %4387 = vrot.lane.b32.xlu0 %v4146, 64
      %v4388 = vpop.permute.xlu0 %4387
      %4389 = vrot.lane.b32.xlu0 %v4147, 64
      %v4390 = vpop.permute.xlu0 %4389
      %4391 = vrot.lane.b32.xlu0 %v4148, 64
      %v4392 = vpop.permute.xlu0 %4391
      %4393 = vrot.lane.b32.xlu0 %v4149, 64
      %v4394 = vpop.permute.xlu0 %4393
      %4395 = vrot.lane.b32.xlu0 %v4150, 64
      %v4396 = vpop.permute.xlu0 %4395
      %4397 = vrot.lane.b32.xlu0 %v4151, 64
      %v4398 = vpop.permute.xlu0 %4397
      %4399 = vrot.lane.b32.xlu0 %v4152, 64
      %v4400 = vpop.permute.xlu0 %4399
      %4401 = vrot.lane.b32.xlu0 %v4137, 64
      %v4402 = vpop.permute.xlu0 %4401
      %v4421 = vsel %vm2823, %v4137, %v4274
      %v4425 = vsel %vm2823, %v4138, %v4276
      %v4429 = vsel %vm2823, %v4139, %v4278
      %v4433 = vsel %vm2823, %v4140, %v4280
      %v4437 = vsel %vm2823, %v4141, %v4282
      %v4441 = vsel %vm2823, %v4142, %v4284
      %v4445 = vsel %vm2823, %v4143, %v4286
      %v4449 = vsel %vm2823, %v4144, %v4288
      %v4453 = vsel %vm2823, %v4145, %v4290
      %v4457 = vsel %vm2823, %v4146, %v4292
      %v4461 = vsel %vm2823, %v4147, %v4294
      %v4465 = vsel %vm2823, %v4148, %v4296
      %v4469 = vsel %vm2823, %v4149, %v4298
      %v4473 = vsel %vm2823, %v4150, %v4300
      %v4477 = vsel %vm2823, %v4151, %v4302
      %v4481 = vsel %vm2823, %v4152, %v4304
      %v4484 = vsel %vm1009, %v4274, %v4307
      %v4486 = vsel %vm1009, %v4276, %v4309
      %v4488 = vsel %vm1009, %v4278, %v4311
      %v4490 = vsel %vm1009, %v4280, %v4313
      %v4492 = vsel %vm1009, %v4282, %v4315
      %v4494 = vsel %vm1009, %v4284, %v4317
      %v4496 = vsel %vm1009, %v4286, %v4319
      %v4498 = vsel %vm1009, %v4288, %v4321
      %v4500 = vsel %vm1009, %v4290, %v4323
      %v4502 = vsel %vm1009, %v4292, %v4325
      %v4504 = vsel %vm1009, %v4294, %v4327
      %v4506 = vsel %vm1009, %v4296, %v4329
      %v4508 = vsel %vm1009, %v4298, %v4331
      %v4510 = vsel %vm1009, %v4300, %v4333
      %v4512 = vsel %vm1009, %v4302, %v4335
      %v4514 = vsel %vm1009, %v4304, %v4337
      %vm4515 = vcmask 916480
      %v4517 = vsel %vm4515, %v4484, %v4340
      %v4520 = vsel %vm4515, %v4486, %v4342
      %v4523 = vsel %vm4515, %v4488, %v4344
      %v4526 = vsel %vm4515, %v4490, %v4346
      %v4529 = vsel %vm4515, %v4492, %v4348
      %v4532 = vsel %vm4515, %v4494, %v4350
      %v4535 = vsel %vm4515, %v4496, %v4352
      %v4538 = vsel %vm4515, %v4498, %v4354
      %v4541 = vsel %vm4515, %v4500, %v4356
      %v4544 = vsel %vm4515, %v4502, %v4358
      %v4547 = vsel %vm4515, %v4504, %v4360
      %v4550 = vsel %vm4515, %v4506, %v4362
      %v4553 = vsel %vm4515, %v4508, %v4364
      %v4556 = vsel %vm4515, %v4510, %v4366
      %v4559 = vsel %vm4515, %v4512, %v4368
      %v4562 = vsel %vm4515, %v4514, %v4370
      %v4565 = vsel %vm960, %v4340, %v4372
      %v4568 = vsel %vm960, %v4342, %v4374
      %v4571 = vsel %vm960, %v4344, %v4376
      %v4574 = vsel %vm960, %v4346, %v4378
      %v4577 = vsel %vm960, %v4348, %v4380
      %v4580 = vsel %vm960, %v4350, %v4382
      %v4583 = vsel %vm960, %v4352, %v4384
      %v4586 = vsel %vm960, %v4354, %v4386
      %v4589 = vsel %vm960, %v4356, %v4388
      %v4592 = vsel %vm960, %v4358, %v4390
      %v4595 = vsel %vm960, %v4360, %v4392
      %v4598 = vsel %vm960, %v4362, %v4394
      %v4601 = vsel %vm960, %v4364, %v4396
      %v4604 = vsel %vm960, %v4366, %v4398
      %v4607 = vsel %vm960, %v4368, %v4400
      %v4610 = vsel %vm960, %v4370, %v4402
      %v4612 = vld [vmem:[%s5] sm:$0xff]
      %v4614 = vunpack.c.l.b16 %v4612
      %v4615 = vunpack.c.h.b16 %v4612
      %v4616 = vpack.c.b16 %v4614, %v4614
      %v4617 = vpack.c.b16 %v4615, %v4615
      %4620 = vmatprep.subr.bf16.mxu0 %v4517
      %4621 = vmatpush1.bf16.msra.mxu0 %v4421
      %4622 = vmatprep.subr.bf16.mxu0 %v4520
      %4623 = vmatpush1.bf16.msra.mxu0 %v4425
      %4624 = vmatprep.subr.bf16.mxu0 %v4523
      %4625 = vmatpush1.bf16.msra.mxu0 %v4429
      %4626 = vmatprep.subr.bf16.mxu0 %v4526
      %4627 = vmatpush1.bf16.msra.mxu0 %v4433
      %4628 = vmatprep.subr.bf16.mxu0 %v4529
      %4629 = vmatpush1.bf16.msra.mxu0 %v4437
      %4630 = vmatprep.subr.bf16.mxu0 %v4532
      %4631 = vmatpush1.bf16.msra.mxu0 %v4441
      %4632 = vmatprep.subr.bf16.mxu0 %v4535
      %4633 = vmatpush1.bf16.msra.mxu0 %v4445
      %4634 = vmatprep.subr.bf16.mxu0 %v4538
      %4635 = vmatpush1.bf16.msra.mxu0 %v4449
      %4636 = vmatprep.subr.bf16.mxu0 %v4541
      %4637 = vmatpush1.bf16.msra.mxu0 %v4453
      %4638 = vmatprep.subr.bf16.mxu0 %v4544
      %4639 = vmatpush1.bf16.msra.mxu0 %v4457
      %4640 = vmatprep.subr.bf16.mxu0 %v4547
      %4641 = vmatpush1.bf16.msra.mxu0 %v4461
      %4642 = vmatprep.subr.bf16.mxu0 %v4550
      %4643 = vmatpush1.bf16.msra.mxu0 %v4465
      %4644 = vmatprep.subr.bf16.mxu0 %v4553
      %4645 = vmatpush1.bf16.msra.mxu0 %v4469
      %4646 = vmatprep.subr.bf16.mxu0 %v4556
      %4647 = vmatpush1.bf16.msra.mxu0 %v4473
      %4648 = vmatprep.subr.bf16.mxu0 %v4559
      %4649 = vmatpush1.bf16.msra.mxu0 %v4477
      %4650 = vmatprep.subr.bf16.mxu0 %v4562
      %4651 = vmatpush1.bf16.msra.mxu0 %v4481
      %4652 = vmatprep.mubr.bf16.mxu0 %v4617
      %4653 = vmatmul.mubr.bf16.gmra.mrb[0].mxu0 %v4616
      %v4654 = vpop.f32.mrb[0].mxu0
      %v4655 = vadd.f32 0.0, %v4654
      %v4656 = vpop.f32.mrb[0].mxu0
      %v4657 = vadd.f32 0.0, %v4656
      %v4658 = vpop.f32.mrb[0].mxu0
      %v4659 = vpop.f32.mrb[0].mxu0
      %4660 = vdwg.mxu0
      %4661 = vmatprep.subr.bf16.mxu0 %v4372
      %4662 = vmatpush1.bf16.msra.mxu0 %v4565
      %4663 = vmatprep.subr.bf16.mxu0 %v4374
      %4664 = vmatpush1.bf16.msra.mxu0 %v4568
      %4665 = vmatprep.subr.bf16.mxu0 %v4376
      %4666 = vmatpush1.bf16.msra.mxu0 %v4571
      %4667 = vmatprep.subr.bf16.mxu0 %v4378
      %4668 = vmatpush1.bf16.msra.mxu0 %v4574
      %4669 = vmatprep.subr.bf16.mxu0 %v4380
      %4670 = vmatpush1.bf16.msra.mxu0 %v4577
      %4671 = vmatprep.subr.bf16.mxu0 %v4382
      %4672 = vmatpush1.bf16.msra.mxu0 %v4580
      %4673 = vmatprep.subr.bf16.mxu0 %v4384
      %4674 = vmatpush1.bf16.msra.mxu0 %v4583
      %4675 = vmatprep.subr.bf16.mxu0 %v4386
      %4676 = vmatpush1.bf16.msra.mxu0 %v4586
      %4677 = vmatprep.subr.bf16.mxu0 %v4388
      %4678 = vmatpush1.bf16.msra.mxu0 %v4589
      %4679 = vmatprep.subr.bf16.mxu0 %v4390
      %4680 = vmatpush1.bf16.msra.mxu0 %v4592
      %4681 = vmatprep.subr.bf16.mxu0 %v4392
      %4682 = vmatpush1.bf16.msra.mxu0 %v4595
      %4683 = vmatprep.subr.bf16.mxu0 %v4394
      %4684 = vmatpush1.bf16.msra.mxu0 %v4598
      %4685 = vmatprep.subr.bf16.mxu0 %v4396
      %4686 = vmatpush1.bf16.msra.mxu0 %v4601
      %4687 = vmatprep.subr.bf16.mxu0 %v4398
      %4688 = vmatpush1.bf16.msra.mxu0 %v4604
      %4689 = vmatprep.subr.bf16.mxu0 %v4400
      %4690 = vmatpush1.bf16.msra.mxu0 %v4607
      %4691 = vmatprep.subr.bf16.mxu0 %v4402
      %4692 = vmatpush1.bf16.msra.mxu0 %v4610
      %4693 = vmatprep.mubr.bf16.mxu0 %v4617
      %4694 = vmatmul.mubr.bf16.gmra.mrb[0].mxu0 %v4616
      %v4695 = vpop.f32.mrb[0].mxu0
      %v4696 = vadd.f32 0.0, %v4695
      %v4697 = vpop.f32.mrb[0].mxu0
      %v4698 = vadd.f32 0.0, %v4697
      %v4699 = vpop.f32.mrb[0].mxu0
      %v4700 = vpop.f32.mrb[0].mxu0
      %4701 = vdwg.mxu0
      %v4702 = vpack.c.bf16 %v4655, %v4655
      %v4703 = vpack.c.bf16 %v4657, %v4657
      %v4704 = vpack.c.bf16 %v4696, %v4696
      %v4705 = vpack.c.bf16 %v4698, %v4698
      %v4706 = vld [vmem:[%s6] sm:$0xf]
      %v4707 = vld [vmem:[%s6 + $0x4] sm:$0xf]
      %v4708 = vld [vmem:[%s6 + $0x8] sm:$0xf]
      %v4709 = vld [vmem:[%s6 + $0xc] sm:$0xf]
      %v4710 = vld [vmem:[%s6 + $0x10] sm:$0xf]
      %v4711 = vld [vmem:[%s6 + $0x14] sm:$0xf]
      %v4712 = vld [vmem:[%s6 + $0x18] sm:$0xf]
      %v4713 = vld [vmem:[%s6 + $0x1c] sm:$0xf]
      %v4714 = vld [vmem:[%s6 + $0x20] sm:$0xf]
      %v4715 = vld [vmem:[%s6 + $0x24] sm:$0xf]
      %v4716 = vld [vmem:[%s6 + $0x28] sm:$0xf]
      %v4717 = vld [vmem:[%s6 + $0x2c] sm:$0xf]
      %v4718 = vld [vmem:[%s6 + $0x30] sm:$0xf]
      %v4719 = vld [vmem:[%s6 + $0x34] sm:$0xf]
      %v4720 = vld [vmem:[%s6 + $0x38] sm:$0xf]
      %v4721 = vld [vmem:[%s6 + $0x3c] sm:$0xf]
      %v4722 = vld [vmem:[%s6 + $0x40] sm:$0xf]
      %v4723 = vld [vmem:[%s6 + $0x44] sm:$0xf]
      %v4724 = vld [vmem:[%s6 + $0x48] sm:$0xf]
      %v4725 = vld [vmem:[%s6 + $0x4c] sm:$0xf]
      %v4726 = vld [vmem:[%s6 + $0x50] sm:$0xf]
      %v4727 = vld [vmem:[%s6 + $0x54] sm:$0xf]
      %v4728 = vld [vmem:[%s6 + $0x58] sm:$0xf]
      %v4729 = vld [vmem:[%s6 + $0x5c] sm:$0xf]
      %v4730 = vld [vmem:[%s6 + $0x60] sm:$0xf]
      %v4731 = vld [vmem:[%s6 + $0x64] sm:$0xf]
      %v4732 = vld [vmem:[%s6 + $0x68] sm:$0xf]
      %v4733 = vld [vmem:[%s6 + $0x6c] sm:$0xf]
      %v4734 = vld [vmem:[%s6 + $0x70] sm:$0xf]
      %v4735 = vld [vmem:[%s6 + $0x74] sm:$0xf]
      %v4736 = vld [vmem:[%s6 + $0x78] sm:$0xf]
      %v4737 = vld [vmem:[%s6 + $0x7c] sm:$0xf]
      %v4738 = vld [vmem:[%s6 + $0x80] sm:$0xf]
      %v4739 = vld [vmem:[%s6 + $0x84] sm:$0xf]
      %v4740 = vld [vmem:[%s6 + $0x88] sm:$0xf]
      %v4741 = vld [vmem:[%s6 + $0x8c] sm:$0xf]
      %v4742 = vld [vmem:[%s6 + $0x90] sm:$0xf]
      %v4743 = vld [vmem:[%s6 + $0x94] sm:$0xf]
      %v4744 = vld [vmem:[%s6 + $0x98] sm:$0xf]
      %v4745 = vld [vmem:[%s6 + $0x9c] sm:$0xf]
      %v4746 = vld [vmem:[%s6 + $0xa0] sm:$0xf]
      %v4747 = vld [vmem:[%s6 + $0xa4] sm:$0xf]
      %v4748 = vld [vmem:[%s6 + $0xa8] sm:$0xf]
      %v4749 = vld [vmem:[%s6 + $0xac] sm:$0xf]
      %v4750 = vld [vmem:[%s6 + $0xb0] sm:$0xf]
      %v4751 = vld [vmem:[%s6 + $0xb4] sm:$0xf]
      %v4752 = vld [vmem:[%s6 + $0xb8] sm:$0xf]
      %v4753 = vld [vmem:[%s6 + $0xbc] sm:$0xf]
      %v4754 = vld [vmem:[%s6 + $0xc0] sm:$0xf]
      %v4755 = vld [vmem:[%s6 + $0xc4] sm:$0xf]
      %v4756 = vld [vmem:[%s7] sm:$0x1]
      %v4758 = vlaneseq
      %v4759 = vshrl.u32 %v4758, 7
      %v4760 = vsub.s32 0, %v4759
      %v4761 = vrot.slane %v4756, %v4760
      %v4813 = vunpack.c.l.b16 %v4706
      %v4814 = vunpack.c.l.b16 %v4707
      %v4815 = vunpack.c.l.b16 %v4708
      %v4816 = vunpack.c.l.b16 %v4709
      %v4817 = vunpack.c.l.b16 %v4710
      %v4818 = vunpack.c.l.b16 %v4711
      %v4819 = vunpack.c.l.b16 %v4712
      %v4820 = vunpack.c.l.b16 %v4713
      %v4821 = vunpack.c.l.b16 %v4714
      %v4822 = vunpack.c.l.b16 %v4715
      %v4823 = vunpack.c.l.b16 %v4716
      %v4824 = vunpack.c.l.b16 %v4717
      %v4825 = vunpack.c.l.b16 %v4718
      %v4826 = vunpack.c.l.b16 %v4719
      %v4827 = vunpack.c.l.b16 %v4720
      %v4828 = vunpack.c.l.b16 %v4721
      %v4829 = vunpack.c.l.b16 %v4722
      %v4830 = vunpack.c.l.b16 %v4723
      %v4831 = vunpack.c.l.b16 %v4724
      %v4832 = vunpack.c.l.b16 %v4725
      %v4833 = vunpack.c.l.b16 %v4726
      %v4834 = vunpack.c.l.b16 %v4727
      %v4835 = vunpack.c.l.b16 %v4728
      %v4836 = vunpack.c.l.b16 %v4729
      %v4837 = vunpack.c.l.b16 %v4730
      %v4838 = vunpack.c.l.b16 %v4731
      %v4839 = vunpack.c.l.b16 %v4732
      %v4840 = vunpack.c.l.b16 %v4733
      %v4841 = vunpack.c.l.b16 %v4734
      %v4842 = vunpack.c.l.b16 %v4735
      %v4843 = vunpack.c.l.b16 %v4736
      %v4844 = vunpack.c.l.b16 %v4737
      %v4845 = vunpack.c.l.b16 %v4738
      %v4846 = vunpack.c.l.b16 %v4739
      %v4847 = vunpack.c.l.b16 %v4740
      %v4848 = vunpack.c.l.b16 %v4741
      %v4849 = vunpack.c.l.b16 %v4742
      %v4850 = vunpack.c.l.b16 %v4743
      %v4851 = vunpack.c.l.b16 %v4744
      %v4852 = vunpack.c.l.b16 %v4745
      %v4853 = vunpack.c.l.b16 %v4746
      %v4854 = vunpack.c.l.b16 %v4747
      %v4855 = vunpack.c.l.b16 %v4748
      %v4856 = vunpack.c.l.b16 %v4749
      %v4857 = vunpack.c.l.b16 %v4750
      %v4858 = vunpack.c.l.b16 %v4751
      %v4859 = vunpack.c.l.b16 %v4752
      %v4860 = vunpack.c.l.b16 %v4753
      %v4861 = vunpack.c.l.b16 %v4754
      %v4862 = vunpack.c.l.b16 %v4755
      %v4863 = vpack.c.b16 %v4814, %v4813
      %v4864 = vpack.c.b16 %v4816, %v4815
      %v4865 = vpack.c.b16 %v4818, %v4817
      %v4866 = vpack.c.b16 %v4820, %v4819
      %v4867 = vpack.c.b16 %v4822, %v4821
      %v4868 = vpack.c.b16 %v4824, %v4823
      %v4869 = vpack.c.b16 %v4826, %v4825
      %v4870 = vpack.c.b16 %v4828, %v4827
      %v4871 = vpack.c.b16 %v4830, %v4829
      %v4872 = vpack.c.b16 %v4832, %v4831
      %v4873 = vpack.c.b16 %v4834, %v4833
      %v4874 = vpack.c.b16 %v4836, %v4835
      %v4875 = vpack.c.b16 %v4838, %v4837
      %v4876 = vpack.c.b16 %v4840, %v4839
      %v4877 = vpack.c.b16 %v4842, %v4841
      %v4878 = vpack.c.b16 %v4844, %v4843
      %v4879 = vpack.c.b16 %v4846, %v4845
      %v4880 = vpack.c.b16 %v4848, %v4847
      %v4881 = vpack.c.b16 %v4850, %v4849
      %v4882 = vpack.c.b16 %v4852, %v4851
      %v4883 = vpack.c.b16 %v4854, %v4853
      %v4884 = vpack.c.b16 %v4856, %v4855
      %v4885 = vpack.c.b16 %v4858, %v4857
      %v4886 = vpack.c.b16 %v4860, %v4859
      %v4887 = vpack.c.b16 %v4862, %v4861
      %vm4913 = vcmask 130048
      %v4915 = vsel %vm4913, %v4705, 0
      %4917 = vmatprep.subr.bf16.mxu0 0
      %4918 = vmatpush1.bf16.msra.mxu0 %v4863
      %4919 = vmatprep.subr.bf16.mxu0 0
      %4920 = vmatpush1.bf16.msra.mxu0 %v4864
      %4921 = vmatprep.subr.bf16.mxu0 0
      %4922 = vmatpush1.bf16.msra.mxu0 %v4865
      %4923 = vmatprep.subr.bf16.mxu0 0
      %4924 = vmatpush1.bf16.msra.mxu0 %v4866
      %4925 = vmatprep.subr.bf16.mxu0 0
      %4926 = vmatpush1.bf16.msra.mxu0 %v4867
      %4927 = vmatprep.subr.bf16.mxu0 0
      %4928 = vmatpush1.bf16.msra.mxu0 %v4868
      %4929 = vmatprep.subr.bf16.mxu0 0
      %4930 = vmatpush1.bf16.msra.mxu0 %v4869
      %4931 = vmatprep.subr.bf16.mxu0 0
      %4932 = vmatpush1.bf16.msra.mxu0 %v4870
      %4933 = vmatprep.subr.bf16.mxu0 0
      %4934 = vmatpush1.bf16.msra.mxu0 %v4871
      %4935 = vmatprep.subr.bf16.mxu0 0
      %4936 = vmatpush1.bf16.msra.mxu0 %v4872
      %4937 = vmatprep.subr.bf16.mxu0 0
      %4938 = vmatpush1.bf16.msra.mxu0 %v4873
      %4939 = vmatprep.subr.bf16.mxu0 0
      %4940 = vmatpush1.bf16.msra.mxu0 %v4874
      %4941 = vmatprep.subr.bf16.mxu0 0
      %4942 = vmatpush1.bf16.msra.mxu0 %v4875
      %4943 = vmatprep.subr.bf16.mxu0 0
      %4944 = vmatpush1.bf16.msra.mxu0 %v4876
      %4945 = vmatprep.subr.bf16.mxu0 0
      %4946 = vmatpush1.bf16.msra.mxu0 %v4877
      %4947 = vmatprep.subr.bf16.mxu0 0
      %4948 = vmatpush1.bf16.msra.mxu0 %v4878
      %4949 = vmatprep.mubr.bf16.mxu0 %v4703
      %4950 = vmatmul.mubr.bf16.gmra.mrb[0].mxu0 %v4702
      %v4951 = vpop.f32.mrb[0].mxu0
      %v4952 = vadd.f32 %v4761, %v4951
      %v4953 = vpop.f32.mrb[0].mxu0
      %v4954 = vpop.f32.mrb[0].mxu0
      %v4955 = vpop.f32.mrb[0].mxu0
      %4956 = vdwg.mxu0
      %4957 = vmatprep.subr.bf16.mxu0 0
      %4958 = vmatpush1.bf16.msra.mxu0 %v4879
      %4959 = vmatprep.subr.bf16.mxu0 0
      %4960 = vmatpush1.bf16.msra.mxu0 %v4880
      %4961 = vmatprep.subr.bf16.mxu0 0
      %4962 = vmatpush1.bf16.msra.mxu0 %v4881
      %4963 = vmatprep.subr.bf16.mxu0 0
      %4964 = vmatpush1.bf16.msra.mxu0 %v4882
      %4965 = vmatprep.subr.bf16.mxu0 0
      %4966 = vmatpush1.bf16.msra.mxu0 %v4883
      %4967 = vmatprep.subr.bf16.mxu0 0
      %4968 = vmatpush1.bf16.msra.mxu0 %v4884
      %4969 = vmatprep.subr.bf16.mxu0 0
      %4970 = vmatpush1.bf16.msra.mxu0 %v4885
      %4971 = vmatprep.subr.bf16.mxu0 0
      %4972 = vmatpush1.bf16.msra.mxu0 %v4886
      %4973 = vmatprep.subr.bf16.mxu0 0
      %4974 = vmatpush1.bf16.msra.mxu0 %v4887
      %4975 = vmatprep.subr.bf16.mxu0 0
      %4976 = vmatpush1.bf16.msra.mxu0 0
      %4977 = vmatprep.subr.bf16.mxu0 0
      %4978 = vmatpush1.bf16.msra.mxu0 0
      %4979 = vmatprep.subr.bf16.mxu0 0
      %4980 = vmatpush1.bf16.msra.mxu0 0
      %4981 = vmatprep.subr.bf16.mxu0 0
      %4982 = vmatpush1.bf16.msra.mxu0 0
      %4983 = vmatprep.subr.bf16.mxu0 0
      %4984 = vmatpush1.bf16.msra.mxu0 0
      %4985 = vmatprep.subr.bf16.mxu0 0
      %4986 = vmatpush1.bf16.msra.mxu0 0
      %4987 = vmatprep.subr.bf16.mxu0 0
      %4988 = vmatpush1.bf16.msra.mxu0 0
      %4989 = vmatprep.mubr.bf16.mxu0 %v4915
      %4990 = vmatmul.mubr.bf16.gmra.mrb[0].mxu0 %v4704
      %v4991 = vpop.f32.mrb[0].mxu0
      %v4992 = vadd.f32 %v4952, %v4991
      %v4993 = vpop.f32.mrb[0].mxu0
      %v4994 = vpop.f32.mrb[0].mxu0
      %v4995 = vpop.f32.mrb[0].mxu0
      %4996 = vdwg.mxu0
      %v4997 = vmax.f32 %v4992, 0.0
      %v4998 = vpack.c.bf16 %v4997, %v4997
      %v4999 = vld [vmem:[%s8] sm:$0xf]
      %v5000 = vld [vmem:[%s8 + $0x4] sm:$0xf]
      %v5001 = vld [vmem:[%s8 + $0x8] sm:$0xf]
      %v5002 = vld [vmem:[%s8 + $0xc] sm:$0xf]
      %v5003 = vld [vmem:[%s8 + $0x10] sm:$0xf]
      %v5004 = vld [vmem:[%s8 + $0x14] sm:$0xf]
      %v5005 = vld [vmem:[%s8 + $0x18] sm:$0xf]
      %v5006 = vld [vmem:[%s8 + $0x1c] sm:$0xf]
      %v5007 = vld [vmem:[%s8 + $0x20] sm:$0xf]
      %v5008 = vld [vmem:[%s8 + $0x24] sm:$0xf]
      %v5009 = vld [vmem:[%s8 + $0x28] sm:$0xf]
      %v5010 = vld [vmem:[%s8 + $0x2c] sm:$0xf]
      %v5011 = vld [vmem:[%s8 + $0x30] sm:$0xf]
      %v5012 = vld [vmem:[%s8 + $0x34] sm:$0xf]
      %v5013 = vld [vmem:[%s8 + $0x38] sm:$0xf]
      %v5014 = vld [vmem:[%s8 + $0x3c] sm:$0xf]
      %v5015 = vld [vmem:[%s9] sm:$0x1]
      %v5017 = vlaneseq
      %v5018 = vshrl.u32 %v5017, 7
      %v5019 = vsub.s32 0, %v5018
      %v5020 = vrot.slane %v5015, %v5019
      %v5038 = vunpack.c.l.b16 %v4999
      %v5039 = vunpack.c.l.b16 %v5000
      %v5040 = vunpack.c.l.b16 %v5001
      %v5041 = vunpack.c.l.b16 %v5002
      %v5042 = vunpack.c.l.b16 %v5003
      %v5043 = vunpack.c.l.b16 %v5004
      %v5044 = vunpack.c.l.b16 %v5005
      %v5045 = vunpack.c.l.b16 %v5006
      %v5046 = vunpack.c.l.b16 %v5007
      %v5047 = vunpack.c.l.b16 %v5008
      %v5048 = vunpack.c.l.b16 %v5009
      %v5049 = vunpack.c.l.b16 %v5010
      %v5050 = vunpack.c.l.b16 %v5011
      %v5051 = vunpack.c.l.b16 %v5012
      %v5052 = vunpack.c.l.b16 %v5013
      %v5053 = vunpack.c.l.b16 %v5014
      %v5054 = vpack.c.b16 %v5039, %v5038
      %v5055 = vpack.c.b16 %v5041, %v5040
      %v5056 = vpack.c.b16 %v5043, %v5042
      %v5057 = vpack.c.b16 %v5045, %v5044
      %v5058 = vpack.c.b16 %v5047, %v5046
      %v5059 = vpack.c.b16 %v5049, %v5048
      %v5060 = vpack.c.b16 %v5051, %v5050
      %v5061 = vpack.c.b16 %v5053, %v5052
      %5070 = vmatprep.subr.bf16.mxu0 0
      %5071 = vmatpush1.bf16.msra.mxu0 %v5054
      %5072 = vmatprep.subr.bf16.mxu0 0
      %5073 = vmatpush1.bf16.msra.mxu0 %v5055
      %5074 = vmatprep.subr.bf16.mxu0 0
      %5075 = vmatpush1.bf16.msra.mxu0 %v5056
      %5076 = vmatprep.subr.bf16.mxu0 0
      %5077 = vmatpush1.bf16.msra.mxu0 %v5057
      %5078 = vmatprep.subr.bf16.mxu0 0
      %5079 = vmatpush1.bf16.msra.mxu0 %v5058
      %5080 = vmatprep.subr.bf16.mxu0 0
      %5081 = vmatpush1.bf16.msra.mxu0 %v5059
      %5082 = vmatprep.subr.bf16.mxu0 0
      %5083 = vmatpush1.bf16.msra.mxu0 %v5060
      %5084 = vmatprep.subr.bf16.mxu0 0
      %5085 = vmatpush1.bf16.msra.mxu0 %v5061
      %5086 = vmatprep.subr.bf16.mxu0 0
      %5087 = vmatpush1.bf16.msra.mxu0 0
      %5088 = vmatprep.subr.bf16.mxu0 0
      %5089 = vmatpush1.bf16.msra.mxu0 0
      %5090 = vmatprep.subr.bf16.mxu0 0
      %5091 = vmatpush1.bf16.msra.mxu0 0
      %5092 = vmatprep.subr.bf16.mxu0 0
      %5093 = vmatpush1.bf16.msra.mxu0 0
      %5094 = vmatprep.subr.bf16.mxu0 0
      %5095 = vmatpush1.bf16.msra.mxu0 0
      %5096 = vmatprep.subr.bf16.mxu0 0
      %5097 = vmatpush1.bf16.msra.mxu0 0
      %5098 = vmatprep.subr.bf16.mxu0 0
      %5099 = vmatpush1.bf16.msra.mxu0 0
      %5100 = vmatprep.subr.bf16.mxu0 0
      %5101 = vmatpush1.bf16.msra.mxu0 0
      %5102 = vmatprep.mubr.bf16.mxu0 0
      %5103 = vmatmul.mubr.bf16.gmra.mrb[0].mxu0 %v4998
      %v5104 = vpop.f32.mrb[0].mxu0
      %v5105 = vadd.f32 %v5020, %v5104
      %v5106 = vpop.f32.mrb[0].mxu0
      %v5107 = vpop.f32.mrb[0].mxu0
      %v5108 = vpop.f32.mrb[0].mxu0
      %5109 = vdwg.mxu0
      %v5110 = vmax.f32 %v5105, 0.0
      %v5111 = vpack.c.bf16 %v5110, %v5110
      %v5112 = vld [vmem:[%s10] sm:$0xf]
      %v5113 = vld [vmem:[%s10 + $0x4] sm:$0xf]
      %v5114 = vld [vmem:[%s10 + $0x8] sm:$0xf]
      %v5115 = vld [vmem:[%s10 + $0xc] sm:$0xf]
      %v5116 = vld [vmem:[%s10 + $0x10] sm:$0xf]
      %v5117 = vld [vmem:[%s10 + $0x14] sm:$0xf]
      %v5118 = vld [vmem:[%s10 + $0x18] sm:$0xf]
      %v5119 = vld [vmem:[%s10 + $0x1c] sm:$0xf]
      %v5120 = vld [vmem:[%s10 + $0x20] sm:$0xf]
      %v5121 = vld [vmem:[%s10 + $0x24] sm:$0xf]
      %v5122 = vld [vmem:[%s10 + $0x28] sm:$0xf]
      %v5123 = vld [vmem:[%s10 + $0x2c] sm:$0xf]
      %v5124 = vld [vmem:[%s10 + $0x30] sm:$0xf]
      %v5125 = vld [vmem:[%s10 + $0x34] sm:$0xf]
      %v5126 = vld [vmem:[%s10 + $0x38] sm:$0xf]
      %v5127 = vld [vmem:[%s10 + $0x3c] sm:$0xf]
      %v5128 = vld [vmem:[%s11] sm:$0x1]
      %v5130 = vlaneseq
      %v5131 = vshrl.u32 %v5130, 7
      %v5132 = vsub.s32 0, %v5131
      %v5133 = vrot.slane %v5128, %v5132
      %v5151 = vunpack.c.l.b16 %v5112
      %v5152 = vunpack.c.l.b16 %v5113
      %v5153 = vunpack.c.l.b16 %v5114
      %v5154 = vunpack.c.l.b16 %v5115
      %v5155 = vunpack.c.l.b16 %v5116
      %v5156 = vunpack.c.l.b16 %v5117
      %v5157 = vunpack.c.l.b16 %v5118
      %v5158 = vunpack.c.l.b16 %v5119
      %v5159 = vunpack.c.l.b16 %v5120
      %v5160 = vunpack.c.l.b16 %v5121
      %v5161 = vunpack.c.l.b16 %v5122
      %v5162 = vunpack.c.l.b16 %v5123
      %v5163 = vunpack.c.l.b16 %v5124
      %v5164 = vunpack.c.l.b16 %v5125
      %v5165 = vunpack.c.l.b16 %v5126
      %v5166 = vunpack.c.l.b16 %v5127
      %v5167 = vpack.c.b16 %v5152, %v5151
      %v5168 = vpack.c.b16 %v5154, %v5153
      %v5169 = vpack.c.b16 %v5156, %v5155
      %v5170 = vpack.c.b16 %v5158, %v5157
      %v5171 = vpack.c.b16 %v5160, %v5159
      %v5172 = vpack.c.b16 %v5162, %v5161
      %v5173 = vpack.c.b16 %v5164, %v5163
      %v5174 = vpack.c.b16 %v5166, %v5165
      %5183 = vmatprep.subr.bf16.mxu0 0
      %5184 = vmatpush1.bf16.msra.mxu0 %v5167
      %5185 = vmatprep.subr.bf16.mxu0 0
      %5186 = vmatpush1.bf16.msra.mxu0 %v5168
      %5187 = vmatprep.subr.bf16.mxu0 0
      %5188 = vmatpush1.bf16.msra.mxu0 %v5169
      %5189 = vmatprep.subr.bf16.mxu0 0
      %5190 = vmatpush1.bf16.msra.mxu0 %v5170
      %5191 = vmatprep.subr.bf16.mxu0 0
      %5192 = vmatpush1.bf16.msra.mxu0 %v5171
      %5193 = vmatprep.subr.bf16.mxu0 0
      %5194 = vmatpush1.bf16.msra.mxu0 %v5172
      %5195 = vmatprep.subr.bf16.mxu0 0
      %5196 = vmatpush1.bf16.msra.mxu0 %v5173
      %5197 = vmatprep.subr.bf16.mxu0 0
      %5198 = vmatpush1.bf16.msra.mxu0 %v5174
      %5199 = vmatprep.subr.bf16.mxu0 0
      %5200 = vmatpush1.bf16.msra.mxu0 0
      %5201 = vmatprep.subr.bf16.mxu0 0
      %5202 = vmatpush1.bf16.msra.mxu0 0
      %5203 = vmatprep.subr.bf16.mxu0 0
      %5204 = vmatpush1.bf16.msra.mxu0 0
      %5205 = vmatprep.subr.bf16.mxu0 0
      %5206 = vmatpush1.bf16.msra.mxu0 0
      %5207 = vmatprep.subr.bf16.mxu0 0
      %5208 = vmatpush1.bf16.msra.mxu0 0
      %5209 = vmatprep.subr.bf16.mxu0 0
      %5210 = vmatpush1.bf16.msra.mxu0 0
      %5211 = vmatprep.subr.bf16.mxu0 0
      %5212 = vmatpush1.bf16.msra.mxu0 0
      %5213 = vmatprep.subr.bf16.mxu0 0
      %5214 = vmatpush1.bf16.msra.mxu0 0
      %5215 = vmatprep.mubr.bf16.mxu0 0
      %5216 = vmatmul.mubr.bf16.gmra.mrb[0].mxu0 %v5111
      %v5217 = vpop.f32.mrb[0].mxu0
      %v5218 = vadd.f32 %v5133, %v5217
      %v5219 = vpop.f32.mrb[0].mxu0
      %v5220 = vpop.f32.mrb[0].mxu0
      %v5221 = vpop.f32.mrb[0].mxu0
      %5222 = vdwg.mxu0
      %v5223 = vmax.f32 %v5218, 0.0
      %5224 = vst [vmem:[%s413] sm:$0xff] %v5223
      %p5225 = scmp.lt.s32.totalorder %s23, 3
      %s5226 = scalar_select %p5225, %s23, 3
      %s5227 = smul.addr %s5226, 8
      %s5228 = scalar_lea.vmem %s12, %s5227
      // Predicated region
      $region69: #{coolnet_forward.1} parent=67 // pred_check
        %p5229 = pneg %p298
      $region70: #{coolnet_forward.1} parent=67 // pred_check_branch
        %5231 = sbr.rel (%p5229) target = $region72
      $region71: #{coolnet_forward.1} parent=67 // pred_region
        _
      $region72: #{coolnet_forward.1} parent=67 // pred_fallthru
        _
    $region68: #{coolnet_forward.1} parent=5 // pred_fallthru
      _
    %p5232 = scmp.le.s32.totalorder 2, %s18
    // Predicated region
    $region73: #{coolnet_forward.1} parent=5 // pred_check
      %p5233 = pneg %p5232
    $region74: #{coolnet_forward.1} parent=5 // pred_check_branch
      %5235 = sbr.rel (%p5233) target = $region76
    $region75: #{coolnet_forward.1} parent=5 // pred_region
      %s5236 = ssub.s32 %s18, 2
      // Predicated region
      $region77: #{coolnet_forward.1} parent=75 // pred_check
        %p5237 = pneg %p304
      $region78: #{coolnet_forward.1} parent=75 // pred_check_branch
        %5239 = sbr.rel (%p5237) target = $region80
      $region79: #{coolnet_forward.1} parent=75 // pred_region
        %p5240 = scmp.lt.s32.totalorder %s24, 3
        %s5241 = scalar_select %p5240, %s24, 3
        %s5242 = smul.addr %s5241, 8
        %s5243 = scalar_lea.vmem %s12, %s5242
      $region80: #{coolnet_forward.1} parent=75 // pred_fallthru
        _
    $region76: #{coolnet_forward.1} parent=5 // pred_fallthru
      _
  $region6: #{coolnet_forward.1} parent=0 // loop_footer
    %s22 = sadd.s32 1, %s18
  $region7: #{coolnet_forward.1} parent=0 // loop_footer_branch
    %17 = sbr.rel target = $region3
  $region8: #{coolnet_forward.1} parent=0 // loop_exit
    _

</llo_original>
